<compile_context>
chip_gen: v5e
topology: v5e:2x2
jax: 0.10.0
libtpu: 0.0.40
codegen_flags: <defaults>
</compile_context>

<pallas_src>
import jax
import jax.numpy as jnp
from jax.experimental import pallas as pl
from jax.experimental.pallas import tpu as pltpu

IN_DIM = 28 * 28     # 784
HID = 512
OUT_DIM = 10
OUT_PAD = 128        # lane-dense logits store


def mlp_kernel(x_ref, w1_ref, b1_ref, w2_ref, b2_ref,
               w3_ref, b3_ref, w4_ref, b4_ref, o_ref):
    """One batch tile of the fused 4-layer MLP.

    x_ref:   (TM, 784)  f32 activation tile (streamed per grid step)
    w*_ref:  bf16 weights, (in, out) layout; resident across grid steps
    b*_ref:  f32 biases, (1, out)
    o_ref:   (TM, OUT_PAD) f32 logits tile (cols >= OUT_DIM are zero-padded)
    """
    # Cast the f32 tile to bf16 on the VPU so all four matmuls run
    # bf16 x bf16 -> f32 on the MXU.
    x = x_ref[...].astype(jnp.bfloat16)

    h = jnp.dot(x, w1_ref[...], preferred_element_type=jnp.float32) + b1_ref[...]
    h = jnp.maximum(h, 0.0).astype(jnp.bfloat16)

    h = jnp.dot(h, w2_ref[...], preferred_element_type=jnp.float32) + b2_ref[...]
    h = jnp.maximum(h, 0.0).astype(jnp.bfloat16)

    h = jnp.dot(h, w3_ref[...], preferred_element_type=jnp.float32) + b3_ref[...]
    h = jnp.maximum(h, 0.0).astype(jnp.bfloat16)

    logits = jnp.dot(h, w4_ref[...], preferred_element_type=jnp.float32) + b4_ref[...]
    o_ref[...] = logits.astype(o_ref.dtype)


def prepare_params(params):
    """One-time weight prep: bf16 cast + pad layer-4 output lanes 10 -> 128.

    Call once and reuse the result across forward calls, so the per-call HBM
    traffic is only x, the resident bf16 weights and the logits.
    """
    w1, b1, w2, b2, w3, b3, w4, b4 = params
    w4p = jnp.pad(w4, ((0, 0), (0, OUT_PAD - OUT_DIM))).astype(jnp.bfloat16)
    b4p = jnp.pad(b4, ((0, 0), (0, OUT_PAD - OUT_DIM))).astype(jnp.float32)
    return (w1.astype(jnp.bfloat16), b1.astype(jnp.float32),
            w2.astype(jnp.bfloat16), b2.astype(jnp.float32),
            w3.astype(jnp.bfloat16), b3.astype(jnp.float32),
            w4p, b4p)


def mlp_forward(x_nchw, prepped, *, tm=None):
    """x_nchw: (B, 1, 28, 28) float32 (NCHW, like the PyTorch module)."""
    w1, b1, w2, b2, w3, b3, w4, b4 = prepped
    B = x_nchw.shape[0]

    # nn.Flatten(): (B, 784).  Stays f32; the bf16 cast happens in-kernel.
    x = x_nchw.reshape(B, IN_DIM)

    # Batch tiling.  bf16 packs 16 rows per vreg, so keep tiles 16-aligned.
    if tm is None:
        tm = 512 if B >= 512 else 256      # larger TM amortizes per-step overhead
    tm_eff = min(tm, max(16, ((B + 15) // 16) * 16))
    # If the whole batch fits in one tile but has >= 32 rows, split it into two
    # grid steps so both TensorCores on v7x get work (batch axis is "parallel").
    if B <= tm_eff and B >= 32:
        tm_eff = max(16, ((-(-B // 2) + 15) // 16) * 16)

    bp = ((B + tm_eff - 1) // tm_eff) * tm_eff
    if bp != B:
        x = jnp.pad(x, ((0, bp - B), (0, 0)))   # zero rows; sliced off below
    grid = (bp // tm_eff,)

    # Constant index_map -> weights/biases DMA'd once, stay VMEM-resident.
    resident = lambda shape: pl.BlockSpec(shape, lambda i: (0, 0))

    flops = 2 * bp * (IN_DIM * HID + 2 * HID * HID + HID * OUT_PAD)
    weight_bytes = 2 * (IN_DIM * HID + 2 * HID * HID + HID * OUT_PAD)   # bf16
    bias_bytes = 4 * (3 * HID + OUT_PAD)
    bytes_accessed = bp * IN_DIM * 4 + weight_bytes + bias_bytes + bp * OUT_PAD * 4
    cost = pl.CostEstimate(flops=flops, transcendentals=0,
                           bytes_accessed=bytes_accessed)

    out = pl.pallas_call(
        mlp_kernel,
        out_shape=jax.ShapeDtypeStruct((bp, OUT_PAD), jnp.float32),
        grid=grid,
        in_specs=[
            pl.BlockSpec((tm_eff, IN_DIM), lambda i: (i, 0)),   # x tile (streamed)
            resident((IN_DIM, HID)),  resident((1, HID)),       # layer 1
            resident((HID, HID)),     resident((1, HID)),       # layer 2
            resident((HID, HID)),     resident((1, HID)),       # layer 3
            resident((HID, OUT_PAD)), resident((1, OUT_PAD)),   # layer 4
        ],
        out_specs=pl.BlockSpec((tm_eff, OUT_PAD), lambda i: (i, 0)),
        compiler_params=pltpu.CompilerParams(
            dimension_semantics=("parallel",),
            # TM=512 needs headroom beyond v5e's 16 MiB default scoped limit;
            # at TM<=256 the ~5-7 MiB footprint fits the defaults everywhere.
            vmem_limit_bytes=(32 << 20) if tm_eff > 256 else None),
        cost_estimate=cost,
    )(x, w1, b1, w2, b2, w3, b3, w4, b4)

    return out[:B, :OUT_DIM]


def init_params(key):
    """Deterministic init matching nn.Linear default (U[-1/sqrt(fan_in), +]).

    Weights are stored as (in_features, out_features) == W^T of nn.Linear.
    """
    dims = [(IN_DIM, HID), (HID, HID), (HID, HID), (HID, OUT_DIM)]
    params = []
    for (fan_in, fan_out) in dims:
        key, kw, kb = jax.random.split(key, 3)
        bound = 1.0 / jnp.sqrt(float(fan_in))
        w = jax.random.uniform(kw, (fan_in, fan_out), jnp.float32, -bound, bound)
        b = jax.random.uniform(kb, (1, fan_out), jnp.float32, -bound, bound)
        params += [w, b]
    return tuple(params)


def reference_forward(x_nchw, params):
    """Pure-JAX reference using the same bf16-input / f32-accumulate recipe."""
    w1, b1, w2, b2, w3, b3, w4, b4 = params
    x = x_nchw.reshape(x_nchw.shape[0], -1).astype(jnp.bfloat16)
    h = jnp.dot(x, w1.astype(jnp.bfloat16),
                preferred_element_type=jnp.float32) + b1
    h = jnp.maximum(h, 0.0).astype(jnp.bfloat16)
    h = jnp.dot(h, w2.astype(jnp.bfloat16),
                preferred_element_type=jnp.float32) + b2
    h = jnp.maximum(h, 0.0).astype(jnp.bfloat16)
    h = jnp.dot(h, w3.astype(jnp.bfloat16),
                preferred_element_type=jnp.float32) + b3
    h = jnp.maximum(h, 0.0).astype(jnp.bfloat16)
    return jnp.dot(h, w4.astype(jnp.bfloat16),
                   preferred_element_type=jnp.float32) + b4


if __name__ == "__main__":
    key = jax.random.PRNGKey(0)
    key, kx = jax.random.split(key)

    B = 16  # small batch; multiple of the bf16 sublane pack (16 rows/vreg)
    x = jax.random.normal(kx, (B, 1, 28, 28), jnp.float32)  # NCHW like PyTorch

    params = init_params(key)
    prepped = prepare_params(params)   # one-time bf16 cast + lane padding

    logits = mlp_forward(x, prepped)
    logits = jax.block_until_ready(logits)

    ref = reference_forward(x, params)
    assert logits.shape == (B, OUT_DIM)
    assert jnp.allclose(logits, ref, atol=1e-2, rtol=1e-2), (
        float(jnp.max(jnp.abs(logits - ref))))

    print("KERNEL_OK")
</pallas_src>

<mosaic_0001>
module attributes {stable_mosaic.version = 11 : i64} {
  func.func @mlp_kernel(%arg0: i32, %arg1: memref<16x784xf32, #tpu.memory_space<vmem>>, %arg2: memref<784x512xbf16, #tpu.memory_space<vmem>>, %arg3: memref<1x512xf32, #tpu.memory_space<vmem>>, %arg4: memref<512x512xbf16, #tpu.memory_space<vmem>>, %arg5: memref<1x512xf32, #tpu.memory_space<vmem>>, %arg6: memref<512x512xbf16, #tpu.memory_space<vmem>>, %arg7: memref<1x512xf32, #tpu.memory_space<vmem>>, %arg8: memref<512x128xbf16, #tpu.memory_space<vmem>>, %arg9: memref<1x128xf32, #tpu.memory_space<vmem>>, %arg10: memref<16x128xf32, #tpu.memory_space<vmem>>) attributes {dimension_semantics = [#tpu.dimension_semantics<parallel>], iteration_bounds = array<i64: 1>, scalar_prefetch = 0 : i64, scratch_operands = 0 : i64, tpu.core_type = #tpu.core_type<tc>, window_params = [{transform_indices = @transform_0, window_bounds = array<i64: 16, 784>}, {pipeline_mode = #tpu.pipeline_mode<synchronous>, transform_indices = @transform_1, window_bounds = array<i64: 784, 512>}, {pipeline_mode = #tpu.pipeline_mode<synchronous>, transform_indices = @transform_2, window_bounds = array<i64: 1, 512>}, {pipeline_mode = #tpu.pipeline_mode<synchronous>, transform_indices = @transform_3, window_bounds = array<i64: 512, 512>}, {pipeline_mode = #tpu.pipeline_mode<synchronous>, transform_indices = @transform_4, window_bounds = array<i64: 1, 512>}, {pipeline_mode = #tpu.pipeline_mode<synchronous>, transform_indices = @transform_5, window_bounds = array<i64: 512, 512>}, {pipeline_mode = #tpu.pipeline_mode<synchronous>, transform_indices = @transform_6, window_bounds = array<i64: 1, 512>}, {pipeline_mode = #tpu.pipeline_mode<synchronous>, transform_indices = @transform_7, window_bounds = array<i64: 512, 128>}, {pipeline_mode = #tpu.pipeline_mode<synchronous>, transform_indices = @transform_8, window_bounds = array<i64: 1, 128>}, {transform_indices = @transform_9, window_bounds = array<i64: 16, 128>}]} {
    %c0 = arith.constant 0 : index
    %c0_0 = arith.constant 0 : index
    %0 = vector.load %arg1[%c0, %c0_0] : memref<16x784xf32, #tpu.memory_space<vmem>>, vector<16x784xf32>
    %1 = arith.truncf %0 : vector<16x784xf32> to vector<16x784xbf16>
    %c0_1 = arith.constant 0 : index
    %c0_2 = arith.constant 0 : index
    %2 = vector.load %arg2[%c0_1, %c0_2] : memref<784x512xbf16, #tpu.memory_space<vmem>>, vector<784x512xbf16>
    %cst = arith.constant dense<0.000000e+00> : vector<16x512xf32>
    %3 = tpu.matmul %1, %2, %cst {dimension_numbers = #tpu.dot_dimension_numbers<[1], [0], [0], [1], [0, 0, 1, 1], [], []>} : vector<16x784xbf16>, vector<784x512xbf16>, vector<16x512xf32> -> vector<16x512xf32>
    %c0_3 = arith.constant 0 : index
    %c0_4 = arith.constant 0 : index
    %4 = vector.load %arg3[%c0_3, %c0_4] : memref<1x512xf32, #tpu.memory_space<vmem>>, vector<1x512xf32>
    %5 = vector.broadcast %4 : vector<1x512xf32> to vector<16x512xf32>
    %6 = arith.addf %3, %5 : vector<16x512xf32>
    %cst_5 = arith.constant 0.000000e+00 : f32
    %7 = vector.broadcast %cst_5 : f32 to vector<16x512xf32>
    %8 = arith.maximumf %6, %7 : vector<16x512xf32>
    %9 = arith.truncf %8 : vector<16x512xf32> to vector<16x512xbf16>
    %c0_6 = arith.constant 0 : index
    %c0_7 = arith.constant 0 : index
    %10 = vector.load %arg4[%c0_6, %c0_7] : memref<512x512xbf16, #tpu.memory_space<vmem>>, vector<512x512xbf16>
    %cst_8 = arith.constant dense<0.000000e+00> : vector<16x512xf32>
    %11 = tpu.matmul %9, %10, %cst_8 {dimension_numbers = #tpu.dot_dimension_numbers<[1], [0], [0], [1], [0, 0, 1, 1], [], []>} : vector<16x512xbf16>, vector<512x512xbf16>, vector<16x512xf32> -> vector<16x512xf32>
    %c0_9 = arith.constant 0 : index
    %c0_10 = arith.constant 0 : index
    %12 = vector.load %arg5[%c0_9, %c0_10] : memref<1x512xf32, #tpu.memory_space<vmem>>, vector<1x512xf32>
    %13 = vector.broadcast %12 : vector<1x512xf32> to vector<16x512xf32>
    %14 = arith.addf %11, %13 : vector<16x512xf32>
    %cst_11 = arith.constant 0.000000e+00 : f32
    %15 = vector.broadcast %cst_11 : f32 to vector<16x512xf32>
    %16 = arith.maximumf %14, %15 : vector<16x512xf32>
    %17 = arith.truncf %16 : vector<16x512xf32> to vector<16x512xbf16>
    %c0_12 = arith.constant 0 : index
    %c0_13 = arith.constant 0 : index
    %18 = vector.load %arg6[%c0_12, %c0_13] : memref<512x512xbf16, #tpu.memory_space<vmem>>, vector<512x512xbf16>
    %cst_14 = arith.constant dense<0.000000e+00> : vector<16x512xf32>
    %19 = tpu.matmul %17, %18, %cst_14 {dimension_numbers = #tpu.dot_dimension_numbers<[1], [0], [0], [1], [0, 0, 1, 1], [], []>} : vector<16x512xbf16>, vector<512x512xbf16>, vector<16x512xf32> -> vector<16x512xf32>
    %c0_15 = arith.constant 0 : index
    %c0_16 = arith.constant 0 : index
    %20 = vector.load %arg7[%c0_15, %c0_16] : memref<1x512xf32, #tpu.memory_space<vmem>>, vector<1x512xf32>
    %21 = vector.broadcast %20 : vector<1x512xf32> to vector<16x512xf32>
    %22 = arith.addf %19, %21 : vector<16x512xf32>
    %cst_17 = arith.constant 0.000000e+00 : f32
    %23 = vector.broadcast %cst_17 : f32 to vector<16x512xf32>
    %24 = arith.maximumf %22, %23 : vector<16x512xf32>
    %25 = arith.truncf %24 : vector<16x512xf32> to vector<16x512xbf16>
    %c0_18 = arith.constant 0 : index
    %c0_19 = arith.constant 0 : index
    %26 = vector.load %arg8[%c0_18, %c0_19] : memref<512x128xbf16, #tpu.memory_space<vmem>>, vector<512x128xbf16>
    %cst_20 = arith.constant dense<0.000000e+00> : vector<16x128xf32>
    %27 = tpu.matmul %25, %26, %cst_20 {dimension_numbers = #tpu.dot_dimension_numbers<[1], [0], [0], [1], [0, 0, 1, 1], [], []>} : vector<16x512xbf16>, vector<512x128xbf16>, vector<16x128xf32> -> vector<16x128xf32>
    %c0_21 = arith.constant 0 : index
    %c0_22 = arith.constant 0 : index
    %28 = vector.load %arg9[%c0_21, %c0_22] : memref<1x128xf32, #tpu.memory_space<vmem>>, vector<1x128xf32>
    %29 = vector.broadcast %28 : vector<1x128xf32> to vector<16x128xf32>
    %30 = arith.addf %27, %29 : vector<16x128xf32>
    %c0_23 = arith.constant 0 : index
    %c0_24 = arith.constant 0 : index
    %31 = vector.load %arg10[%c0_23, %c0_24] : memref<16x128xf32, #tpu.memory_space<vmem>>, vector<16x128xf32>
    tpu.vector_store %arg10[%c0_23, %c0_24], %30 {strides = array<i32>} : memref<16x128xf32, #tpu.memory_space<vmem>>, vector<16x128xf32>,
    return
  }
  func.func @transform_0(%arg0: i32) -> (i32, i32) {
    %c0_i32 = arith.constant 0 : i32
    %c0_i32_0 = arith.constant 0 : i32
    return %arg0, %c0_i32 : i32, i32
  }
  func.func @transform_1(%arg0: i32) -> (i32, i32) {
    %c0_i32 = arith.constant 0 : i32
    %c0_i32_0 = arith.constant 0 : i32
    %c0_i32_1 = arith.constant 0 : i32
    return %c0_i32, %c0_i32_0 : i32, i32
  }
  func.func @transform_2(%arg0: i32) -> (i32, i32) {
    %c0_i32 = arith.constant 0 : i32
    %c0_i32_0 = arith.constant 0 : i32
    %c0_i32_1 = arith.constant 0 : i32
    return %c0_i32, %c0_i32_0 : i32, i32
  }
  func.func @transform_3(%arg0: i32) -> (i32, i32) {
    %c0_i32 = arith.constant 0 : i32
    %c0_i32_0 = arith.constant 0 : i32
    %c0_i32_1 = arith.constant 0 : i32
    return %c0_i32, %c0_i32_0 : i32, i32
  }
  func.func @transform_4(%arg0: i32) -> (i32, i32) {
    %c0_i32 = arith.constant 0 : i32
    %c0_i32_0 = arith.constant 0 : i32
    %c0_i32_1 = arith.constant 0 : i32
    return %c0_i32, %c0_i32_0 : i32, i32
  }
  func.func @transform_5(%arg0: i32) -> (i32, i32) {
    %c0_i32 = arith.constant 0 : i32
    %c0_i32_0 = arith.constant 0 : i32
    %c0_i32_1 = arith.constant 0 : i32
    return %c0_i32, %c0_i32_0 : i32, i32
  }
  func.func @transform_6(%arg0: i32) -> (i32, i32) {
    %c0_i32 = arith.constant 0 : i32
    %c0_i32_0 = arith.constant 0 : i32
    %c0_i32_1 = arith.constant 0 : i32
    return %c0_i32, %c0_i32_0 : i32, i32
  }
  func.func @transform_7(%arg0: i32) -> (i32, i32) {
    %c0_i32 = arith.constant 0 : i32
    %c0_i32_0 = arith.constant 0 : i32
    %c0_i32_1 = arith.constant 0 : i32
    return %c0_i32, %c0_i32_0 : i32, i32
  }
  func.func @transform_8(%arg0: i32) -> (i32, i32) {
    %c0_i32 = arith.constant 0 : i32
    %c0_i32_0 = arith.constant 0 : i32
    %c0_i32_1 = arith.constant 0 : i32
    return %c0_i32, %c0_i32_0 : i32, i32
  }
  func.func @transform_9(%arg0: i32) -> (i32, i32) {
    %c0_i32 = arith.constant 0 : i32
    %c0_i32_0 = arith.constant 0 : i32
    return %arg0, %c0_i32 : i32, i32
  }
}

</mosaic_0001>

<llo_original>
// kernel: tpu_custom_call.1
$region0: #{tpu_custom_call.1}
  #allocation0 [shape = 'u32[]', space=smem, size = 0x4, offset = 0x4, fixed_abs, tag = 'smem constant byte address 0x4 - core index']
  #allocation1 [shape = 'u32[72,128]{1,0:T(1,128)}', space=vmem, size = 0x9000, scoped, tag = 'internal scratch']
  %s0 = inlined_call_operand.hbm [shape: f32[16,784], index: 0, kind: input, shape index: {}]
  %s1 = inlined_call_operand.hbm [shape: bf16[784,512], index: 1, kind: input, shape index: {}]
  %s2 = inlined_call_operand.hbm [shape: f32[1,512], index: 2, kind: input, shape index: {}]
  %s3 = inlined_call_operand.hbm [shape: bf16[512,512], index: 3, kind: input, shape index: {}]
  %s4 = inlined_call_operand.hbm [shape: f32[1,512], index: 4, kind: input, shape index: {}]
  %s5 = inlined_call_operand.hbm [shape: bf16[512,512], index: 5, kind: input, shape index: {}]
  %s6 = inlined_call_operand.vmem [shape: f32[1,512], index: 6, kind: input, shape index: {}]
  %s7 = inlined_call_operand.hbm [shape: bf16[512,128], index: 7, kind: input, shape index: {}]
  %s8 = inlined_call_operand.vmem [shape: f32[1,128], index: 8, kind: input, shape index: {}]
  %s9 = inlined_call_operand.hbm [shape: f32[16,128], index: 9, kind: output, shape index: {}]
  %s10 = sld [smem:[#allocation0]]
  $region74: #{tpu_custom_call.1} parent=0
    _
  %s12 = ssub.s32 1, %s10
  %s13 = scalar_select 0, %s12, %s10
  $region1: #{tpu_custom_call.1} parent=0
    #allocation2 [shape = 'u8[57344]{0}', space=vmem, size = 0xe000, scoped, tag = 'input window, operand 0, single buffered']
    #allocation3 [shape = 's32[1]{0}', space=sflag, size = 0x4, scoped, tag = 'scoped memory for tpu_custom_call.1']
    #allocation4 [shape = 's32[1]{0}', space=sflag, size = 0x4, scoped, tag = 'scoped memory for tpu_custom_call.1']
    #allocation5 [shape = 'u8[802816]{0}', space=vmem, size = 0xc4000, scoped, tag = 'input window, operand 1, single buffered']
    #allocation6 [shape = 's32[1]{0}', space=sflag, size = 0x4, scoped, tag = 'scoped memory for tpu_custom_call.1']
    #allocation7 [shape = 'u8[2048]{0}', space=vmem, size = 0x800, scoped, tag = 'input window, operand 2, single buffered']
    #allocation8 [shape = 'u8[524288]{0}', space=vmem, size = 0x80000, scoped, tag = 'input window, operand 3, single buffered']
    #allocation9 [shape = 's32[1]{0}', space=sflag, size = 0x4, scoped, tag = 'scoped memory for tpu_custom_call.1']
    #allocation10 [shape = 'u8[2048]{0}', space=vmem, size = 0x800, scoped, tag = 'input window, operand 4, single buffered']
    #allocation11 [shape = 'u8[524288]{0}', space=vmem, size = 0x80000, scoped, tag = 'input window, operand 5, single buffered']
    #allocation12 [shape = 's32[1]{0}', space=sflag, size = 0x4, scoped, tag = 'scoped memory for tpu_custom_call.1']
    #allocation13 [shape = 'u8[131072]{0}', space=vmem, size = 0x20000, scoped, tag = 'input window, operand 7, single buffered']
    #allocation14 [shape = 'u8[8192]{0}', space=vmem, size = 0x2000, scoped, tag = 'output window, operand 0, single buffered']
    %14 = vsyncpa [#allocation3], 0
    %15 = vsyncpa [#allocation6], 0
    %16 = vsyncpa [#allocation9], 0
    %17 = vsyncpa [#allocation12], 0
    %18 = vsyncpa [#allocation4], 0
    // Predicated region
    $region2: #{tpu_custom_call.1} parent=1 // pred_check
      _
    $region3: #{tpu_custom_call.1} parent=1 // pred_check_branch
      %20 = sbr.rel (0) target = $region5
    $region4: #{tpu_custom_call.1} parent=1 // pred_region
      %22 = vsyncadd [#allocation3], 0
      %s23 = sshll.u32 %s0, 4
      %s24 = int_to_ptr.hbm [resolvable:$true] %s23
      %s25 = sshll.u32 [#allocation2], 4
      %s26 = int_to_ptr.vmem [resolvable:$true] %s25
      %31 = dma.hbm_to_vmem [thread:$0]  %s24, 1792, %s26, [#allocation3], 896, 896, 56
    $region5: #{tpu_custom_call.1} parent=1 // pred_fallthru
      _
    // Predicated region
    $region6: #{tpu_custom_call.1} parent=1 // pred_check
      _
    $region7: #{tpu_custom_call.1} parent=1 // pred_check_branch
      %33 = sbr.rel (0) target = $region9
    $region8: #{tpu_custom_call.1} parent=1 // pred_region
      %35 = vsyncadd [#allocation6], 0
      %s36 = sshll.u32 %s1, 4
      %s37 = int_to_ptr.hbm [resolvable:$true] %s36
      %s38 = sshll.u32 [#allocation5], 4
      %s39 = int_to_ptr.vmem [resolvable:$true] %s38
      %44 = dma.hbm_to_vmem [thread:$0]  %s37, 25088, %s39, [#allocation6], 256, 256, 16
    $region9: #{tpu_custom_call.1} parent=1 // pred_fallthru
      _
    // Predicated region
    $region10: #{tpu_custom_call.1} parent=1 // pred_check
      _
    $region11: #{tpu_custom_call.1} parent=1 // pred_check_branch
      %46 = sbr.rel (0) target = $region13
    $region12: #{tpu_custom_call.1} parent=1 // pred_region
      %48 = vsyncadd [#allocation6], 0
      %s50 = sshll.u32 %s2, 4
      %s51 = int_to_ptr.hbm [resolvable:$true] %s50
      %s52 = sshll.u32 [#allocation7], 4
      %s53 = int_to_ptr.vmem [resolvable:$true] %s52
      %55 = dma.hbm_to_vmem [thread:$0]  %s51, 64, %s53, [#allocation6]
    $region13: #{tpu_custom_call.1} parent=1 // pred_fallthru
      _
    // Predicated region
    $region14: #{tpu_custom_call.1} parent=1 // pred_check
      _
    $region15: #{tpu_custom_call.1} parent=1 // pred_check_branch
      %57 = sbr.rel (0) target = $region17
    $region16: #{tpu_custom_call.1} parent=1 // pred_region
      %59 = vsyncadd [#allocation9], 0
      %s60 = sshll.u32 %s3, 4
      %s61 = int_to_ptr.hbm [resolvable:$true] %s60
      %s62 = sshll.u32 [#allocation8], 4
      %s63 = int_to_ptr.vmem [resolvable:$true] %s62
      %68 = dma.hbm_to_vmem [thread:$0]  %s61, 16384, %s63, [#allocation9], 256, 256, 16
    $region17: #{tpu_custom_call.1} parent=1 // pred_fallthru
      _
    // Predicated region
    $region18: #{tpu_custom_call.1} parent=1 // pred_check
      _
    $region19: #{tpu_custom_call.1} parent=1 // pred_check_branch
      %70 = sbr.rel (0) target = $region21
    $region20: #{tpu_custom_call.1} parent=1 // pred_region
      %72 = vsyncadd [#allocation9], 0
      %s74 = sshll.u32 %s4, 4
      %s75 = int_to_ptr.hbm [resolvable:$true] %s74
      %s76 = sshll.u32 [#allocation10], 4
      %s77 = int_to_ptr.vmem [resolvable:$true] %s76
      %79 = dma.hbm_to_vmem [thread:$0]  %s75, 64, %s77, [#allocation9]
    $region21: #{tpu_custom_call.1} parent=1 // pred_fallthru
      _
    // Predicated region
    $region22: #{tpu_custom_call.1} parent=1 // pred_check
      _
    $region23: #{tpu_custom_call.1} parent=1 // pred_check_branch
      %81 = sbr.rel (0) target = $region25
    $region24: #{tpu_custom_call.1} parent=1 // pred_region
      %83 = vsyncadd [#allocation12], 0
      %s84 = sshll.u32 %s5, 4
      %s85 = int_to_ptr.hbm [resolvable:$true] %s84
      %s86 = sshll.u32 [#allocation11], 4
      %s87 = int_to_ptr.vmem [resolvable:$true] %s86
      %92 = dma.hbm_to_vmem [thread:$0]  %s85, 16384, %s87, [#allocation12], 256, 256, 16
    $region25: #{tpu_custom_call.1} parent=1 // pred_fallthru
      _
    // Predicated region
    $region26: #{tpu_custom_call.1} parent=1 // pred_check
      _
    $region27: #{tpu_custom_call.1} parent=1 // pred_check_branch
      %94 = sbr.rel (0) target = $region29
    $region28: #{tpu_custom_call.1} parent=1 // pred_region
      _
    $region29: #{tpu_custom_call.1} parent=1 // pred_fallthru
      _
    // Predicated region
    $region30: #{tpu_custom_call.1} parent=1 // pred_check
      _
    $region31: #{tpu_custom_call.1} parent=1 // pred_check_branch
      %96 = sbr.rel (0) target = $region33
    $region32: #{tpu_custom_call.1} parent=1 // pred_region
      %98 = vsyncadd [#allocation12], 0
      %s99 = sshll.u32 %s7, 4
      %s100 = int_to_ptr.hbm [resolvable:$true] %s99
      %s101 = sshll.u32 [#allocation13], 4
      %s102 = int_to_ptr.vmem [resolvable:$true] %s101
      %107 = dma.hbm_to_vmem [thread:$0]  %s100, 4096, %s102, [#allocation12], 64, 64, 4
    $region33: #{tpu_custom_call.1} parent=1 // pred_fallthru
      _
    // Predicated region
    $region34: #{tpu_custom_call.1} parent=1 // pred_check
      _
    $region35: #{tpu_custom_call.1} parent=1 // pred_check_branch
      %109 = sbr.rel (0) target = $region37
    $region36: #{tpu_custom_call.1} parent=1 // pred_region
      _
    $region37: #{tpu_custom_call.1} parent=1 // pred_fallthru
      _
    // Predicated region
    $region38: #{tpu_custom_call.1} parent=1 // pred_check
      _
    $region39: #{tpu_custom_call.1} parent=1 // pred_check_branch
      %111 = sbr.rel (0) target = $region41
    $region40: #{tpu_custom_call.1} parent=1 // pred_region
      %113 = dma.done [#allocation3], 1792
    $region41: #{tpu_custom_call.1} parent=1 // pred_fallthru
      _
    // Predicated region
    $region42: #{tpu_custom_call.1} parent=1 // pred_check
      _
    $region43: #{tpu_custom_call.1} parent=1 // pred_check_branch
      %115 = sbr.rel (0) target = $region45
    $region44: #{tpu_custom_call.1} parent=1 // pred_region
      %117 = dma.done [#allocation6], 25088
    $region45: #{tpu_custom_call.1} parent=1 // pred_fallthru
      _
    // Predicated region
    $region46: #{tpu_custom_call.1} parent=1 // pred_check
      _
    $region47: #{tpu_custom_call.1} parent=1 // pred_check_branch
      %119 = sbr.rel (0) target = $region49
    $region48: #{tpu_custom_call.1} parent=1 // pred_region
      %121 = dma.done [#allocation6], 64
    $region49: #{tpu_custom_call.1} parent=1 // pred_fallthru
      _
    // Predicated region
    $region50: #{tpu_custom_call.1} parent=1 // pred_check
      _
    $region51: #{tpu_custom_call.1} parent=1 // pred_check_branch
      %123 = sbr.rel (0) target = $region53
    $region52: #{tpu_custom_call.1} parent=1 // pred_region
      %125 = dma.done [#allocation9], 16384
    $region53: #{tpu_custom_call.1} parent=1 // pred_fallthru
      _
    // Predicated region
    $region54: #{tpu_custom_call.1} parent=1 // pred_check
      _
    $region55: #{tpu_custom_call.1} parent=1 // pred_check_branch
      %127 = sbr.rel (0) target = $region57
    $region56: #{tpu_custom_call.1} parent=1 // pred_region
      %129 = dma.done [#allocation9], 64
    $region57: #{tpu_custom_call.1} parent=1 // pred_fallthru
      _
    // Predicated region
    $region58: #{tpu_custom_call.1} parent=1 // pred_check
      _
    $region59: #{tpu_custom_call.1} parent=1 // pred_check_branch
      %131 = sbr.rel (0) target = $region61
    $region60: #{tpu_custom_call.1} parent=1 // pred_region
      %133 = dma.done [#allocation12], 16384
    $region61: #{tpu_custom_call.1} parent=1 // pred_fallthru
      _
    // Predicated region
    $region62: #{tpu_custom_call.1} parent=1 // pred_check
      _
    $region63: #{tpu_custom_call.1} parent=1 // pred_check_branch
      %135 = sbr.rel (0) target = $region65
    $region64: #{tpu_custom_call.1} parent=1 // pred_region
      %137 = dma.done [#allocation12], 4096
    $region65: #{tpu_custom_call.1} parent=1 // pred_fallthru
      _
    %v139 = vld [vmem:[#allocation2] sm:$0xff]
    %v140 = vld [vmem:[#allocation2 + $0x8] sm:$0xff]
    %v141 = vld [vmem:[#allocation2 + $0x10] sm:$0xff]
    %v142 = vld [vmem:[#allocation2 + $0x18] sm:$0xff]
    %v143 = vld [vmem:[#allocation2 + $0x20] sm:$0xff]
    %v144 = vld [vmem:[#allocation2 + $0x28] sm:$0xff]
    %v145 = vld [vmem:[#allocation2 + $0x30] sm:$0xff]
    %v146 = vld [vmem:[#allocation2 + $0x38] sm:$0xff]
    %v147 = vld [vmem:[#allocation2 + $0x40] sm:$0xff]
    %v148 = vld [vmem:[#allocation2 + $0x48] sm:$0xff]
    %v149 = vld [vmem:[#allocation2 + $0x50] sm:$0xff]
    %v150 = vld [vmem:[#allocation2 + $0x58] sm:$0xff]
    %v151 = vld [vmem:[#allocation2 + $0x60] sm:$0xff]
    %v152 = vld [vmem:[#allocation2 + $0x68] sm:$0xff]
    %v153 = vpack.c.bf16 %v146, %v139
    %v154 = vpack.c.bf16 %v147, %v140
    %v155 = vpack.c.bf16 %v148, %v141
    %v156 = vpack.c.bf16 %v149, %v142
    %v157 = vpack.c.bf16 %v150, %v143
    %v158 = vpack.c.bf16 %v151, %v144
    %v159 = vpack.c.bf16 %v152, %v145
    %v160 = vld [vmem:[#allocation5] sm:$0xff]
    %v161 = vld [vmem:[#allocation5 + $0x8] sm:$0xff]
    %v162 = vld [vmem:[#allocation5 + $0x10] sm:$0xff]
    %v163 = vld [vmem:[#allocation5 + $0x18] sm:$0xff]
    %v164 = vld [vmem:[#allocation5 + $0x20] sm:$0xff]
    %v165 = vld [vmem:[#allocation5 + $0x28] sm:$0xff]
    %v166 = vld [vmem:[#allocation5 + $0x30] sm:$0xff]
    %v167 = vld [vmem:[#allocation5 + $0x38] sm:$0xff]
    %v168 = vld [vmem:[#allocation5 + $0x40] sm:$0xff]
    %v169 = vld [vmem:[#allocation5 + $0x48] sm:$0xff]
    %v170 = vld [vmem:[#allocation5 + $0x50] sm:$0xff]
    %v171 = vld [vmem:[#allocation5 + $0x58] sm:$0xff]
    %v172 = vld [vmem:[#allocation5 + $0x60] sm:$0xff]
    %v173 = vld [vmem:[#allocation5 + $0x68] sm:$0xff]
    %v174 = vld [vmem:[#allocation5 + $0x70] sm:$0xff]
    %v175 = vld [vmem:[#allocation5 + $0x78] sm:$0xff]
    %v176 = vld [vmem:[#allocation5 + $0x80] sm:$0xff]
    %v177 = vld [vmem:[#allocation5 + $0x88] sm:$0xff]
    %v178 = vld [vmem:[#allocation5 + $0x90] sm:$0xff]
    %v179 = vld [vmem:[#allocation5 + $0x98] sm:$0xff]
    %v180 = vld [vmem:[#allocation5 + $0xa0] sm:$0xff]
    %v181 = vld [vmem:[#allocation5 + $0xa8] sm:$0xff]
    %v182 = vld [vmem:[#allocation5 + $0xb0] sm:$0xff]
    %v183 = vld [vmem:[#allocation5 + $0xb8] sm:$0xff]
    %v184 = vld [vmem:[#allocation5 + $0xc0] sm:$0xff]
    %v185 = vld [vmem:[#allocation5 + $0xc8] sm:$0xff]
    %v186 = vld [vmem:[#allocation5 + $0xd0] sm:$0xff]
    %v187 = vld [vmem:[#allocation5 + $0xd8] sm:$0xff]
    %v188 = vld [vmem:[#allocation5 + $0xe0] sm:$0xff]
    %v189 = vld [vmem:[#allocation5 + $0xe8] sm:$0xff]
    %v190 = vld [vmem:[#allocation5 + $0xf0] sm:$0xff]
    %v191 = vld [vmem:[#allocation5 + $0xf8] sm:$0xff]
    %v192 = vld [vmem:[#allocation5 + $0x100] sm:$0xff]
    %v193 = vld [vmem:[#allocation5 + $0x108] sm:$0xff]
    %v194 = vld [vmem:[#allocation5 + $0x110] sm:$0xff]
    %v195 = vld [vmem:[#allocation5 + $0x118] sm:$0xff]
    %v196 = vld [vmem:[#allocation5 + $0x120] sm:$0xff]
    %v197 = vld [vmem:[#allocation5 + $0x128] sm:$0xff]
    %v198 = vld [vmem:[#allocation5 + $0x130] sm:$0xff]
    %v199 = vld [vmem:[#allocation5 + $0x138] sm:$0xff]
    %v200 = vld [vmem:[#allocation5 + $0x140] sm:$0xff]
    %v201 = vld [vmem:[#allocation5 + $0x148] sm:$0xff]
    %v202 = vld [vmem:[#allocation5 + $0x150] sm:$0xff]
    %v203 = vld [vmem:[#allocation5 + $0x158] sm:$0xff]
    %v204 = vld [vmem:[#allocation5 + $0x160] sm:$0xff]
    %v205 = vld [vmem:[#allocation5 + $0x168] sm:$0xff]
    %v206 = vld [vmem:[#allocation5 + $0x170] sm:$0xff]
    %v207 = vld [vmem:[#allocation5 + $0x178] sm:$0xff]
    %v208 = vld [vmem:[#allocation5 + $0x180] sm:$0xff]
    %v209 = vld [vmem:[#allocation5 + $0x188] sm:$0xff]
    %v210 = vld [vmem:[#allocation5 + $0x190] sm:$0xff]
    %v211 = vld [vmem:[#allocation5 + $0x198] sm:$0xff]
    %v212 = vld [vmem:[#allocation5 + $0x1a0] sm:$0xff]
    %v213 = vld [vmem:[#allocation5 + $0x1a8] sm:$0xff]
    %v214 = vld [vmem:[#allocation5 + $0x1b0] sm:$0xff]
    %v215 = vld [vmem:[#allocation5 + $0x1b8] sm:$0xff]
    %v216 = vld [vmem:[#allocation5 + $0x1c0] sm:$0xff]
    %v217 = vld [vmem:[#allocation5 + $0x1c8] sm:$0xff]
    %v218 = vld [vmem:[#allocation5 + $0x1d0] sm:$0xff]
    %v219 = vld [vmem:[#allocation5 + $0x1d8] sm:$0xff]
    %v220 = vld [vmem:[#allocation5 + $0x1e0] sm:$0xff]
    %v221 = vld [vmem:[#allocation5 + $0x1e8] sm:$0xff]
    %v222 = vld [vmem:[#allocation5 + $0x1f0] sm:$0xff]
    %v223 = vld [vmem:[#allocation5 + $0x1f8] sm:$0xff]
    %v224 = vld [vmem:[#allocation5 + $0x200] sm:$0xff]
    %v225 = vld [vmem:[#allocation5 + $0x208] sm:$0xff]
    %v226 = vld [vmem:[#allocation5 + $0x210] sm:$0xff]
    %v227 = vld [vmem:[#allocation5 + $0x218] sm:$0xff]
    %v228 = vld [vmem:[#allocation5 + $0x220] sm:$0xff]
    %v229 = vld [vmem:[#allocation5 + $0x228] sm:$0xff]
    %v230 = vld [vmem:[#allocation5 + $0x230] sm:$0xff]
    %v231 = vld [vmem:[#allocation5 + $0x238] sm:$0xff]
    %v232 = vld [vmem:[#allocation5 + $0x240] sm:$0xff]
    %v233 = vld [vmem:[#allocation5 + $0x248] sm:$0xff]
    %v234 = vld [vmem:[#allocation5 + $0x250] sm:$0xff]
    %v235 = vld [vmem:[#allocation5 + $0x258] sm:$0xff]
    %v236 = vld [vmem:[#allocation5 + $0x260] sm:$0xff]
    %v237 = vld [vmem:[#allocation5 + $0x268] sm:$0xff]
    %v238 = vld [vmem:[#allocation5 + $0x270] sm:$0xff]
    %v239 = vld [vmem:[#allocation5 + $0x278] sm:$0xff]
    %v240 = vld [vmem:[#allocation5 + $0x280] sm:$0xff]
    %v241 = vld [vmem:[#allocation5 + $0x288] sm:$0xff]
    %v242 = vld [vmem:[#allocation5 + $0x290] sm:$0xff]
    %v243 = vld [vmem:[#allocation5 + $0x298] sm:$0xff]
    %v244 = vld [vmem:[#allocation5 + $0x2a0] sm:$0xff]
    %v245 = vld [vmem:[#allocation5 + $0x2a8] sm:$0xff]
    %v246 = vld [vmem:[#allocation5 + $0x2b0] sm:$0xff]
    %v247 = vld [vmem:[#allocation5 + $0x2b8] sm:$0xff]
    %v248 = vld [vmem:[#allocation5 + $0x2c0] sm:$0xff]
    %v249 = vld [vmem:[#allocation5 + $0x2c8] sm:$0xff]
    %v250 = vld [vmem:[#allocation5 + $0x2d0] sm:$0xff]
    %v251 = vld [vmem:[#allocation5 + $0x2d8] sm:$0xff]
    %v252 = vld [vmem:[#allocation5 + $0x2e0] sm:$0xff]
    %v253 = vld [vmem:[#allocation5 + $0x2e8] sm:$0xff]
    %v254 = vld [vmem:[#allocation5 + $0x2f0] sm:$0xff]
    %v255 = vld [vmem:[#allocation5 + $0x2f8] sm:$0xff]
    %v256 = vld [vmem:[#allocation5 + $0x300] sm:$0xff]
    %v257 = vld [vmem:[#allocation5 + $0x308] sm:$0xff]
    %v258 = vld [vmem:[#allocation5 + $0x310] sm:$0xff]
    %v259 = vld [vmem:[#allocation5 + $0x318] sm:$0xff]
    %v260 = vld [vmem:[#allocation5 + $0x320] sm:$0xff]
    %v261 = vld [vmem:[#allocation5 + $0x328] sm:$0xff]
    %v262 = vld [vmem:[#allocation5 + $0x330] sm:$0xff]
    %v263 = vld [vmem:[#allocation5 + $0x338] sm:$0xff]
    %v264 = vld [vmem:[#allocation5 + $0x340] sm:$0xff]
    %v265 = vld [vmem:[#allocation5 + $0x348] sm:$0xff]
    %v266 = vld [vmem:[#allocation5 + $0x350] sm:$0xff]
    %v267 = vld [vmem:[#allocation5 + $0x358] sm:$0xff]
    %v268 = vld [vmem:[#allocation5 + $0x360] sm:$0xff]
    %v269 = vld [vmem:[#allocation5 + $0x368] sm:$0xff]
    %v270 = vld [vmem:[#allocation5 + $0x370] sm:$0xff]
    %v271 = vld [vmem:[#allocation5 + $0x378] sm:$0xff]
    %v272 = vld [vmem:[#allocation5 + $0x380] sm:$0xff]
    %v273 = vld [vmem:[#allocation5 + $0x388] sm:$0xff]
    %v274 = vld [vmem:[#allocation5 + $0x390] sm:$0xff]
    %v275 = vld [vmem:[#allocation5 + $0x398] sm:$0xff]
    %v276 = vld [vmem:[#allocation5 + $0x3a0] sm:$0xff]
    %v277 = vld [vmem:[#allocation5 + $0x3a8] sm:$0xff]
    %v278 = vld [vmem:[#allocation5 + $0x3b0] sm:$0xff]
    %v279 = vld [vmem:[#allocation5 + $0x3b8] sm:$0xff]
    %v280 = vld [vmem:[#allocation5 + $0x3c0] sm:$0xff]
    %v281 = vld [vmem:[#allocation5 + $0x3c8] sm:$0xff]
    %v282 = vld [vmem:[#allocation5 + $0x3d0] sm:$0xff]
    %v283 = vld [vmem:[#allocation5 + $0x3d8] sm:$0xff]
    %v284 = vld [vmem:[#allocation5 + $0x3e0] sm:$0xff]
    %v285 = vld [vmem:[#allocation5 + $0x3e8] sm:$0xff]
    %v286 = vld [vmem:[#allocation5 + $0x3f0] sm:$0xff]
    %v287 = vld [vmem:[#allocation5 + $0x3f8] sm:$0xff]
    %v288 = vld [vmem:[#allocation5 + $0x400] sm:$0xff]
    %v289 = vld [vmem:[#allocation5 + $0x408] sm:$0xff]
    %v290 = vld [vmem:[#allocation5 + $0x410] sm:$0xff]
    %v291 = vld [vmem:[#allocation5 + $0x418] sm:$0xff]
    %v292 = vld [vmem:[#allocation5 + $0x420] sm:$0xff]
    %v293 = vld [vmem:[#allocation5 + $0x428] sm:$0xff]
    %v294 = vld [vmem:[#allocation5 + $0x430] sm:$0xff]
    %v295 = vld [vmem:[#allocation5 + $0x438] sm:$0xff]
    %v296 = vld [vmem:[#allocation5 + $0x440] sm:$0xff]
    %v297 = vld [vmem:[#allocation5 + $0x448] sm:$0xff]
    %v298 = vld [vmem:[#allocation5 + $0x450] sm:$0xff]
    %v299 = vld [vmem:[#allocation5 + $0x458] sm:$0xff]
    %v300 = vld [vmem:[#allocation5 + $0x460] sm:$0xff]
    %v301 = vld [vmem:[#allocation5 + $0x468] sm:$0xff]
    %v302 = vld [vmem:[#allocation5 + $0x470] sm:$0xff]
    %v303 = vld [vmem:[#allocation5 + $0x478] sm:$0xff]
    %v304 = vld [vmem:[#allocation5 + $0x480] sm:$0xff]
    %v305 = vld [vmem:[#allocation5 + $0x488] sm:$0xff]
    %v306 = vld [vmem:[#allocation5 + $0x490] sm:$0xff]
    %v307 = vld [vmem:[#allocation5 + $0x498] sm:$0xff]
    %v308 = vld [vmem:[#allocation5 + $0x4a0] sm:$0xff]
    %v309 = vld [vmem:[#allocation5 + $0x4a8] sm:$0xff]
    %v310 = vld [vmem:[#allocation5 + $0x4b0] sm:$0xff]
    %v311 = vld [vmem:[#allocation5 + $0x4b8] sm:$0xff]
    %v312 = vld [vmem:[#allocation5 + $0x4c0] sm:$0xff]
    %v313 = vld [vmem:[#allocation5 + $0x4c8] sm:$0xff]
    %v314 = vld [vmem:[#allocation5 + $0x4d0] sm:$0xff]
    %v315 = vld [vmem:[#allocation5 + $0x4d8] sm:$0xff]
    %v316 = vld [vmem:[#allocation5 + $0x4e0] sm:$0xff]
    %v317 = vld [vmem:[#allocation5 + $0x4e8] sm:$0xff]
    %v318 = vld [vmem:[#allocation5 + $0x4f0] sm:$0xff]
    %v319 = vld [vmem:[#allocation5 + $0x4f8] sm:$0xff]
    %v320 = vld [vmem:[#allocation5 + $0x500] sm:$0xff]
    %v321 = vld [vmem:[#allocation5 + $0x508] sm:$0xff]
    %v322 = vld [vmem:[#allocation5 + $0x510] sm:$0xff]
    %v323 = vld [vmem:[#allocation5 + $0x518] sm:$0xff]
    %v324 = vld [vmem:[#allocation5 + $0x520] sm:$0xff]
    %v325 = vld [vmem:[#allocation5 + $0x528] sm:$0xff]
    %v326 = vld [vmem:[#allocation5 + $0x530] sm:$0xff]
    %v327 = vld [vmem:[#allocation5 + $0x538] sm:$0xff]
    %v328 = vld [vmem:[#allocation5 + $0x540] sm:$0xff]
    %v329 = vld [vmem:[#allocation5 + $0x548] sm:$0xff]
    %v330 = vld [vmem:[#allocation5 + $0x550] sm:$0xff]
    %v331 = vld [vmem:[#allocation5 + $0x558] sm:$0xff]
    %v332 = vld [vmem:[#allocation5 + $0x560] sm:$0xff]
    %v333 = vld [vmem:[#allocation5 + $0x568] sm:$0xff]
    %v334 = vld [vmem:[#allocation5 + $0x570] sm:$0xff]
    %v335 = vld [vmem:[#allocation5 + $0x578] sm:$0xff]
    %v336 = vld [vmem:[#allocation5 + $0x580] sm:$0xff]
    %v337 = vld [vmem:[#allocation5 + $0x588] sm:$0xff]
    %v338 = vld [vmem:[#allocation5 + $0x590] sm:$0xff]
    %v339 = vld [vmem:[#allocation5 + $0x598] sm:$0xff]
    %v340 = vld [vmem:[#allocation5 + $0x5a0] sm:$0xff]
    %v341 = vld [vmem:[#allocation5 + $0x5a8] sm:$0xff]
    %v342 = vld [vmem:[#allocation5 + $0x5b0] sm:$0xff]
    %v343 = vld [vmem:[#allocation5 + $0x5b8] sm:$0xff]
    %v344 = vld [vmem:[#allocation5 + $0x5c0] sm:$0xff]
    %v345 = vld [vmem:[#allocation5 + $0x5c8] sm:$0xff]
    %v346 = vld [vmem:[#allocation5 + $0x5d0] sm:$0xff]
    %v347 = vld [vmem:[#allocation5 + $0x5d8] sm:$0xff]
    %v348 = vld [vmem:[#allocation5 + $0x5e0] sm:$0xff]
    %v349 = vld [vmem:[#allocation5 + $0x5e8] sm:$0xff]
    %v350 = vld [vmem:[#allocation5 + $0x5f0] sm:$0xff]
    %v351 = vld [vmem:[#allocation5 + $0x5f8] sm:$0xff]
    %v352 = vld [vmem:[#allocation5 + $0x600] sm:$0xff]
    %v353 = vld [vmem:[#allocation5 + $0x608] sm:$0xff]
    %v354 = vld [vmem:[#allocation5 + $0x610] sm:$0xff]
    %v355 = vld [vmem:[#allocation5 + $0x618] sm:$0xff]
    %v356 = vld [vmem:[#allocation7] sm:$0xf]
    %v358 = vperm.slane %v356, 0
    %v359 = vperm.slane %v356, 1
    %v360 = vperm.slane %v356, 2
    %v361 = vperm.slane %v356, 3
    %v562 = vunpack.c.l.b16 %v160
    %v563 = vunpack.c.h.b16 %v160
    %v564 = vunpack.c.l.b16 %v161
    %v565 = vunpack.c.h.b16 %v161
    %v566 = vunpack.c.l.b16 %v162
    %v567 = vunpack.c.h.b16 %v162
    %v568 = vunpack.c.l.b16 %v163
    %v569 = vunpack.c.h.b16 %v163
    %v570 = vunpack.c.l.b16 %v164
    %v571 = vunpack.c.h.b16 %v164
    %v572 = vunpack.c.l.b16 %v165
    %v573 = vunpack.c.h.b16 %v165
    %v574 = vunpack.c.l.b16 %v166
    %v575 = vunpack.c.h.b16 %v166
    %v576 = vunpack.c.l.b16 %v167
    %v577 = vunpack.c.h.b16 %v167
    %v578 = vunpack.c.l.b16 %v168
    %v579 = vunpack.c.h.b16 %v168
    %v580 = vunpack.c.l.b16 %v169
    %v581 = vunpack.c.h.b16 %v169
    %v582 = vunpack.c.l.b16 %v170
    %v583 = vunpack.c.h.b16 %v170
    %v584 = vunpack.c.l.b16 %v171
    %v585 = vunpack.c.h.b16 %v171
    %v586 = vunpack.c.l.b16 %v172
    %v587 = vunpack.c.h.b16 %v172
    %v588 = vunpack.c.l.b16 %v173
    %v589 = vunpack.c.h.b16 %v173
    %v590 = vunpack.c.l.b16 %v174
    %v591 = vunpack.c.h.b16 %v174
    %v592 = vunpack.c.l.b16 %v175
    %v593 = vunpack.c.h.b16 %v175
    %v594 = vunpack.c.l.b16 %v176
    %v595 = vunpack.c.h.b16 %v176
    %v596 = vunpack.c.l.b16 %v177
    %v597 = vunpack.c.h.b16 %v177
    %v598 = vunpack.c.l.b16 %v178
    %v599 = vunpack.c.h.b16 %v178
    %v600 = vunpack.c.l.b16 %v179
    %v601 = vunpack.c.h.b16 %v179
    %v602 = vunpack.c.l.b16 %v180
    %v603 = vunpack.c.h.b16 %v180
    %v604 = vunpack.c.l.b16 %v181
    %v605 = vunpack.c.h.b16 %v181
    %v606 = vunpack.c.l.b16 %v182
    %v607 = vunpack.c.h.b16 %v182
    %v608 = vunpack.c.l.b16 %v183
    %v609 = vunpack.c.h.b16 %v183
    %v610 = vunpack.c.l.b16 %v184
    %v611 = vunpack.c.h.b16 %v184
    %v612 = vunpack.c.l.b16 %v185
    %v613 = vunpack.c.h.b16 %v185
    %v614 = vunpack.c.l.b16 %v186
    %v615 = vunpack.c.h.b16 %v186
    %v616 = vunpack.c.l.b16 %v187
    %v617 = vunpack.c.h.b16 %v187
    %v618 = vunpack.c.l.b16 %v188
    %v619 = vunpack.c.h.b16 %v188
    %v620 = vunpack.c.l.b16 %v189
    %v621 = vunpack.c.h.b16 %v189
    %v622 = vunpack.c.l.b16 %v190
    %v623 = vunpack.c.h.b16 %v190
    %v624 = vunpack.c.l.b16 %v191
    %v625 = vunpack.c.h.b16 %v191
    %v626 = vunpack.c.l.b16 %v192
    %v627 = vunpack.c.h.b16 %v192
    %v628 = vunpack.c.l.b16 %v193
    %v629 = vunpack.c.h.b16 %v193
    %v630 = vunpack.c.l.b16 %v194
    %v631 = vunpack.c.h.b16 %v194
    %v632 = vunpack.c.l.b16 %v195
    %v633 = vunpack.c.h.b16 %v195
    %v634 = vunpack.c.l.b16 %v196
    %v635 = vunpack.c.h.b16 %v196
    %v636 = vunpack.c.l.b16 %v197
    %v637 = vunpack.c.h.b16 %v197
    %v638 = vunpack.c.l.b16 %v198
    %v639 = vunpack.c.h.b16 %v198
    %v640 = vunpack.c.l.b16 %v199
    %v641 = vunpack.c.h.b16 %v199
    %v642 = vunpack.c.l.b16 %v200
    %v643 = vunpack.c.h.b16 %v200
    %v644 = vunpack.c.l.b16 %v201
    %v645 = vunpack.c.h.b16 %v201
    %v646 = vunpack.c.l.b16 %v202
    %v647 = vunpack.c.h.b16 %v202
    %v648 = vunpack.c.l.b16 %v203
    %v649 = vunpack.c.h.b16 %v203
    %v650 = vunpack.c.l.b16 %v204
    %v651 = vunpack.c.h.b16 %v204
    %v652 = vunpack.c.l.b16 %v205
    %v653 = vunpack.c.h.b16 %v205
    %v654 = vunpack.c.l.b16 %v206
    %v655 = vunpack.c.h.b16 %v206
    %v656 = vunpack.c.l.b16 %v207
    %v657 = vunpack.c.h.b16 %v207
    %v658 = vunpack.c.l.b16 %v208
    %v659 = vunpack.c.h.b16 %v208
    %v660 = vunpack.c.l.b16 %v209
    %v661 = vunpack.c.h.b16 %v209
    %v662 = vunpack.c.l.b16 %v210
    %v663 = vunpack.c.h.b16 %v210
    %v664 = vunpack.c.l.b16 %v211
    %v665 = vunpack.c.h.b16 %v211
    %v666 = vunpack.c.l.b16 %v212
    %v667 = vunpack.c.h.b16 %v212
    %v668 = vunpack.c.l.b16 %v213
    %v669 = vunpack.c.h.b16 %v213
    %v670 = vunpack.c.l.b16 %v214
    %v671 = vunpack.c.h.b16 %v214
    %v672 = vunpack.c.l.b16 %v215
    %v673 = vunpack.c.h.b16 %v215
    %v674 = vunpack.c.l.b16 %v216
    %v675 = vunpack.c.h.b16 %v216
    %v676 = vunpack.c.l.b16 %v217
    %v677 = vunpack.c.h.b16 %v217
    %v678 = vunpack.c.l.b16 %v218
    %v679 = vunpack.c.h.b16 %v218
    %v680 = vunpack.c.l.b16 %v219
    %v681 = vunpack.c.h.b16 %v219
    %v682 = vunpack.c.l.b16 %v220
    %v683 = vunpack.c.h.b16 %v220
    %v684 = vunpack.c.l.b16 %v221
    %v685 = vunpack.c.h.b16 %v221
    %v686 = vunpack.c.l.b16 %v222
    %v687 = vunpack.c.h.b16 %v222
    %v688 = vunpack.c.l.b16 %v223
    %v689 = vunpack.c.h.b16 %v223
    %v690 = vunpack.c.l.b16 %v224
    %v691 = vunpack.c.h.b16 %v224
    %v692 = vunpack.c.l.b16 %v225
    %v693 = vunpack.c.h.b16 %v225
    %v694 = vunpack.c.l.b16 %v226
    %v695 = vunpack.c.h.b16 %v226
    %v696 = vunpack.c.l.b16 %v227
    %v697 = vunpack.c.h.b16 %v227
    %v698 = vunpack.c.l.b16 %v228
    %v699 = vunpack.c.h.b16 %v228
    %v700 = vunpack.c.l.b16 %v229
    %v701 = vunpack.c.h.b16 %v229
    %v702 = vunpack.c.l.b16 %v230
    %v703 = vunpack.c.h.b16 %v230
    %v704 = vunpack.c.l.b16 %v231
    %v705 = vunpack.c.h.b16 %v231
    %v706 = vunpack.c.l.b16 %v232
    %v707 = vunpack.c.h.b16 %v232
    %v708 = vunpack.c.l.b16 %v233
    %v709 = vunpack.c.h.b16 %v233
    %v710 = vunpack.c.l.b16 %v234
    %v711 = vunpack.c.h.b16 %v234
    %v712 = vunpack.c.l.b16 %v235
    %v713 = vunpack.c.h.b16 %v235
    %v714 = vunpack.c.l.b16 %v236
    %v715 = vunpack.c.h.b16 %v236
    %v716 = vunpack.c.l.b16 %v237
    %v717 = vunpack.c.h.b16 %v237
    %v718 = vunpack.c.l.b16 %v238
    %v719 = vunpack.c.h.b16 %v238
    %v720 = vunpack.c.l.b16 %v239
    %v721 = vunpack.c.h.b16 %v239
    %v722 = vunpack.c.l.b16 %v240
    %v723 = vunpack.c.h.b16 %v240
    %v724 = vunpack.c.l.b16 %v241
    %v725 = vunpack.c.h.b16 %v241
    %v726 = vunpack.c.l.b16 %v242
    %v727 = vunpack.c.h.b16 %v242
    %v728 = vunpack.c.l.b16 %v243
    %v729 = vunpack.c.h.b16 %v243
    %v730 = vunpack.c.l.b16 %v244
    %v731 = vunpack.c.h.b16 %v244
    %v732 = vunpack.c.l.b16 %v245
    %v733 = vunpack.c.h.b16 %v245
    %v734 = vunpack.c.l.b16 %v246
    %v735 = vunpack.c.h.b16 %v246
    %v736 = vunpack.c.l.b16 %v247
    %v737 = vunpack.c.h.b16 %v247
    %v738 = vunpack.c.l.b16 %v248
    %v739 = vunpack.c.h.b16 %v248
    %v740 = vunpack.c.l.b16 %v249
    %v741 = vunpack.c.h.b16 %v249
    %v742 = vunpack.c.l.b16 %v250
    %v743 = vunpack.c.h.b16 %v250
    %v744 = vunpack.c.l.b16 %v251
    %v745 = vunpack.c.h.b16 %v251
    %v746 = vunpack.c.l.b16 %v252
    %v747 = vunpack.c.h.b16 %v252
    %v748 = vunpack.c.l.b16 %v253
    %v749 = vunpack.c.h.b16 %v253
    %v750 = vunpack.c.l.b16 %v254
    %v751 = vunpack.c.h.b16 %v254
    %v752 = vunpack.c.l.b16 %v255
    %v753 = vunpack.c.h.b16 %v255
    %v754 = vunpack.c.l.b16 %v256
    %v755 = vunpack.c.h.b16 %v256
    %v756 = vunpack.c.l.b16 %v257
    %v757 = vunpack.c.h.b16 %v257
    %v758 = vunpack.c.l.b16 %v258
    %v759 = vunpack.c.h.b16 %v258
    %v760 = vunpack.c.l.b16 %v259
    %v761 = vunpack.c.h.b16 %v259
    %v762 = vunpack.c.l.b16 %v260
    %v763 = vunpack.c.h.b16 %v260
    %v764 = vunpack.c.l.b16 %v261
    %v765 = vunpack.c.h.b16 %v261
    %v766 = vunpack.c.l.b16 %v262
    %v767 = vunpack.c.h.b16 %v262
    %v768 = vunpack.c.l.b16 %v263
    %v769 = vunpack.c.h.b16 %v263
    %v770 = vunpack.c.l.b16 %v264
    %v771 = vunpack.c.h.b16 %v264
    %v772 = vunpack.c.l.b16 %v265
    %v773 = vunpack.c.h.b16 %v265
    %v774 = vunpack.c.l.b16 %v266
    %v775 = vunpack.c.h.b16 %v266
    %v776 = vunpack.c.l.b16 %v267
    %v777 = vunpack.c.h.b16 %v267
    %v778 = vunpack.c.l.b16 %v268
    %v779 = vunpack.c.h.b16 %v268
    %v780 = vunpack.c.l.b16 %v269
    %v781 = vunpack.c.h.b16 %v269
    %v782 = vunpack.c.l.b16 %v270
    %v783 = vunpack.c.h.b16 %v270
    %v784 = vunpack.c.l.b16 %v271
    %v785 = vunpack.c.h.b16 %v271
    %v786 = vunpack.c.l.b16 %v272
    %v787 = vunpack.c.h.b16 %v272
    %v788 = vunpack.c.l.b16 %v273
    %v789 = vunpack.c.h.b16 %v273
    %v790 = vunpack.c.l.b16 %v274
    %v791 = vunpack.c.h.b16 %v274
    %v792 = vunpack.c.l.b16 %v275
    %v793 = vunpack.c.h.b16 %v275
    %v794 = vunpack.c.l.b16 %v276
    %v795 = vunpack.c.h.b16 %v276
    %v796 = vunpack.c.l.b16 %v277
    %v797 = vunpack.c.h.b16 %v277
    %v798 = vunpack.c.l.b16 %v278
    %v799 = vunpack.c.h.b16 %v278
    %v800 = vunpack.c.l.b16 %v279
    %v801 = vunpack.c.h.b16 %v279
    %v802 = vunpack.c.l.b16 %v280
    %v803 = vunpack.c.h.b16 %v280
    %v804 = vunpack.c.l.b16 %v281
    %v805 = vunpack.c.h.b16 %v281
    %v806 = vunpack.c.l.b16 %v282
    %v807 = vunpack.c.h.b16 %v282
    %v808 = vunpack.c.l.b16 %v283
    %v809 = vunpack.c.h.b16 %v283
    %v810 = vunpack.c.l.b16 %v284
    %v811 = vunpack.c.h.b16 %v284
    %v812 = vunpack.c.l.b16 %v285
    %v813 = vunpack.c.h.b16 %v285
    %v814 = vunpack.c.l.b16 %v286
    %v815 = vunpack.c.h.b16 %v286
    %v816 = vunpack.c.l.b16 %v287
    %v817 = vunpack.c.h.b16 %v287
    %v818 = vunpack.c.l.b16 %v288
    %v819 = vunpack.c.h.b16 %v288
    %v820 = vunpack.c.l.b16 %v289
    %v821 = vunpack.c.h.b16 %v289
    %v822 = vunpack.c.l.b16 %v290
    %v823 = vunpack.c.h.b16 %v290
    %v824 = vunpack.c.l.b16 %v291
    %v825 = vunpack.c.h.b16 %v291
    %v826 = vunpack.c.l.b16 %v292
    %v827 = vunpack.c.h.b16 %v292
    %v828 = vunpack.c.l.b16 %v293
    %v829 = vunpack.c.h.b16 %v293
    %v830 = vunpack.c.l.b16 %v294
    %v831 = vunpack.c.h.b16 %v294
    %v832 = vunpack.c.l.b16 %v295
    %v833 = vunpack.c.h.b16 %v295
    %v834 = vunpack.c.l.b16 %v296
    %v835 = vunpack.c.h.b16 %v296
    %v836 = vunpack.c.l.b16 %v297
    %v837 = vunpack.c.h.b16 %v297
    %v838 = vunpack.c.l.b16 %v298
    %v839 = vunpack.c.h.b16 %v298
    %v840 = vunpack.c.l.b16 %v299
    %v841 = vunpack.c.h.b16 %v299
    %v842 = vunpack.c.l.b16 %v300
    %v843 = vunpack.c.h.b16 %v300
    %v844 = vunpack.c.l.b16 %v301
    %v845 = vunpack.c.h.b16 %v301
    %v846 = vunpack.c.l.b16 %v302
    %v847 = vunpack.c.h.b16 %v302
    %v848 = vunpack.c.l.b16 %v303
    %v849 = vunpack.c.h.b16 %v303
    %v850 = vunpack.c.l.b16 %v304
    %v851 = vunpack.c.h.b16 %v304
    %v852 = vunpack.c.l.b16 %v305
    %v853 = vunpack.c.h.b16 %v305
    %v854 = vunpack.c.l.b16 %v306
    %v855 = vunpack.c.h.b16 %v306
    %v856 = vunpack.c.l.b16 %v307
    %v857 = vunpack.c.h.b16 %v307
    %v858 = vunpack.c.l.b16 %v308
    %v859 = vunpack.c.h.b16 %v308
    %v860 = vunpack.c.l.b16 %v309
    %v861 = vunpack.c.h.b16 %v309
    %v862 = vunpack.c.l.b16 %v310
    %v863 = vunpack.c.h.b16 %v310
    %v864 = vunpack.c.l.b16 %v311
    %v865 = vunpack.c.h.b16 %v311
    %v866 = vunpack.c.l.b16 %v312
    %v867 = vunpack.c.h.b16 %v312
    %v868 = vunpack.c.l.b16 %v313
    %v869 = vunpack.c.h.b16 %v313
    %v870 = vunpack.c.l.b16 %v314
    %v871 = vunpack.c.h.b16 %v314
    %v872 = vunpack.c.l.b16 %v315
    %v873 = vunpack.c.h.b16 %v315
    %v874 = vunpack.c.l.b16 %v316
    %v875 = vunpack.c.h.b16 %v316
    %v876 = vunpack.c.l.b16 %v317
    %v877 = vunpack.c.h.b16 %v317
    %v878 = vunpack.c.l.b16 %v318
    %v879 = vunpack.c.h.b16 %v318
    %v880 = vunpack.c.l.b16 %v319
    %v881 = vunpack.c.h.b16 %v319
    %v882 = vunpack.c.l.b16 %v320
    %v883 = vunpack.c.h.b16 %v320
    %v884 = vunpack.c.l.b16 %v321
    %v885 = vunpack.c.h.b16 %v321
    %v886 = vunpack.c.l.b16 %v322
    %v887 = vunpack.c.h.b16 %v322
    %v888 = vunpack.c.l.b16 %v323
    %v889 = vunpack.c.h.b16 %v323
    %v890 = vunpack.c.l.b16 %v324
    %v891 = vunpack.c.h.b16 %v324
    %v892 = vunpack.c.l.b16 %v325
    %v893 = vunpack.c.h.b16 %v325
    %v894 = vunpack.c.l.b16 %v326
    %v895 = vunpack.c.h.b16 %v326
    %v896 = vunpack.c.l.b16 %v327
    %v897 = vunpack.c.h.b16 %v327
    %v898 = vunpack.c.l.b16 %v328
    %v899 = vunpack.c.h.b16 %v328
    %v900 = vunpack.c.l.b16 %v329
    %v901 = vunpack.c.h.b16 %v329
    %v902 = vunpack.c.l.b16 %v330
    %v903 = vunpack.c.h.b16 %v330
    %v904 = vunpack.c.l.b16 %v331
    %v905 = vunpack.c.h.b16 %v331
    %v906 = vunpack.c.l.b16 %v332
    %v907 = vunpack.c.h.b16 %v332
    %v908 = vunpack.c.l.b16 %v333
    %v909 = vunpack.c.h.b16 %v333
    %v910 = vunpack.c.l.b16 %v334
    %v911 = vunpack.c.h.b16 %v334
    %v912 = vunpack.c.l.b16 %v335
    %v913 = vunpack.c.h.b16 %v335
    %v914 = vunpack.c.l.b16 %v336
    %v915 = vunpack.c.h.b16 %v336
    %v916 = vunpack.c.l.b16 %v337
    %v917 = vunpack.c.h.b16 %v337
    %v918 = vunpack.c.l.b16 %v338
    %v919 = vunpack.c.h.b16 %v338
    %v920 = vunpack.c.l.b16 %v339
    %v921 = vunpack.c.h.b16 %v339
    %v922 = vunpack.c.l.b16 %v340
    %v923 = vunpack.c.h.b16 %v340
    %v924 = vunpack.c.l.b16 %v341
    %v925 = vunpack.c.h.b16 %v341
    %v926 = vunpack.c.l.b16 %v342
    %v927 = vunpack.c.h.b16 %v342
    %v928 = vunpack.c.l.b16 %v343
    %v929 = vunpack.c.h.b16 %v343
    %v930 = vunpack.c.l.b16 %v344
    %v931 = vunpack.c.h.b16 %v344
    %v932 = vunpack.c.l.b16 %v345
    %v933 = vunpack.c.h.b16 %v345
    %v934 = vunpack.c.l.b16 %v346
    %v935 = vunpack.c.h.b16 %v346
    %v936 = vunpack.c.l.b16 %v347
    %v937 = vunpack.c.h.b16 %v347
    %v938 = vunpack.c.l.b16 %v348
    %v939 = vunpack.c.h.b16 %v348
    %v940 = vunpack.c.l.b16 %v349
    %v941 = vunpack.c.h.b16 %v349
    %v942 = vunpack.c.l.b16 %v350
    %v943 = vunpack.c.h.b16 %v350
    %v944 = vunpack.c.l.b16 %v351
    %v945 = vunpack.c.h.b16 %v351
    %v946 = vunpack.c.l.b16 %v352
    %v947 = vunpack.c.h.b16 %v352
    %v948 = vunpack.c.l.b16 %v353
    %v949 = vunpack.c.h.b16 %v353
    %v950 = vunpack.c.l.b16 %v354
    %v951 = vunpack.c.h.b16 %v354
    %v952 = vunpack.c.l.b16 %v355
    %v953 = vunpack.c.h.b16 %v355
    %v954 = vpack.c.b16 %v566, %v562
    %v955 = vpack.c.b16 %v567, %v563
    %v956 = vpack.c.b16 %v568, %v564
    %v957 = vpack.c.b16 %v569, %v565
    %v958 = vpack.c.b16 %v574, %v570
    %v959 = vpack.c.b16 %v575, %v571
    %v960 = vpack.c.b16 %v576, %v572
    %v961 = vpack.c.b16 %v577, %v573
    %v962 = vpack.c.b16 %v582, %v578
    %v963 = vpack.c.b16 %v583, %v579
    %v964 = vpack.c.b16 %v584, %v580
    %v965 = vpack.c.b16 %v585, %v581
    %v966 = vpack.c.b16 %v590, %v586
    %v967 = vpack.c.b16 %v591, %v587
    %v968 = vpack.c.b16 %v592, %v588
    %v969 = vpack.c.b16 %v593, %v589
    %v970 = vpack.c.b16 %v598, %v594
    %v971 = vpack.c.b16 %v599, %v595
    %v972 = vpack.c.b16 %v600, %v596
    %v973 = vpack.c.b16 %v601, %v597
    %v974 = vpack.c.b16 %v606, %v602
    %v975 = vpack.c.b16 %v607, %v603
    %v976 = vpack.c.b16 %v608, %v604
    %v977 = vpack.c.b16 %v609, %v605
    %v978 = vpack.c.b16 %v614, %v610
    %v979 = vpack.c.b16 %v615, %v611
    %v980 = vpack.c.b16 %v616, %v612
    %v981 = vpack.c.b16 %v617, %v613
    %v982 = vpack.c.b16 %v622, %v618
    %v983 = vpack.c.b16 %v623, %v619
    %v984 = vpack.c.b16 %v624, %v620
    %v985 = vpack.c.b16 %v625, %v621
    %v986 = vpack.c.b16 %v630, %v626
    %v987 = vpack.c.b16 %v631, %v627
    %v988 = vpack.c.b16 %v632, %v628
    %v989 = vpack.c.b16 %v633, %v629
    %v990 = vpack.c.b16 %v638, %v634
    %v991 = vpack.c.b16 %v639, %v635
    %v992 = vpack.c.b16 %v640, %v636
    %v993 = vpack.c.b16 %v641, %v637
    %v994 = vpack.c.b16 %v646, %v642
    %v995 = vpack.c.b16 %v647, %v643
    %v996 = vpack.c.b16 %v648, %v644
    %v997 = vpack.c.b16 %v649, %v645
    %v998 = vpack.c.b16 %v654, %v650
    %v999 = vpack.c.b16 %v655, %v651
    %v1000 = vpack.c.b16 %v656, %v652
    %v1001 = vpack.c.b16 %v657, %v653
    %v1002 = vpack.c.b16 %v662, %v658
    %v1003 = vpack.c.b16 %v663, %v659
    %v1004 = vpack.c.b16 %v664, %v660
    %v1005 = vpack.c.b16 %v665, %v661
    %v1006 = vpack.c.b16 %v670, %v666
    %v1007 = vpack.c.b16 %v671, %v667
    %v1008 = vpack.c.b16 %v672, %v668
    %v1009 = vpack.c.b16 %v673, %v669
    %v1010 = vpack.c.b16 %v678, %v674
    %v1011 = vpack.c.b16 %v679, %v675
    %v1012 = vpack.c.b16 %v680, %v676
    %v1013 = vpack.c.b16 %v681, %v677
    %v1014 = vpack.c.b16 %v686, %v682
    %v1015 = vpack.c.b16 %v687, %v683
    %v1016 = vpack.c.b16 %v688, %v684
    %v1017 = vpack.c.b16 %v689, %v685
    %v1018 = vpack.c.b16 %v694, %v690
    %v1019 = vpack.c.b16 %v695, %v691
    %v1020 = vpack.c.b16 %v696, %v692
    %v1021 = vpack.c.b16 %v697, %v693
    %v1022 = vpack.c.b16 %v702, %v698
    %v1023 = vpack.c.b16 %v703, %v699
    %v1024 = vpack.c.b16 %v704, %v700
    %v1025 = vpack.c.b16 %v705, %v701
    %v1026 = vpack.c.b16 %v710, %v706
    %v1027 = vpack.c.b16 %v711, %v707
    %v1028 = vpack.c.b16 %v712, %v708
    %v1029 = vpack.c.b16 %v713, %v709
    %v1030 = vpack.c.b16 %v718, %v714
    %v1031 = vpack.c.b16 %v719, %v715
    %v1032 = vpack.c.b16 %v720, %v716
    %v1033 = vpack.c.b16 %v721, %v717
    %v1034 = vpack.c.b16 %v726, %v722
    %v1035 = vpack.c.b16 %v727, %v723
    %v1036 = vpack.c.b16 %v728, %v724
    %v1037 = vpack.c.b16 %v729, %v725
    %v1038 = vpack.c.b16 %v734, %v730
    %v1039 = vpack.c.b16 %v735, %v731
    %v1040 = vpack.c.b16 %v736, %v732
    %v1041 = vpack.c.b16 %v737, %v733
    %v1042 = vpack.c.b16 %v742, %v738
    %v1043 = vpack.c.b16 %v743, %v739
    %v1044 = vpack.c.b16 %v744, %v740
    %v1045 = vpack.c.b16 %v745, %v741
    %v1046 = vpack.c.b16 %v750, %v746
    %v1047 = vpack.c.b16 %v751, %v747
    %v1048 = vpack.c.b16 %v752, %v748
    %v1049 = vpack.c.b16 %v753, %v749
    %v1050 = vpack.c.b16 %v758, %v754
    %v1051 = vpack.c.b16 %v759, %v755
    %v1052 = vpack.c.b16 %v760, %v756
    %v1053 = vpack.c.b16 %v761, %v757
    %v1054 = vpack.c.b16 %v766, %v762
    %v1055 = vpack.c.b16 %v767, %v763
    %v1056 = vpack.c.b16 %v768, %v764
    %v1057 = vpack.c.b16 %v769, %v765
    %v1058 = vpack.c.b16 %v774, %v770
    %v1059 = vpack.c.b16 %v775, %v771
    %v1060 = vpack.c.b16 %v776, %v772
    %v1061 = vpack.c.b16 %v777, %v773
    %v1062 = vpack.c.b16 %v782, %v778
    %v1063 = vpack.c.b16 %v783, %v779
    %v1064 = vpack.c.b16 %v784, %v780
    %v1065 = vpack.c.b16 %v785, %v781
    %v1066 = vpack.c.b16 %v790, %v786
    %v1067 = vpack.c.b16 %v791, %v787
    %v1068 = vpack.c.b16 %v792, %v788
    %v1069 = vpack.c.b16 %v793, %v789
    %v1070 = vpack.c.b16 %v798, %v794
    %v1071 = vpack.c.b16 %v799, %v795
    %v1072 = vpack.c.b16 %v800, %v796
    %v1073 = vpack.c.b16 %v801, %v797
    %v1074 = vpack.c.b16 %v806, %v802
    %v1075 = vpack.c.b16 %v807, %v803
    %v1076 = vpack.c.b16 %v808, %v804
    %v1077 = vpack.c.b16 %v809, %v805
    %v1078 = vpack.c.b16 %v814, %v810
    %v1079 = vpack.c.b16 %v815, %v811
    %v1080 = vpack.c.b16 %v816, %v812
    %v1081 = vpack.c.b16 %v817, %v813
    %v1082 = vpack.c.b16 %v822, %v818
    %v1083 = vpack.c.b16 %v823, %v819
    %v1084 = vpack.c.b16 %v824, %v820
    %v1085 = vpack.c.b16 %v825, %v821
    %v1086 = vpack.c.b16 %v830, %v826
    %v1087 = vpack.c.b16 %v831, %v827
    %v1088 = vpack.c.b16 %v832, %v828
    %v1089 = vpack.c.b16 %v833, %v829
    %v1090 = vpack.c.b16 %v838, %v834
    %v1091 = vpack.c.b16 %v839, %v835
    %v1092 = vpack.c.b16 %v840, %v836
    %v1093 = vpack.c.b16 %v841, %v837
    %v1094 = vpack.c.b16 %v846, %v842
    %v1095 = vpack.c.b16 %v847, %v843
    %v1096 = vpack.c.b16 %v848, %v844
    %v1097 = vpack.c.b16 %v849, %v845
    %v1098 = vpack.c.b16 %v854, %v850
    %v1099 = vpack.c.b16 %v855, %v851
    %v1100 = vpack.c.b16 %v856, %v852
    %v1101 = vpack.c.b16 %v857, %v853
    %v1102 = vpack.c.b16 %v862, %v858
    %v1103 = vpack.c.b16 %v863, %v859
    %v1104 = vpack.c.b16 %v864, %v860
    %v1105 = vpack.c.b16 %v865, %v861
    %v1106 = vpack.c.b16 %v870, %v866
    %v1107 = vpack.c.b16 %v871, %v867
    %v1108 = vpack.c.b16 %v872, %v868
    %v1109 = vpack.c.b16 %v873, %v869
    %v1110 = vpack.c.b16 %v878, %v874
    %v1111 = vpack.c.b16 %v879, %v875
    %v1112 = vpack.c.b16 %v880, %v876
    %v1113 = vpack.c.b16 %v881, %v877
    %v1114 = vpack.c.b16 %v886, %v882
    %v1115 = vpack.c.b16 %v887, %v883
    %v1116 = vpack.c.b16 %v888, %v884
    %v1117 = vpack.c.b16 %v889, %v885
    %v1118 = vpack.c.b16 %v894, %v890
    %v1119 = vpack.c.b16 %v895, %v891
    %v1120 = vpack.c.b16 %v896, %v892
    %v1121 = vpack.c.b16 %v897, %v893
    %v1122 = vpack.c.b16 %v902, %v898
    %v1123 = vpack.c.b16 %v903, %v899
    %v1124 = vpack.c.b16 %v904, %v900
    %v1125 = vpack.c.b16 %v905, %v901
    %v1126 = vpack.c.b16 %v910, %v906
    %v1127 = vpack.c.b16 %v911, %v907
    %v1128 = vpack.c.b16 %v912, %v908
    %v1129 = vpack.c.b16 %v913, %v909
    %v1130 = vpack.c.b16 %v918, %v914
    %v1131 = vpack.c.b16 %v919, %v915
    %v1132 = vpack.c.b16 %v920, %v916
    %v1133 = vpack.c.b16 %v921, %v917
    %v1134 = vpack.c.b16 %v926, %v922
    %v1135 = vpack.c.b16 %v927, %v923
    %v1136 = vpack.c.b16 %v928, %v924
    %v1137 = vpack.c.b16 %v929, %v925
    %v1138 = vpack.c.b16 %v934, %v930
    %v1139 = vpack.c.b16 %v935, %v931
    %v1140 = vpack.c.b16 %v936, %v932
    %v1141 = vpack.c.b16 %v937, %v933
    %v1142 = vpack.c.b16 %v942, %v938
    %v1143 = vpack.c.b16 %v943, %v939
    %v1144 = vpack.c.b16 %v944, %v940
    %v1145 = vpack.c.b16 %v945, %v941
    %v1146 = vpack.c.b16 %v950, %v946
    %v1147 = vpack.c.b16 %v951, %v947
    %v1148 = vpack.c.b16 %v952, %v948
    %v1149 = vpack.c.b16 %v953, %v949
    %vm1346 = vcmask 130048
    %v1348 = vsel %vm1346, %v159, 0
    %1350 = vmatpush.bf16.msra.mxu0 %v982
    %1351 = vmatpush.bf16.msra.mxu0 %v978
    %1352 = vmatpush.bf16.msra.mxu0 %v974
    %1353 = vmatpush.bf16.msra.mxu0 %v970
    %1354 = vmatpush.bf16.msra.mxu0 %v966
    %1355 = vmatpush.bf16.msra.mxu0 %v962
    %1356 = vmatpush.bf16.msra.mxu0 %v958
    %1357 = vmatpush.bf16.msra.mxu0 %v954
    %1358 = vmatmul.bf16.gmra.mxu0 %v153
    %v1359 = vpop.f32.mrf.mxu0
    %v1360 = vadd.f32 %v358, %v1359
    %v1361 = vpop.f32.mrf.mxu0
    %v1362 = vadd.f32 %v358, %v1361
    %1363 = vdwg.mxu0
    %1364 = vmatpush.bf16.msra.mxu0 %v1014
    %1365 = vmatpush.bf16.msra.mxu0 %v1010
    %1366 = vmatpush.bf16.msra.mxu0 %v1006
    %1367 = vmatpush.bf16.msra.mxu0 %v1002
    %1368 = vmatpush.bf16.msra.mxu0 %v998
    %1369 = vmatpush.bf16.msra.mxu0 %v994
    %1370 = vmatpush.bf16.msra.mxu0 %v990
    %1371 = vmatpush.bf16.msra.mxu0 %v986
    %1372 = vmatmul.bf16.gmra.mxu0 %v154
    %v1373 = vpop.f32.mrf.mxu0
    %v1374 = vadd.f32 %v1360, %v1373
    %v1375 = vpop.f32.mrf.mxu0
    %v1376 = vadd.f32 %v1362, %v1375
    %1377 = vdwg.mxu0
    %1378 = vmatpush.bf16.msra.mxu0 %v1046
    %1379 = vmatpush.bf16.msra.mxu0 %v1042
    %1380 = vmatpush.bf16.msra.mxu0 %v1038
    %1381 = vmatpush.bf16.msra.mxu0 %v1034
    %1382 = vmatpush.bf16.msra.mxu0 %v1030
    %1383 = vmatpush.bf16.msra.mxu0 %v1026
    %1384 = vmatpush.bf16.msra.mxu0 %v1022
    %1385 = vmatpush.bf16.msra.mxu0 %v1018
    %1386 = vmatmul.bf16.gmra.mxu0 %v155
    %v1387 = vpop.f32.mrf.mxu0
    %v1388 = vadd.f32 %v1374, %v1387
    %v1389 = vpop.f32.mrf.mxu0
    %v1390 = vadd.f32 %v1376, %v1389
    %1391 = vdwg.mxu0
    %1392 = vmatpush.bf16.msra.mxu0 %v1078
    %1393 = vmatpush.bf16.msra.mxu0 %v1074
    %1394 = vmatpush.bf16.msra.mxu0 %v1070
    %1395 = vmatpush.bf16.msra.mxu0 %v1066
    %1396 = vmatpush.bf16.msra.mxu0 %v1062
    %1397 = vmatpush.bf16.msra.mxu0 %v1058
    %1398 = vmatpush.bf16.msra.mxu0 %v1054
    %1399 = vmatpush.bf16.msra.mxu0 %v1050
    %1400 = vmatmul.bf16.gmra.mxu0 %v156
    %v1401 = vpop.f32.mrf.mxu0
    %v1402 = vadd.f32 %v1388, %v1401
    %v1403 = vpop.f32.mrf.mxu0
    %v1404 = vadd.f32 %v1390, %v1403
    %1405 = vdwg.mxu0
    %1406 = vmatpush.bf16.msra.mxu0 %v1110
    %1407 = vmatpush.bf16.msra.mxu0 %v1106
    %1408 = vmatpush.bf16.msra.mxu0 %v1102
    %1409 = vmatpush.bf16.msra.mxu0 %v1098
    %1410 = vmatpush.bf16.msra.mxu0 %v1094
    %1411 = vmatpush.bf16.msra.mxu0 %v1090
    %1412 = vmatpush.bf16.msra.mxu0 %v1086
    %1413 = vmatpush.bf16.msra.mxu0 %v1082
    %1414 = vmatmul.bf16.gmra.mxu0 %v157
    %v1415 = vpop.f32.mrf.mxu0
    %v1416 = vadd.f32 %v1402, %v1415
    %v1417 = vpop.f32.mrf.mxu0
    %v1418 = vadd.f32 %v1404, %v1417
    %1419 = vdwg.mxu0
    %1420 = vmatpush.bf16.msra.mxu0 %v1142
    %1421 = vmatpush.bf16.msra.mxu0 %v1138
    %1422 = vmatpush.bf16.msra.mxu0 %v1134
    %1423 = vmatpush.bf16.msra.mxu0 %v1130
    %1424 = vmatpush.bf16.msra.mxu0 %v1126
    %1425 = vmatpush.bf16.msra.mxu0 %v1122
    %1426 = vmatpush.bf16.msra.mxu0 %v1118
    %1427 = vmatpush.bf16.msra.mxu0 %v1114
    %1428 = vmatmul.bf16.gmra.mxu0 %v158
    %v1429 = vpop.f32.mrf.mxu0
    %v1430 = vadd.f32 %v1416, %v1429
    %v1431 = vpop.f32.mrf.mxu0
    %v1432 = vadd.f32 %v1418, %v1431
    %1433 = vdwg.mxu0
    %1434 = vmatpush.bf16.msra.mxu0 0
    %1435 = vmatpush.bf16.msra.mxu0 0
    %1436 = vmatpush.bf16.msra.mxu0 0
    %1437 = vmatpush.bf16.msra.mxu0 0
    %1438 = vmatpush.bf16.msra.mxu0 0
    %1439 = vmatpush.bf16.msra.mxu0 0
    %1440 = vmatpush.bf16.msra.mxu0 0
    %1441 = vmatpush.bf16.msra.mxu0 %v1146
    %1442 = vmatmul.bf16.gmra.mxu0 %v1348
    %v1443 = vpop.f32.mrf.mxu0
    %v1444 = vadd.f32 %v1430, %v1443
    %v1445 = vpop.f32.mrf.mxu0
    %v1446 = vadd.f32 %v1432, %v1445
    %1447 = vdwg.mxu0
    %1448 = vmatpush.bf16.msra.mxu0 %v983
    %1449 = vmatpush.bf16.msra.mxu0 %v979
    %1450 = vmatpush.bf16.msra.mxu0 %v975
    %1451 = vmatpush.bf16.msra.mxu0 %v971
    %1452 = vmatpush.bf16.msra.mxu0 %v967
    %1453 = vmatpush.bf16.msra.mxu0 %v963
    %1454 = vmatpush.bf16.msra.mxu0 %v959
    %1455 = vmatpush.bf16.msra.mxu0 %v955
    %1456 = vmatmul.bf16.gmra.mxu0 %v153
    %v1457 = vpop.f32.mrf.mxu0
    %v1458 = vadd.f32 %v359, %v1457
    %v1459 = vpop.f32.mrf.mxu0
    %v1460 = vadd.f32 %v359, %v1459
    %1461 = vdwg.mxu0
    %1462 = vmatpush.bf16.msra.mxu0 %v1015
    %1463 = vmatpush.bf16.msra.mxu0 %v1011
    %1464 = vmatpush.bf16.msra.mxu0 %v1007
    %1465 = vmatpush.bf16.msra.mxu0 %v1003
    %1466 = vmatpush.bf16.msra.mxu0 %v999
    %1467 = vmatpush.bf16.msra.mxu0 %v995
    %1468 = vmatpush.bf16.msra.mxu0 %v991
    %1469 = vmatpush.bf16.msra.mxu0 %v987
    %1470 = vmatmul.bf16.gmra.mxu0 %v154
    %v1471 = vpop.f32.mrf.mxu0
    %v1472 = vadd.f32 %v1458, %v1471
    %v1473 = vpop.f32.mrf.mxu0
    %v1474 = vadd.f32 %v1460, %v1473
    %1475 = vdwg.mxu0
    %1476 = vmatpush.bf16.msra.mxu0 %v1047
    %1477 = vmatpush.bf16.msra.mxu0 %v1043
    %1478 = vmatpush.bf16.msra.mxu0 %v1039
    %1479 = vmatpush.bf16.msra.mxu0 %v1035
    %1480 = vmatpush.bf16.msra.mxu0 %v1031
    %1481 = vmatpush.bf16.msra.mxu0 %v1027
    %1482 = vmatpush.bf16.msra.mxu0 %v1023
    %1483 = vmatpush.bf16.msra.mxu0 %v1019
    %1484 = vmatmul.bf16.gmra.mxu0 %v155
    %v1485 = vpop.f32.mrf.mxu0
    %v1486 = vadd.f32 %v1472, %v1485
    %v1487 = vpop.f32.mrf.mxu0
    %v1488 = vadd.f32 %v1474, %v1487
    %1489 = vdwg.mxu0
    %1490 = vmatpush.bf16.msra.mxu0 %v1079
    %1491 = vmatpush.bf16.msra.mxu0 %v1075
    %1492 = vmatpush.bf16.msra.mxu0 %v1071
    %1493 = vmatpush.bf16.msra.mxu0 %v1067
    %1494 = vmatpush.bf16.msra.mxu0 %v1063
    %1495 = vmatpush.bf16.msra.mxu0 %v1059
    %1496 = vmatpush.bf16.msra.mxu0 %v1055
    %1497 = vmatpush.bf16.msra.mxu0 %v1051
    %1498 = vmatmul.bf16.gmra.mxu0 %v156
    %v1499 = vpop.f32.mrf.mxu0
    %v1500 = vadd.f32 %v1486, %v1499
    %v1501 = vpop.f32.mrf.mxu0
    %v1502 = vadd.f32 %v1488, %v1501
    %1503 = vdwg.mxu0
    %1504 = vmatpush.bf16.msra.mxu0 %v1111
    %1505 = vmatpush.bf16.msra.mxu0 %v1107
    %1506 = vmatpush.bf16.msra.mxu0 %v1103
    %1507 = vmatpush.bf16.msra.mxu0 %v1099
    %1508 = vmatpush.bf16.msra.mxu0 %v1095
    %1509 = vmatpush.bf16.msra.mxu0 %v1091
    %1510 = vmatpush.bf16.msra.mxu0 %v1087
    %1511 = vmatpush.bf16.msra.mxu0 %v1083
    %1512 = vmatmul.bf16.gmra.mxu0 %v157
    %v1513 = vpop.f32.mrf.mxu0
    %v1514 = vadd.f32 %v1500, %v1513
    %v1515 = vpop.f32.mrf.mxu0
    %v1516 = vadd.f32 %v1502, %v1515
    %1517 = vdwg.mxu0
    %1518 = vmatpush.bf16.msra.mxu0 %v1143
    %1519 = vmatpush.bf16.msra.mxu0 %v1139
    %1520 = vmatpush.bf16.msra.mxu0 %v1135
    %1521 = vmatpush.bf16.msra.mxu0 %v1131
    %1522 = vmatpush.bf16.msra.mxu0 %v1127
    %1523 = vmatpush.bf16.msra.mxu0 %v1123
    %1524 = vmatpush.bf16.msra.mxu0 %v1119
    %1525 = vmatpush.bf16.msra.mxu0 %v1115
    %1526 = vmatmul.bf16.gmra.mxu0 %v158
    %v1527 = vpop.f32.mrf.mxu0
    %v1528 = vadd.f32 %v1514, %v1527
    %v1529 = vpop.f32.mrf.mxu0
    %v1530 = vadd.f32 %v1516, %v1529
    %1531 = vdwg.mxu0
    %1532 = vmatpush.bf16.msra.mxu0 0
    %1533 = vmatpush.bf16.msra.mxu0 0
    %1534 = vmatpush.bf16.msra.mxu0 0
    %1535 = vmatpush.bf16.msra.mxu0 0
    %1536 = vmatpush.bf16.msra.mxu0 0
    %1537 = vmatpush.bf16.msra.mxu0 0
    %1538 = vmatpush.bf16.msra.mxu0 0
    %1539 = vmatpush.bf16.msra.mxu0 %v1147
    %1540 = vmatmul.bf16.gmra.mxu0 %v1348
    %v1541 = vpop.f32.mrf.mxu0
    %v1542 = vadd.f32 %v1528, %v1541
    %v1543 = vpop.f32.mrf.mxu0
    %v1544 = vadd.f32 %v1530, %v1543
    %1545 = vdwg.mxu0
    %1546 = vmatpush.bf16.msra.mxu0 %v984
    %1547 = vmatpush.bf16.msra.mxu0 %v980
    %1548 = vmatpush.bf16.msra.mxu0 %v976
    %1549 = vmatpush.bf16.msra.mxu0 %v972
    %1550 = vmatpush.bf16.msra.mxu0 %v968
    %1551 = vmatpush.bf16.msra.mxu0 %v964
    %1552 = vmatpush.bf16.msra.mxu0 %v960
    %1553 = vmatpush.bf16.msra.mxu0 %v956
    %1554 = vmatmul.bf16.gmra.mxu0 %v153
    %v1555 = vpop.f32.mrf.mxu0
    %v1556 = vadd.f32 %v360, %v1555
    %v1557 = vpop.f32.mrf.mxu0
    %v1558 = vadd.f32 %v360, %v1557
    %1559 = vdwg.mxu0
    %1560 = vmatpush.bf16.msra.mxu0 %v1016
    %1561 = vmatpush.bf16.msra.mxu0 %v1012
    %1562 = vmatpush.bf16.msra.mxu0 %v1008
    %1563 = vmatpush.bf16.msra.mxu0 %v1004
    %1564 = vmatpush.bf16.msra.mxu0 %v1000
    %1565 = vmatpush.bf16.msra.mxu0 %v996
    %1566 = vmatpush.bf16.msra.mxu0 %v992
    %1567 = vmatpush.bf16.msra.mxu0 %v988
    %1568 = vmatmul.bf16.gmra.mxu0 %v154
    %v1569 = vpop.f32.mrf.mxu0
    %v1570 = vadd.f32 %v1556, %v1569
    %v1571 = vpop.f32.mrf.mxu0
    %v1572 = vadd.f32 %v1558, %v1571
    %1573 = vdwg.mxu0
    %1574 = vmatpush.bf16.msra.mxu0 %v1048
    %1575 = vmatpush.bf16.msra.mxu0 %v1044
    %1576 = vmatpush.bf16.msra.mxu0 %v1040
    %1577 = vmatpush.bf16.msra.mxu0 %v1036
    %1578 = vmatpush.bf16.msra.mxu0 %v1032
    %1579 = vmatpush.bf16.msra.mxu0 %v1028
    %1580 = vmatpush.bf16.msra.mxu0 %v1024
    %1581 = vmatpush.bf16.msra.mxu0 %v1020
    %1582 = vmatmul.bf16.gmra.mxu0 %v155
    %v1583 = vpop.f32.mrf.mxu0
    %v1584 = vadd.f32 %v1570, %v1583
    %v1585 = vpop.f32.mrf.mxu0
    %v1586 = vadd.f32 %v1572, %v1585
    %1587 = vdwg.mxu0
    %1588 = vmatpush.bf16.msra.mxu0 %v1080
    %1589 = vmatpush.bf16.msra.mxu0 %v1076
    %1590 = vmatpush.bf16.msra.mxu0 %v1072
    %1591 = vmatpush.bf16.msra.mxu0 %v1068
    %1592 = vmatpush.bf16.msra.mxu0 %v1064
    %1593 = vmatpush.bf16.msra.mxu0 %v1060
    %1594 = vmatpush.bf16.msra.mxu0 %v1056
    %1595 = vmatpush.bf16.msra.mxu0 %v1052
    %1596 = vmatmul.bf16.gmra.mxu0 %v156
    %v1597 = vpop.f32.mrf.mxu0
    %v1598 = vadd.f32 %v1584, %v1597
    %v1599 = vpop.f32.mrf.mxu0
    %v1600 = vadd.f32 %v1586, %v1599
    %1601 = vdwg.mxu0
    %1602 = vmatpush.bf16.msra.mxu0 %v1112
    %1603 = vmatpush.bf16.msra.mxu0 %v1108
    %1604 = vmatpush.bf16.msra.mxu0 %v1104
    %1605 = vmatpush.bf16.msra.mxu0 %v1100
    %1606 = vmatpush.bf16.msra.mxu0 %v1096
    %1607 = vmatpush.bf16.msra.mxu0 %v1092
    %1608 = vmatpush.bf16.msra.mxu0 %v1088
    %1609 = vmatpush.bf16.msra.mxu0 %v1084
    %1610 = vmatmul.bf16.gmra.mxu0 %v157
    %v1611 = vpop.f32.mrf.mxu0
    %v1612 = vadd.f32 %v1598, %v1611
    %v1613 = vpop.f32.mrf.mxu0
    %v1614 = vadd.f32 %v1600, %v1613
    %1615 = vdwg.mxu0
    %1616 = vmatpush.bf16.msra.mxu0 %v1144
    %1617 = vmatpush.bf16.msra.mxu0 %v1140
    %1618 = vmatpush.bf16.msra.mxu0 %v1136
    %1619 = vmatpush.bf16.msra.mxu0 %v1132
    %1620 = vmatpush.bf16.msra.mxu0 %v1128
    %1621 = vmatpush.bf16.msra.mxu0 %v1124
    %1622 = vmatpush.bf16.msra.mxu0 %v1120
    %1623 = vmatpush.bf16.msra.mxu0 %v1116
    %1624 = vmatmul.bf16.gmra.mxu0 %v158
    %v1625 = vpop.f32.mrf.mxu0
    %v1626 = vadd.f32 %v1612, %v1625
    %v1627 = vpop.f32.mrf.mxu0
    %v1628 = vadd.f32 %v1614, %v1627
    %1629 = vdwg.mxu0
    %1630 = vmatpush.bf16.msra.mxu0 0
    %1631 = vmatpush.bf16.msra.mxu0 0
    %1632 = vmatpush.bf16.msra.mxu0 0
    %1633 = vmatpush.bf16.msra.mxu0 0
    %1634 = vmatpush.bf16.msra.mxu0 0
    %1635 = vmatpush.bf16.msra.mxu0 0
    %1636 = vmatpush.bf16.msra.mxu0 0
    %1637 = vmatpush.bf16.msra.mxu0 %v1148
    %1638 = vmatmul.bf16.gmra.mxu0 %v1348
    %v1639 = vpop.f32.mrf.mxu0
    %v1640 = vadd.f32 %v1626, %v1639
    %v1641 = vpop.f32.mrf.mxu0
    %v1642 = vadd.f32 %v1628, %v1641
    %1643 = vdwg.mxu0
    %1644 = vmatpush.bf16.msra.mxu0 %v985
    %1645 = vmatpush.bf16.msra.mxu0 %v981
    %1646 = vmatpush.bf16.msra.mxu0 %v977
    %1647 = vmatpush.bf16.msra.mxu0 %v973
    %1648 = vmatpush.bf16.msra.mxu0 %v969
    %1649 = vmatpush.bf16.msra.mxu0 %v965
    %1650 = vmatpush.bf16.msra.mxu0 %v961
    %1651 = vmatpush.bf16.msra.mxu0 %v957
    %1652 = vmatmul.bf16.gmra.mxu0 %v153
    %v1653 = vpop.f32.mrf.mxu0
    %v1654 = vadd.f32 %v361, %v1653
    %v1655 = vpop.f32.mrf.mxu0
    %v1656 = vadd.f32 %v361, %v1655
    %1657 = vdwg.mxu0
    %1658 = vmatpush.bf16.msra.mxu0 %v1017
    %1659 = vmatpush.bf16.msra.mxu0 %v1013
    %1660 = vmatpush.bf16.msra.mxu0 %v1009
    %1661 = vmatpush.bf16.msra.mxu0 %v1005
    %1662 = vmatpush.bf16.msra.mxu0 %v1001
    %1663 = vmatpush.bf16.msra.mxu0 %v997
    %1664 = vmatpush.bf16.msra.mxu0 %v993
    %1665 = vmatpush.bf16.msra.mxu0 %v989
    %1666 = vmatmul.bf16.gmra.mxu0 %v154
    %v1667 = vpop.f32.mrf.mxu0
    %v1668 = vadd.f32 %v1654, %v1667
    %v1669 = vpop.f32.mrf.mxu0
    %v1670 = vadd.f32 %v1656, %v1669
    %1671 = vdwg.mxu0
    %1672 = vmatpush.bf16.msra.mxu0 %v1049
    %1673 = vmatpush.bf16.msra.mxu0 %v1045
    %1674 = vmatpush.bf16.msra.mxu0 %v1041
    %1675 = vmatpush.bf16.msra.mxu0 %v1037
    %1676 = vmatpush.bf16.msra.mxu0 %v1033
    %1677 = vmatpush.bf16.msra.mxu0 %v1029
    %1678 = vmatpush.bf16.msra.mxu0 %v1025
    %1679 = vmatpush.bf16.msra.mxu0 %v1021
    %1680 = vmatmul.bf16.gmra.mxu0 %v155
    %v1681 = vpop.f32.mrf.mxu0
    %v1682 = vadd.f32 %v1668, %v1681
    %v1683 = vpop.f32.mrf.mxu0
    %v1684 = vadd.f32 %v1670, %v1683
    %1685 = vdwg.mxu0
    %1686 = vmatpush.bf16.msra.mxu0 %v1081
    %1687 = vmatpush.bf16.msra.mxu0 %v1077
    %1688 = vmatpush.bf16.msra.mxu0 %v1073
    %1689 = vmatpush.bf16.msra.mxu0 %v1069
    %1690 = vmatpush.bf16.msra.mxu0 %v1065
    %1691 = vmatpush.bf16.msra.mxu0 %v1061
    %1692 = vmatpush.bf16.msra.mxu0 %v1057
    %1693 = vmatpush.bf16.msra.mxu0 %v1053
    %1694 = vmatmul.bf16.gmra.mxu0 %v156
    %v1695 = vpop.f32.mrf.mxu0
    %v1696 = vadd.f32 %v1682, %v1695
    %v1697 = vpop.f32.mrf.mxu0
    %v1698 = vadd.f32 %v1684, %v1697
    %1699 = vdwg.mxu0
    %1700 = vmatpush.bf16.msra.mxu0 %v1113
    %1701 = vmatpush.bf16.msra.mxu0 %v1109
    %1702 = vmatpush.bf16.msra.mxu0 %v1105
    %1703 = vmatpush.bf16.msra.mxu0 %v1101
    %1704 = vmatpush.bf16.msra.mxu0 %v1097
    %1705 = vmatpush.bf16.msra.mxu0 %v1093
    %1706 = vmatpush.bf16.msra.mxu0 %v1089
    %1707 = vmatpush.bf16.msra.mxu0 %v1085
    %1708 = vmatmul.bf16.gmra.mxu0 %v157
    %v1709 = vpop.f32.mrf.mxu0
    %v1710 = vadd.f32 %v1696, %v1709
    %v1711 = vpop.f32.mrf.mxu0
    %v1712 = vadd.f32 %v1698, %v1711
    %1713 = vdwg.mxu0
    %1714 = vmatpush.bf16.msra.mxu0 %v1145
    %1715 = vmatpush.bf16.msra.mxu0 %v1141
    %1716 = vmatpush.bf16.msra.mxu0 %v1137
    %1717 = vmatpush.bf16.msra.mxu0 %v1133
    %1718 = vmatpush.bf16.msra.mxu0 %v1129
    %1719 = vmatpush.bf16.msra.mxu0 %v1125
    %1720 = vmatpush.bf16.msra.mxu0 %v1121
    %1721 = vmatpush.bf16.msra.mxu0 %v1117
    %1722 = vmatmul.bf16.gmra.mxu0 %v158
    %v1723 = vpop.f32.mrf.mxu0
    %v1724 = vadd.f32 %v1710, %v1723
    %v1725 = vpop.f32.mrf.mxu0
    %v1726 = vadd.f32 %v1712, %v1725
    %1727 = vdwg.mxu0
    %1728 = vmatpush.bf16.msra.mxu0 0
    %1729 = vmatpush.bf16.msra.mxu0 0
    %1730 = vmatpush.bf16.msra.mxu0 0
    %1731 = vmatpush.bf16.msra.mxu0 0
    %1732 = vmatpush.bf16.msra.mxu0 0
    %1733 = vmatpush.bf16.msra.mxu0 0
    %1734 = vmatpush.bf16.msra.mxu0 0
    %1735 = vmatpush.bf16.msra.mxu0 %v1149
    %1736 = vmatmul.bf16.gmra.mxu0 %v1348
    %v1737 = vpop.f32.mrf.mxu0
    %v1738 = vadd.f32 %v1724, %v1737
    %v1739 = vpop.f32.mrf.mxu0
    %v1740 = vadd.f32 %v1726, %v1739
    %1741 = vdwg.mxu0
    %v1742 = vmax.f32 %v1444, 0.0
    %v1743 = vmax.f32 %v1542, 0.0
    %v1744 = vmax.f32 %v1640, 0.0
    %v1745 = vmax.f32 %v1738, 0.0
    %v1746 = vmax.f32 %v1446, 0.0
    %v1747 = vmax.f32 %v1544, 0.0
    %v1748 = vmax.f32 %v1642, 0.0
    %v1749 = vmax.f32 %v1740, 0.0
    %v1750 = vpack.c.bf16 %v1746, %v1742
    %v1751 = vpack.c.bf16 %v1747, %v1743
    %v1752 = vpack.c.bf16 %v1748, %v1744
    %v1753 = vpack.c.bf16 %v1749, %v1745
    %v1754 = vld [vmem:[#allocation8] sm:$0xff]
    %v1755 = vld [vmem:[#allocation8 + $0x8] sm:$0xff]
    %v1756 = vld [vmem:[#allocation8 + $0x10] sm:$0xff]
    %v1757 = vld [vmem:[#allocation8 + $0x18] sm:$0xff]
    %v1758 = vld [vmem:[#allocation8 + $0x20] sm:$0xff]
    %v1759 = vld [vmem:[#allocation8 + $0x28] sm:$0xff]
    %v1760 = vld [vmem:[#allocation8 + $0x30] sm:$0xff]
    %v1761 = vld [vmem:[#allocation8 + $0x38] sm:$0xff]
    %v1762 = vld [vmem:[#allocation8 + $0x40] sm:$0xff]
    %v1763 = vld [vmem:[#allocation8 + $0x48] sm:$0xff]
    %v1764 = vld [vmem:[#allocation8 + $0x50] sm:$0xff]
    %v1765 = vld [vmem:[#allocation8 + $0x58] sm:$0xff]
    %v1766 = vld [vmem:[#allocation8 + $0x60] sm:$0xff]
    %v1767 = vld [vmem:[#allocation8 + $0x68] sm:$0xff]
    %v1768 = vld [vmem:[#allocation8 + $0x70] sm:$0xff]
    %v1769 = vld [vmem:[#allocation8 + $0x78] sm:$0xff]
    %v1770 = vld [vmem:[#allocation8 + $0x80] sm:$0xff]
    %v1771 = vld [vmem:[#allocation8 + $0x88] sm:$0xff]
    %v1772 = vld [vmem:[#allocation8 + $0x90] sm:$0xff]
    %v1773 = vld [vmem:[#allocation8 + $0x98] sm:$0xff]
    %v1774 = vld [vmem:[#allocation8 + $0xa0] sm:$0xff]
    %v1775 = vld [vmem:[#allocation8 + $0xa8] sm:$0xff]
    %v1776 = vld [vmem:[#allocation8 + $0xb0] sm:$0xff]
    %v1777 = vld [vmem:[#allocation8 + $0xb8] sm:$0xff]
    %v1778 = vld [vmem:[#allocation8 + $0xc0] sm:$0xff]
    %v1779 = vld [vmem:[#allocation8 + $0xc8] sm:$0xff]
    %v1780 = vld [vmem:[#allocation8 + $0xd0] sm:$0xff]
    %v1781 = vld [vmem:[#allocation8 + $0xd8] sm:$0xff]
    %v1782 = vld [vmem:[#allocation8 + $0xe0] sm:$0xff]
    %v1783 = vld [vmem:[#allocation8 + $0xe8] sm:$0xff]
    %v1784 = vld [vmem:[#allocation8 + $0xf0] sm:$0xff]
    %v1785 = vld [vmem:[#allocation8 + $0xf8] sm:$0xff]
    %v1786 = vld [vmem:[#allocation8 + $0x100] sm:$0xff]
    %v1787 = vld [vmem:[#allocation8 + $0x108] sm:$0xff]
    %v1788 = vld [vmem:[#allocation8 + $0x110] sm:$0xff]
    %v1789 = vld [vmem:[#allocation8 + $0x118] sm:$0xff]
    %v1790 = vld [vmem:[#allocation8 + $0x120] sm:$0xff]
    %v1791 = vld [vmem:[#allocation8 + $0x128] sm:$0xff]
    %v1792 = vld [vmem:[#allocation8 + $0x130] sm:$0xff]
    %v1793 = vld [vmem:[#allocation8 + $0x138] sm:$0xff]
    %v1794 = vld [vmem:[#allocation8 + $0x140] sm:$0xff]
    %v1795 = vld [vmem:[#allocation8 + $0x148] sm:$0xff]
    %v1796 = vld [vmem:[#allocation8 + $0x150] sm:$0xff]
    %v1797 = vld [vmem:[#allocation8 + $0x158] sm:$0xff]
    %v1798 = vld [vmem:[#allocation8 + $0x160] sm:$0xff]
    %v1799 = vld [vmem:[#allocation8 + $0x168] sm:$0xff]
    %v1800 = vld [vmem:[#allocation8 + $0x170] sm:$0xff]
    %v1801 = vld [vmem:[#allocation8 + $0x178] sm:$0xff]
    %v1802 = vld [vmem:[#allocation8 + $0x180] sm:$0xff]
    %v1803 = vld [vmem:[#allocation8 + $0x188] sm:$0xff]
    %v1804 = vld [vmem:[#allocation8 + $0x190] sm:$0xff]
    %v1805 = vld [vmem:[#allocation8 + $0x198] sm:$0xff]
    %v1806 = vld [vmem:[#allocation8 + $0x1a0] sm:$0xff]
    %v1807 = vld [vmem:[#allocation8 + $0x1a8] sm:$0xff]
    %v1808 = vld [vmem:[#allocation8 + $0x1b0] sm:$0xff]
    %v1809 = vld [vmem:[#allocation8 + $0x1b8] sm:$0xff]
    %v1810 = vld [vmem:[#allocation8 + $0x1c0] sm:$0xff]
    %v1811 = vld [vmem:[#allocation8 + $0x1c8] sm:$0xff]
    %v1812 = vld [vmem:[#allocation8 + $0x1d0] sm:$0xff]
    %v1813 = vld [vmem:[#allocation8 + $0x1d8] sm:$0xff]
    %v1814 = vld [vmem:[#allocation8 + $0x1e0] sm:$0xff]
    %v1815 = vld [vmem:[#allocation8 + $0x1e8] sm:$0xff]
    %v1816 = vld [vmem:[#allocation8 + $0x1f0] sm:$0xff]
    %v1817 = vld [vmem:[#allocation8 + $0x1f8] sm:$0xff]
    %v1818 = vld [vmem:[#allocation8 + $0x200] sm:$0xff]
    %v1819 = vld [vmem:[#allocation8 + $0x208] sm:$0xff]
    %v1820 = vld [vmem:[#allocation8 + $0x210] sm:$0xff]
    %v1821 = vld [vmem:[#allocation8 + $0x218] sm:$0xff]
    %v1822 = vld [vmem:[#allocation8 + $0x220] sm:$0xff]
    %v1823 = vld [vmem:[#allocation8 + $0x228] sm:$0xff]
    %v1824 = vld [vmem:[#allocation8 + $0x230] sm:$0xff]
    %v1825 = vld [vmem:[#allocation8 + $0x238] sm:$0xff]
    %v1826 = vld [vmem:[#allocation8 + $0x240] sm:$0xff]
    %v1827 = vld [vmem:[#allocation8 + $0x248] sm:$0xff]
    %v1828 = vld [vmem:[#allocation8 + $0x250] sm:$0xff]
    %v1829 = vld [vmem:[#allocation8 + $0x258] sm:$0xff]
    %v1830 = vld [vmem:[#allocation8 + $0x260] sm:$0xff]
    %v1831 = vld [vmem:[#allocation8 + $0x268] sm:$0xff]
    %v1832 = vld [vmem:[#allocation8 + $0x270] sm:$0xff]
    %v1833 = vld [vmem:[#allocation8 + $0x278] sm:$0xff]
    %v1834 = vld [vmem:[#allocation8 + $0x280] sm:$0xff]
    %v1835 = vld [vmem:[#allocation8 + $0x288] sm:$0xff]
    %v1836 = vld [vmem:[#allocation8 + $0x290] sm:$0xff]
    %v1837 = vld [vmem:[#allocation8 + $0x298] sm:$0xff]
    %v1838 = vld [vmem:[#allocation8 + $0x2a0] sm:$0xff]
    %v1839 = vld [vmem:[#allocation8 + $0x2a8] sm:$0xff]
    %v1840 = vld [vmem:[#allocation8 + $0x2b0] sm:$0xff]
    %v1841 = vld [vmem:[#allocation8 + $0x2b8] sm:$0xff]
    %v1842 = vld [vmem:[#allocation8 + $0x2c0] sm:$0xff]
    %v1843 = vld [vmem:[#allocation8 + $0x2c8] sm:$0xff]
    %v1844 = vld [vmem:[#allocation8 + $0x2d0] sm:$0xff]
    %v1845 = vld [vmem:[#allocation8 + $0x2d8] sm:$0xff]
    %v1846 = vld [vmem:[#allocation8 + $0x2e0] sm:$0xff]
    %v1847 = vld [vmem:[#allocation8 + $0x2e8] sm:$0xff]
    %v1848 = vld [vmem:[#allocation8 + $0x2f0] sm:$0xff]
    %v1849 = vld [vmem:[#allocation8 + $0x2f8] sm:$0xff]
    %v1850 = vld [vmem:[#allocation8 + $0x300] sm:$0xff]
    %v1851 = vld [vmem:[#allocation8 + $0x308] sm:$0xff]
    %v1852 = vld [vmem:[#allocation8 + $0x310] sm:$0xff]
    %v1853 = vld [vmem:[#allocation8 + $0x318] sm:$0xff]
    %v1854 = vld [vmem:[#allocation8 + $0x320] sm:$0xff]
    %v1855 = vld [vmem:[#allocation8 + $0x328] sm:$0xff]
    %v1856 = vld [vmem:[#allocation8 + $0x330] sm:$0xff]
    %v1857 = vld [vmem:[#allocation8 + $0x338] sm:$0xff]
    %v1858 = vld [vmem:[#allocation8 + $0x340] sm:$0xff]
    %v1859 = vld [vmem:[#allocation8 + $0x348] sm:$0xff]
    %v1860 = vld [vmem:[#allocation8 + $0x350] sm:$0xff]
    %v1861 = vld [vmem:[#allocation8 + $0x358] sm:$0xff]
    %v1862 = vld [vmem:[#allocation8 + $0x360] sm:$0xff]
    %v1863 = vld [vmem:[#allocation8 + $0x368] sm:$0xff]
    %v1864 = vld [vmem:[#allocation8 + $0x370] sm:$0xff]
    %v1865 = vld [vmem:[#allocation8 + $0x378] sm:$0xff]
    %v1866 = vld [vmem:[#allocation8 + $0x380] sm:$0xff]
    %v1867 = vld [vmem:[#allocation8 + $0x388] sm:$0xff]
    %v1868 = vld [vmem:[#allocation8 + $0x390] sm:$0xff]
    %v1869 = vld [vmem:[#allocation8 + $0x398] sm:$0xff]
    %v1870 = vld [vmem:[#allocation8 + $0x3a0] sm:$0xff]
    %v1871 = vld [vmem:[#allocation8 + $0x3a8] sm:$0xff]
    %v1872 = vld [vmem:[#allocation8 + $0x3b0] sm:$0xff]
    %v1873 = vld [vmem:[#allocation8 + $0x3b8] sm:$0xff]
    %v1874 = vld [vmem:[#allocation8 + $0x3c0] sm:$0xff]
    %v1875 = vld [vmem:[#allocation8 + $0x3c8] sm:$0xff]
    %v1876 = vld [vmem:[#allocation8 + $0x3d0] sm:$0xff]
    %v1877 = vld [vmem:[#allocation8 + $0x3d8] sm:$0xff]
    %v1878 = vld [vmem:[#allocation8 + $0x3e0] sm:$0xff]
    %v1879 = vld [vmem:[#allocation8 + $0x3e8] sm:$0xff]
    %v1880 = vld [vmem:[#allocation8 + $0x3f0] sm:$0xff]
    %v1881 = vld [vmem:[#allocation8 + $0x3f8] sm:$0xff]
    %v1882 = vld [vmem:[#allocation10] sm:$0xf]
    %v1884 = vperm.slane %v1882, 0
    %v1885 = vperm.slane %v1882, 1
    %v1886 = vperm.slane %v1882, 2
    %v1887 = vperm.slane %v1882, 3
    %v2020 = vunpack.c.l.b16 %v1754
    %v2021 = vunpack.c.h.b16 %v1754
    %v2022 = vunpack.c.l.b16 %v1755
    %v2023 = vunpack.c.h.b16 %v1755
    %v2024 = vunpack.c.l.b16 %v1756
    %v2025 = vunpack.c.h.b16 %v1756
    %v2026 = vunpack.c.l.b16 %v1757
    %v2027 = vunpack.c.h.b16 %v1757
    %v2028 = vunpack.c.l.b16 %v1758
    %v2029 = vunpack.c.h.b16 %v1758
    %v2030 = vunpack.c.l.b16 %v1759
    %v2031 = vunpack.c.h.b16 %v1759
    %v2032 = vunpack.c.l.b16 %v1760
    %v2033 = vunpack.c.h.b16 %v1760
    %v2034 = vunpack.c.l.b16 %v1761
    %v2035 = vunpack.c.h.b16 %v1761
    %v2036 = vunpack.c.l.b16 %v1762
    %v2037 = vunpack.c.h.b16 %v1762
    %v2038 = vunpack.c.l.b16 %v1763
    %v2039 = vunpack.c.h.b16 %v1763
    %v2040 = vunpack.c.l.b16 %v1764
    %v2041 = vunpack.c.h.b16 %v1764
    %v2042 = vunpack.c.l.b16 %v1765
    %v2043 = vunpack.c.h.b16 %v1765
    %v2044 = vunpack.c.l.b16 %v1766
    %v2045 = vunpack.c.h.b16 %v1766
    %v2046 = vunpack.c.l.b16 %v1767
    %v2047 = vunpack.c.h.b16 %v1767
    %v2048 = vunpack.c.l.b16 %v1768
    %v2049 = vunpack.c.h.b16 %v1768
    %v2050 = vunpack.c.l.b16 %v1769
    %v2051 = vunpack.c.h.b16 %v1769
    %v2052 = vunpack.c.l.b16 %v1770
    %v2053 = vunpack.c.h.b16 %v1770
    %v2054 = vunpack.c.l.b16 %v1771
    %v2055 = vunpack.c.h.b16 %v1771
    %v2056 = vunpack.c.l.b16 %v1772
    %v2057 = vunpack.c.h.b16 %v1772
    %v2058 = vunpack.c.l.b16 %v1773
    %v2059 = vunpack.c.h.b16 %v1773
    %v2060 = vunpack.c.l.b16 %v1774
    %v2061 = vunpack.c.h.b16 %v1774
    %v2062 = vunpack.c.l.b16 %v1775
    %v2063 = vunpack.c.h.b16 %v1775
    %v2064 = vunpack.c.l.b16 %v1776
    %v2065 = vunpack.c.h.b16 %v1776
    %v2066 = vunpack.c.l.b16 %v1777
    %v2067 = vunpack.c.h.b16 %v1777
    %v2068 = vunpack.c.l.b16 %v1778
    %v2069 = vunpack.c.h.b16 %v1778
    %v2070 = vunpack.c.l.b16 %v1779
    %v2071 = vunpack.c.h.b16 %v1779
    %v2072 = vunpack.c.l.b16 %v1780
    %v2073 = vunpack.c.h.b16 %v1780
    %v2074 = vunpack.c.l.b16 %v1781
    %v2075 = vunpack.c.h.b16 %v1781
    %v2076 = vunpack.c.l.b16 %v1782
    %v2077 = vunpack.c.h.b16 %v1782
    %v2078 = vunpack.c.l.b16 %v1783
    %v2079 = vunpack.c.h.b16 %v1783
    %v2080 = vunpack.c.l.b16 %v1784
    %v2081 = vunpack.c.h.b16 %v1784
    %v2082 = vunpack.c.l.b16 %v1785
    %v2083 = vunpack.c.h.b16 %v1785
    %v2084 = vunpack.c.l.b16 %v1786
    %v2085 = vunpack.c.h.b16 %v1786
    %v2086 = vunpack.c.l.b16 %v1787
    %v2087 = vunpack.c.h.b16 %v1787
    %v2088 = vunpack.c.l.b16 %v1788
    %v2089 = vunpack.c.h.b16 %v1788
    %v2090 = vunpack.c.l.b16 %v1789
    %v2091 = vunpack.c.h.b16 %v1789
    %v2092 = vunpack.c.l.b16 %v1790
    %v2093 = vunpack.c.h.b16 %v1790
    %v2094 = vunpack.c.l.b16 %v1791
    %v2095 = vunpack.c.h.b16 %v1791
    %v2096 = vunpack.c.l.b16 %v1792
    %v2097 = vunpack.c.h.b16 %v1792
    %v2098 = vunpack.c.l.b16 %v1793
    %v2099 = vunpack.c.h.b16 %v1793
    %v2100 = vunpack.c.l.b16 %v1794
    %v2101 = vunpack.c.h.b16 %v1794
    %v2102 = vunpack.c.l.b16 %v1795
    %v2103 = vunpack.c.h.b16 %v1795
    %v2104 = vunpack.c.l.b16 %v1796
    %v2105 = vunpack.c.h.b16 %v1796
    %v2106 = vunpack.c.l.b16 %v1797
    %v2107 = vunpack.c.h.b16 %v1797
    %v2108 = vunpack.c.l.b16 %v1798
    %v2109 = vunpack.c.h.b16 %v1798
    %v2110 = vunpack.c.l.b16 %v1799
    %v2111 = vunpack.c.h.b16 %v1799
    %v2112 = vunpack.c.l.b16 %v1800
    %v2113 = vunpack.c.h.b16 %v1800
    %v2114 = vunpack.c.l.b16 %v1801
    %v2115 = vunpack.c.h.b16 %v1801
    %v2116 = vunpack.c.l.b16 %v1802
    %v2117 = vunpack.c.h.b16 %v1802
    %v2118 = vunpack.c.l.b16 %v1803
    %v2119 = vunpack.c.h.b16 %v1803
    %v2120 = vunpack.c.l.b16 %v1804
    %v2121 = vunpack.c.h.b16 %v1804
    %v2122 = vunpack.c.l.b16 %v1805
    %v2123 = vunpack.c.h.b16 %v1805
    %v2124 = vunpack.c.l.b16 %v1806
    %v2125 = vunpack.c.h.b16 %v1806
    %v2126 = vunpack.c.l.b16 %v1807
    %v2127 = vunpack.c.h.b16 %v1807
    %v2128 = vunpack.c.l.b16 %v1808
    %v2129 = vunpack.c.h.b16 %v1808
    %v2130 = vunpack.c.l.b16 %v1809
    %v2131 = vunpack.c.h.b16 %v1809
    %v2132 = vunpack.c.l.b16 %v1810
    %v2133 = vunpack.c.h.b16 %v1810
    %v2134 = vunpack.c.l.b16 %v1811
    %v2135 = vunpack.c.h.b16 %v1811
    %v2136 = vunpack.c.l.b16 %v1812
    %v2137 = vunpack.c.h.b16 %v1812
    %v2138 = vunpack.c.l.b16 %v1813
    %v2139 = vunpack.c.h.b16 %v1813
    %v2140 = vunpack.c.l.b16 %v1814
    %v2141 = vunpack.c.h.b16 %v1814
    %v2142 = vunpack.c.l.b16 %v1815
    %v2143 = vunpack.c.h.b16 %v1815
    %v2144 = vunpack.c.l.b16 %v1816
    %v2145 = vunpack.c.h.b16 %v1816
    %v2146 = vunpack.c.l.b16 %v1817
    %v2147 = vunpack.c.h.b16 %v1817
    %v2148 = vunpack.c.l.b16 %v1818
    %v2149 = vunpack.c.h.b16 %v1818
    %v2150 = vunpack.c.l.b16 %v1819
    %v2151 = vunpack.c.h.b16 %v1819
    %v2152 = vunpack.c.l.b16 %v1820
    %v2153 = vunpack.c.h.b16 %v1820
    %v2154 = vunpack.c.l.b16 %v1821
    %v2155 = vunpack.c.h.b16 %v1821
    %v2156 = vunpack.c.l.b16 %v1822
    %v2157 = vunpack.c.h.b16 %v1822
    %v2158 = vunpack.c.l.b16 %v1823
    %v2159 = vunpack.c.h.b16 %v1823
    %v2160 = vunpack.c.l.b16 %v1824
    %v2161 = vunpack.c.h.b16 %v1824
    %v2162 = vunpack.c.l.b16 %v1825
    %v2163 = vunpack.c.h.b16 %v1825
    %v2164 = vunpack.c.l.b16 %v1826
    %v2165 = vunpack.c.h.b16 %v1826
    %v2166 = vunpack.c.l.b16 %v1827
    %v2167 = vunpack.c.h.b16 %v1827
    %v2168 = vunpack.c.l.b16 %v1828
    %v2169 = vunpack.c.h.b16 %v1828
    %v2170 = vunpack.c.l.b16 %v1829
    %v2171 = vunpack.c.h.b16 %v1829
    %v2172 = vunpack.c.l.b16 %v1830
    %v2173 = vunpack.c.h.b16 %v1830
    %v2174 = vunpack.c.l.b16 %v1831
    %v2175 = vunpack.c.h.b16 %v1831
    %v2176 = vunpack.c.l.b16 %v1832
    %v2177 = vunpack.c.h.b16 %v1832
    %v2178 = vunpack.c.l.b16 %v1833
    %v2179 = vunpack.c.h.b16 %v1833
    %v2180 = vunpack.c.l.b16 %v1834
    %v2181 = vunpack.c.h.b16 %v1834
    %v2182 = vunpack.c.l.b16 %v1835
    %v2183 = vunpack.c.h.b16 %v1835
    %v2184 = vunpack.c.l.b16 %v1836
    %v2185 = vunpack.c.h.b16 %v1836
    %v2186 = vunpack.c.l.b16 %v1837
    %v2187 = vunpack.c.h.b16 %v1837
    %v2188 = vunpack.c.l.b16 %v1838
    %v2189 = vunpack.c.h.b16 %v1838
    %v2190 = vunpack.c.l.b16 %v1839
    %v2191 = vunpack.c.h.b16 %v1839
    %v2192 = vunpack.c.l.b16 %v1840
    %v2193 = vunpack.c.h.b16 %v1840
    %v2194 = vunpack.c.l.b16 %v1841
    %v2195 = vunpack.c.h.b16 %v1841
    %v2196 = vunpack.c.l.b16 %v1842
    %v2197 = vunpack.c.h.b16 %v1842
    %v2198 = vunpack.c.l.b16 %v1843
    %v2199 = vunpack.c.h.b16 %v1843
    %v2200 = vunpack.c.l.b16 %v1844
    %v2201 = vunpack.c.h.b16 %v1844
    %v2202 = vunpack.c.l.b16 %v1845
    %v2203 = vunpack.c.h.b16 %v1845
    %v2204 = vunpack.c.l.b16 %v1846
    %v2205 = vunpack.c.h.b16 %v1846
    %v2206 = vunpack.c.l.b16 %v1847
    %v2207 = vunpack.c.h.b16 %v1847
    %v2208 = vunpack.c.l.b16 %v1848
    %v2209 = vunpack.c.h.b16 %v1848
    %v2210 = vunpack.c.l.b16 %v1849
    %v2211 = vunpack.c.h.b16 %v1849
    %v2212 = vunpack.c.l.b16 %v1850
    %v2213 = vunpack.c.h.b16 %v1850
    %v2214 = vunpack.c.l.b16 %v1851
    %v2215 = vunpack.c.h.b16 %v1851
    %v2216 = vunpack.c.l.b16 %v1852
    %v2217 = vunpack.c.h.b16 %v1852
    %v2218 = vunpack.c.l.b16 %v1853
    %v2219 = vunpack.c.h.b16 %v1853
    %v2220 = vunpack.c.l.b16 %v1854
    %v2221 = vunpack.c.h.b16 %v1854
    %v2222 = vunpack.c.l.b16 %v1855
    %v2223 = vunpack.c.h.b16 %v1855
    %v2224 = vunpack.c.l.b16 %v1856
    %v2225 = vunpack.c.h.b16 %v1856
    %v2226 = vunpack.c.l.b16 %v1857
    %v2227 = vunpack.c.h.b16 %v1857
    %v2228 = vunpack.c.l.b16 %v1858
    %v2229 = vunpack.c.h.b16 %v1858
    %v2230 = vunpack.c.l.b16 %v1859
    %v2231 = vunpack.c.h.b16 %v1859
    %v2232 = vunpack.c.l.b16 %v1860
    %v2233 = vunpack.c.h.b16 %v1860
    %v2234 = vunpack.c.l.b16 %v1861
    %v2235 = vunpack.c.h.b16 %v1861
    %v2236 = vunpack.c.l.b16 %v1862
    %v2237 = vunpack.c.h.b16 %v1862
    %v2238 = vunpack.c.l.b16 %v1863
    %v2239 = vunpack.c.h.b16 %v1863
    %v2240 = vunpack.c.l.b16 %v1864
    %v2241 = vunpack.c.h.b16 %v1864
    %v2242 = vunpack.c.l.b16 %v1865
    %v2243 = vunpack.c.h.b16 %v1865
    %v2244 = vunpack.c.l.b16 %v1866
    %v2245 = vunpack.c.h.b16 %v1866
    %v2246 = vunpack.c.l.b16 %v1867
    %v2247 = vunpack.c.h.b16 %v1867
    %v2248 = vunpack.c.l.b16 %v1868
    %v2249 = vunpack.c.h.b16 %v1868
    %v2250 = vunpack.c.l.b16 %v1869
    %v2251 = vunpack.c.h.b16 %v1869
    %v2252 = vunpack.c.l.b16 %v1870
    %v2253 = vunpack.c.h.b16 %v1870
    %v2254 = vunpack.c.l.b16 %v1871
    %v2255 = vunpack.c.h.b16 %v1871
    %v2256 = vunpack.c.l.b16 %v1872
    %v2257 = vunpack.c.h.b16 %v1872
    %v2258 = vunpack.c.l.b16 %v1873
    %v2259 = vunpack.c.h.b16 %v1873
    %v2260 = vunpack.c.l.b16 %v1874
    %v2261 = vunpack.c.h.b16 %v1874
    %v2262 = vunpack.c.l.b16 %v1875
    %v2263 = vunpack.c.h.b16 %v1875
    %v2264 = vunpack.c.l.b16 %v1876
    %v2265 = vunpack.c.h.b16 %v1876
    %v2266 = vunpack.c.l.b16 %v1877
    %v2267 = vunpack.c.h.b16 %v1877
    %v2268 = vunpack.c.l.b16 %v1878
    %v2269 = vunpack.c.h.b16 %v1878
    %v2270 = vunpack.c.l.b16 %v1879
    %v2271 = vunpack.c.h.b16 %v1879
    %v2272 = vunpack.c.l.b16 %v1880
    %v2273 = vunpack.c.h.b16 %v1880
    %v2274 = vunpack.c.l.b16 %v1881
    %v2275 = vunpack.c.h.b16 %v1881
    %v2276 = vpack.c.b16 %v2024, %v2020
    %v2277 = vpack.c.b16 %v2025, %v2021
    %v2278 = vpack.c.b16 %v2026, %v2022
    %v2279 = vpack.c.b16 %v2027, %v2023
    %v2280 = vpack.c.b16 %v2032, %v2028
    %v2281 = vpack.c.b16 %v2033, %v2029
    %v2282 = vpack.c.b16 %v2034, %v2030
    %v2283 = vpack.c.b16 %v2035, %v2031
    %v2284 = vpack.c.b16 %v2040, %v2036
    %v2285 = vpack.c.b16 %v2041, %v2037
    %v2286 = vpack.c.b16 %v2042, %v2038
    %v2287 = vpack.c.b16 %v2043, %v2039
    %v2288 = vpack.c.b16 %v2048, %v2044
    %v2289 = vpack.c.b16 %v2049, %v2045
    %v2290 = vpack.c.b16 %v2050, %v2046
    %v2291 = vpack.c.b16 %v2051, %v2047
    %v2292 = vpack.c.b16 %v2056, %v2052
    %v2293 = vpack.c.b16 %v2057, %v2053
    %v2294 = vpack.c.b16 %v2058, %v2054
    %v2295 = vpack.c.b16 %v2059, %v2055
    %v2296 = vpack.c.b16 %v2064, %v2060
    %v2297 = vpack.c.b16 %v2065, %v2061
    %v2298 = vpack.c.b16 %v2066, %v2062
    %v2299 = vpack.c.b16 %v2067, %v2063
    %v2300 = vpack.c.b16 %v2072, %v2068
    %v2301 = vpack.c.b16 %v2073, %v2069
    %v2302 = vpack.c.b16 %v2074, %v2070
    %v2303 = vpack.c.b16 %v2075, %v2071
    %v2304 = vpack.c.b16 %v2080, %v2076
    %v2305 = vpack.c.b16 %v2081, %v2077
    %v2306 = vpack.c.b16 %v2082, %v2078
    %v2307 = vpack.c.b16 %v2083, %v2079
    %v2308 = vpack.c.b16 %v2088, %v2084
    %v2309 = vpack.c.b16 %v2089, %v2085
    %v2310 = vpack.c.b16 %v2090, %v2086
    %v2311 = vpack.c.b16 %v2091, %v2087
    %v2312 = vpack.c.b16 %v2096, %v2092
    %v2313 = vpack.c.b16 %v2097, %v2093
    %v2314 = vpack.c.b16 %v2098, %v2094
    %v2315 = vpack.c.b16 %v2099, %v2095
    %v2316 = vpack.c.b16 %v2104, %v2100
    %v2317 = vpack.c.b16 %v2105, %v2101
    %v2318 = vpack.c.b16 %v2106, %v2102
    %v2319 = vpack.c.b16 %v2107, %v2103
    %v2320 = vpack.c.b16 %v2112, %v2108
    %v2321 = vpack.c.b16 %v2113, %v2109
    %v2322 = vpack.c.b16 %v2114, %v2110
    %v2323 = vpack.c.b16 %v2115, %v2111
    %v2324 = vpack.c.b16 %v2120, %v2116
    %v2325 = vpack.c.b16 %v2121, %v2117
    %v2326 = vpack.c.b16 %v2122, %v2118
    %v2327 = vpack.c.b16 %v2123, %v2119
    %v2328 = vpack.c.b16 %v2128, %v2124
    %v2329 = vpack.c.b16 %v2129, %v2125
    %v2330 = vpack.c.b16 %v2130, %v2126
    %v2331 = vpack.c.b16 %v2131, %v2127
    %v2332 = vpack.c.b16 %v2136, %v2132
    %v2333 = vpack.c.b16 %v2137, %v2133
    %v2334 = vpack.c.b16 %v2138, %v2134
    %v2335 = vpack.c.b16 %v2139, %v2135
    %v2336 = vpack.c.b16 %v2144, %v2140
    %v2337 = vpack.c.b16 %v2145, %v2141
    %v2338 = vpack.c.b16 %v2146, %v2142
    %v2339 = vpack.c.b16 %v2147, %v2143
    %v2340 = vpack.c.b16 %v2152, %v2148
    %v2341 = vpack.c.b16 %v2153, %v2149
    %v2342 = vpack.c.b16 %v2154, %v2150
    %v2343 = vpack.c.b16 %v2155, %v2151
    %v2344 = vpack.c.b16 %v2160, %v2156
    %v2345 = vpack.c.b16 %v2161, %v2157
    %v2346 = vpack.c.b16 %v2162, %v2158
    %v2347 = vpack.c.b16 %v2163, %v2159
    %v2348 = vpack.c.b16 %v2168, %v2164
    %v2349 = vpack.c.b16 %v2169, %v2165
    %v2350 = vpack.c.b16 %v2170, %v2166
    %v2351 = vpack.c.b16 %v2171, %v2167
    %v2352 = vpack.c.b16 %v2176, %v2172
    %v2353 = vpack.c.b16 %v2177, %v2173
    %v2354 = vpack.c.b16 %v2178, %v2174
    %v2355 = vpack.c.b16 %v2179, %v2175
    %v2356 = vpack.c.b16 %v2184, %v2180
    %v2357 = vpack.c.b16 %v2185, %v2181
    %v2358 = vpack.c.b16 %v2186, %v2182
    %v2359 = vpack.c.b16 %v2187, %v2183
    %v2360 = vpack.c.b16 %v2192, %v2188
    %v2361 = vpack.c.b16 %v2193, %v2189
    %v2362 = vpack.c.b16 %v2194, %v2190
    %v2363 = vpack.c.b16 %v2195, %v2191
    %v2364 = vpack.c.b16 %v2200, %v2196
    %v2365 = vpack.c.b16 %v2201, %v2197
    %v2366 = vpack.c.b16 %v2202, %v2198
    %v2367 = vpack.c.b16 %v2203, %v2199
    %v2368 = vpack.c.b16 %v2208, %v2204
    %v2369 = vpack.c.b16 %v2209, %v2205
    %v2370 = vpack.c.b16 %v2210, %v2206
    %v2371 = vpack.c.b16 %v2211, %v2207
    %v2372 = vpack.c.b16 %v2216, %v2212
    %v2373 = vpack.c.b16 %v2217, %v2213
    %v2374 = vpack.c.b16 %v2218, %v2214
    %v2375 = vpack.c.b16 %v2219, %v2215
    %v2376 = vpack.c.b16 %v2224, %v2220
    %v2377 = vpack.c.b16 %v2225, %v2221
    %v2378 = vpack.c.b16 %v2226, %v2222
    %v2379 = vpack.c.b16 %v2227, %v2223
    %v2380 = vpack.c.b16 %v2232, %v2228
    %v2381 = vpack.c.b16 %v2233, %v2229
    %v2382 = vpack.c.b16 %v2234, %v2230
    %v2383 = vpack.c.b16 %v2235, %v2231
    %v2384 = vpack.c.b16 %v2240, %v2236
    %v2385 = vpack.c.b16 %v2241, %v2237
    %v2386 = vpack.c.b16 %v2242, %v2238
    %v2387 = vpack.c.b16 %v2243, %v2239
    %v2388 = vpack.c.b16 %v2248, %v2244
    %v2389 = vpack.c.b16 %v2249, %v2245
    %v2390 = vpack.c.b16 %v2250, %v2246
    %v2391 = vpack.c.b16 %v2251, %v2247
    %v2392 = vpack.c.b16 %v2256, %v2252
    %v2393 = vpack.c.b16 %v2257, %v2253
    %v2394 = vpack.c.b16 %v2258, %v2254
    %v2395 = vpack.c.b16 %v2259, %v2255
    %v2396 = vpack.c.b16 %v2264, %v2260
    %v2397 = vpack.c.b16 %v2265, %v2261
    %v2398 = vpack.c.b16 %v2266, %v2262
    %v2399 = vpack.c.b16 %v2267, %v2263
    %v2400 = vpack.c.b16 %v2272, %v2268
    %v2401 = vpack.c.b16 %v2273, %v2269
    %v2402 = vpack.c.b16 %v2274, %v2270
    %v2403 = vpack.c.b16 %v2275, %v2271
    %2532 = vmatpush.bf16.msra.mxu0 %v2304
    %2533 = vmatpush.bf16.msra.mxu0 %v2300
    %2534 = vmatpush.bf16.msra.mxu0 %v2296
    %2535 = vmatpush.bf16.msra.mxu0 %v2292
    %2536 = vmatpush.bf16.msra.mxu0 %v2288
    %2537 = vmatpush.bf16.msra.mxu0 %v2284
    %2538 = vmatpush.bf16.msra.mxu0 %v2280
    %2539 = vmatpush.bf16.msra.mxu0 %v2276
    %2540 = vmatmul.bf16.gmra.mxu0 %v1750
    %v2541 = vpop.f32.mrf.mxu0
    %v2542 = vadd.f32 %v1884, %v2541
    %v2543 = vpop.f32.mrf.mxu0
    %v2544 = vadd.f32 %v1884, %v2543
    %2545 = vdwg.mxu0
    %2546 = vmatpush.bf16.msra.mxu0 %v2336
    %2547 = vmatpush.bf16.msra.mxu0 %v2332
    %2548 = vmatpush.bf16.msra.mxu0 %v2328
    %2549 = vmatpush.bf16.msra.mxu0 %v2324
    %2550 = vmatpush.bf16.msra.mxu0 %v2320
    %2551 = vmatpush.bf16.msra.mxu0 %v2316
    %2552 = vmatpush.bf16.msra.mxu0 %v2312
    %2553 = vmatpush.bf16.msra.mxu0 %v2308
    %2554 = vmatmul.bf16.gmra.mxu0 %v1751
    %v2555 = vpop.f32.mrf.mxu0
    %v2556 = vadd.f32 %v2542, %v2555
    %v2557 = vpop.f32.mrf.mxu0
    %v2558 = vadd.f32 %v2544, %v2557
    %2559 = vdwg.mxu0
    %2560 = vmatpush.bf16.msra.mxu0 %v2368
    %2561 = vmatpush.bf16.msra.mxu0 %v2364
    %2562 = vmatpush.bf16.msra.mxu0 %v2360
    %2563 = vmatpush.bf16.msra.mxu0 %v2356
    %2564 = vmatpush.bf16.msra.mxu0 %v2352
    %2565 = vmatpush.bf16.msra.mxu0 %v2348
    %2566 = vmatpush.bf16.msra.mxu0 %v2344
    %2567 = vmatpush.bf16.msra.mxu0 %v2340
    %2568 = vmatmul.bf16.gmra.mxu0 %v1752
    %v2569 = vpop.f32.mrf.mxu0
    %v2570 = vadd.f32 %v2556, %v2569
    %v2571 = vpop.f32.mrf.mxu0
    %v2572 = vadd.f32 %v2558, %v2571
    %2573 = vdwg.mxu0
    %2574 = vmatpush.bf16.msra.mxu0 %v2400
    %2575 = vmatpush.bf16.msra.mxu0 %v2396
    %2576 = vmatpush.bf16.msra.mxu0 %v2392
    %2577 = vmatpush.bf16.msra.mxu0 %v2388
    %2578 = vmatpush.bf16.msra.mxu0 %v2384
    %2579 = vmatpush.bf16.msra.mxu0 %v2380
    %2580 = vmatpush.bf16.msra.mxu0 %v2376
    %2581 = vmatpush.bf16.msra.mxu0 %v2372
    %2582 = vmatmul.bf16.gmra.mxu0 %v1753
    %v2583 = vpop.f32.mrf.mxu0
    %v2584 = vadd.f32 %v2570, %v2583
    %v2585 = vpop.f32.mrf.mxu0
    %v2586 = vadd.f32 %v2572, %v2585
    %2587 = vdwg.mxu0
    %2588 = vmatpush.bf16.msra.mxu0 %v2305
    %2589 = vmatpush.bf16.msra.mxu0 %v2301
    %2590 = vmatpush.bf16.msra.mxu0 %v2297
    %2591 = vmatpush.bf16.msra.mxu0 %v2293
    %2592 = vmatpush.bf16.msra.mxu0 %v2289
    %2593 = vmatpush.bf16.msra.mxu0 %v2285
    %2594 = vmatpush.bf16.msra.mxu0 %v2281
    %2595 = vmatpush.bf16.msra.mxu0 %v2277
    %2596 = vmatmul.bf16.gmra.mxu0 %v1750
    %v2597 = vpop.f32.mrf.mxu0
    %v2598 = vadd.f32 %v1885, %v2597
    %v2599 = vpop.f32.mrf.mxu0
    %v2600 = vadd.f32 %v1885, %v2599
    %2601 = vdwg.mxu0
    %2602 = vmatpush.bf16.msra.mxu0 %v2337
    %2603 = vmatpush.bf16.msra.mxu0 %v2333
    %2604 = vmatpush.bf16.msra.mxu0 %v2329
    %2605 = vmatpush.bf16.msra.mxu0 %v2325
    %2606 = vmatpush.bf16.msra.mxu0 %v2321
    %2607 = vmatpush.bf16.msra.mxu0 %v2317
    %2608 = vmatpush.bf16.msra.mxu0 %v2313
    %2609 = vmatpush.bf16.msra.mxu0 %v2309
    %2610 = vmatmul.bf16.gmra.mxu0 %v1751
    %v2611 = vpop.f32.mrf.mxu0
    %v2612 = vadd.f32 %v2598, %v2611
    %v2613 = vpop.f32.mrf.mxu0
    %v2614 = vadd.f32 %v2600, %v2613
    %2615 = vdwg.mxu0
    %2616 = vmatpush.bf16.msra.mxu0 %v2369
    %2617 = vmatpush.bf16.msra.mxu0 %v2365
    %2618 = vmatpush.bf16.msra.mxu0 %v2361
    %2619 = vmatpush.bf16.msra.mxu0 %v2357
    %2620 = vmatpush.bf16.msra.mxu0 %v2353
    %2621 = vmatpush.bf16.msra.mxu0 %v2349
    %2622 = vmatpush.bf16.msra.mxu0 %v2345
    %2623 = vmatpush.bf16.msra.mxu0 %v2341
    %2624 = vmatmul.bf16.gmra.mxu0 %v1752
    %v2625 = vpop.f32.mrf.mxu0
    %v2626 = vadd.f32 %v2612, %v2625
    %v2627 = vpop.f32.mrf.mxu0
    %v2628 = vadd.f32 %v2614, %v2627
    %2629 = vdwg.mxu0
    %2630 = vmatpush.bf16.msra.mxu0 %v2401
    %2631 = vmatpush.bf16.msra.mxu0 %v2397
    %2632 = vmatpush.bf16.msra.mxu0 %v2393
    %2633 = vmatpush.bf16.msra.mxu0 %v2389
    %2634 = vmatpush.bf16.msra.mxu0 %v2385
    %2635 = vmatpush.bf16.msra.mxu0 %v2381
    %2636 = vmatpush.bf16.msra.mxu0 %v2377
    %2637 = vmatpush.bf16.msra.mxu0 %v2373
    %2638 = vmatmul.bf16.gmra.mxu0 %v1753
    %v2639 = vpop.f32.mrf.mxu0
    %v2640 = vadd.f32 %v2626, %v2639
    %v2641 = vpop.f32.mrf.mxu0
    %v2642 = vadd.f32 %v2628, %v2641
    %2643 = vdwg.mxu0
    %2644 = vmatpush.bf16.msra.mxu0 %v2306
    %2645 = vmatpush.bf16.msra.mxu0 %v2302
    %2646 = vmatpush.bf16.msra.mxu0 %v2298
    %2647 = vmatpush.bf16.msra.mxu0 %v2294
    %2648 = vmatpush.bf16.msra.mxu0 %v2290
    %2649 = vmatpush.bf16.msra.mxu0 %v2286
    %2650 = vmatpush.bf16.msra.mxu0 %v2282
    %2651 = vmatpush.bf16.msra.mxu0 %v2278
    %2652 = vmatmul.bf16.gmra.mxu0 %v1750
    %v2653 = vpop.f32.mrf.mxu0
    %v2654 = vadd.f32 %v1886, %v2653
    %v2655 = vpop.f32.mrf.mxu0
    %v2656 = vadd.f32 %v1886, %v2655
    %2657 = vdwg.mxu0
    %2658 = vmatpush.bf16.msra.mxu0 %v2338
    %2659 = vmatpush.bf16.msra.mxu0 %v2334
    %2660 = vmatpush.bf16.msra.mxu0 %v2330
    %2661 = vmatpush.bf16.msra.mxu0 %v2326
    %2662 = vmatpush.bf16.msra.mxu0 %v2322
    %2663 = vmatpush.bf16.msra.mxu0 %v2318
    %2664 = vmatpush.bf16.msra.mxu0 %v2314
    %2665 = vmatpush.bf16.msra.mxu0 %v2310
    %2666 = vmatmul.bf16.gmra.mxu0 %v1751
    %v2667 = vpop.f32.mrf.mxu0
    %v2668 = vadd.f32 %v2654, %v2667
    %v2669 = vpop.f32.mrf.mxu0
    %v2670 = vadd.f32 %v2656, %v2669
    %2671 = vdwg.mxu0
    %2672 = vmatpush.bf16.msra.mxu0 %v2370
    %2673 = vmatpush.bf16.msra.mxu0 %v2366
    %2674 = vmatpush.bf16.msra.mxu0 %v2362
    %2675 = vmatpush.bf16.msra.mxu0 %v2358
    %2676 = vmatpush.bf16.msra.mxu0 %v2354
    %2677 = vmatpush.bf16.msra.mxu0 %v2350
    %2678 = vmatpush.bf16.msra.mxu0 %v2346
    %2679 = vmatpush.bf16.msra.mxu0 %v2342
    %2680 = vmatmul.bf16.gmra.mxu0 %v1752
    %v2681 = vpop.f32.mrf.mxu0
    %v2682 = vadd.f32 %v2668, %v2681
    %v2683 = vpop.f32.mrf.mxu0
    %v2684 = vadd.f32 %v2670, %v2683
    %2685 = vdwg.mxu0
    %2686 = vmatpush.bf16.msra.mxu0 %v2402
    %2687 = vmatpush.bf16.msra.mxu0 %v2398
    %2688 = vmatpush.bf16.msra.mxu0 %v2394
    %2689 = vmatpush.bf16.msra.mxu0 %v2390
    %2690 = vmatpush.bf16.msra.mxu0 %v2386
    %2691 = vmatpush.bf16.msra.mxu0 %v2382
    %2692 = vmatpush.bf16.msra.mxu0 %v2378
    %2693 = vmatpush.bf16.msra.mxu0 %v2374
    %2694 = vmatmul.bf16.gmra.mxu0 %v1753
    %v2695 = vpop.f32.mrf.mxu0
    %v2696 = vadd.f32 %v2682, %v2695
    %v2697 = vpop.f32.mrf.mxu0
    %v2698 = vadd.f32 %v2684, %v2697
    %2699 = vdwg.mxu0
    %2700 = vmatpush.bf16.msra.mxu0 %v2307
    %2701 = vmatpush.bf16.msra.mxu0 %v2303
    %2702 = vmatpush.bf16.msra.mxu0 %v2299
    %2703 = vmatpush.bf16.msra.mxu0 %v2295
    %2704 = vmatpush.bf16.msra.mxu0 %v2291
    %2705 = vmatpush.bf16.msra.mxu0 %v2287
    %2706 = vmatpush.bf16.msra.mxu0 %v2283
    %2707 = vmatpush.bf16.msra.mxu0 %v2279
    %2708 = vmatmul.bf16.gmra.mxu0 %v1750
    %v2709 = vpop.f32.mrf.mxu0
    %v2710 = vadd.f32 %v1887, %v2709
    %v2711 = vpop.f32.mrf.mxu0
    %v2712 = vadd.f32 %v1887, %v2711
    %2713 = vdwg.mxu0
    %2714 = vmatpush.bf16.msra.mxu0 %v2339
    %2715 = vmatpush.bf16.msra.mxu0 %v2335
    %2716 = vmatpush.bf16.msra.mxu0 %v2331
    %2717 = vmatpush.bf16.msra.mxu0 %v2327
    %2718 = vmatpush.bf16.msra.mxu0 %v2323
    %2719 = vmatpush.bf16.msra.mxu0 %v2319
    %2720 = vmatpush.bf16.msra.mxu0 %v2315
    %2721 = vmatpush.bf16.msra.mxu0 %v2311
    %2722 = vmatmul.bf16.gmra.mxu0 %v1751
    %v2723 = vpop.f32.mrf.mxu0
    %v2724 = vadd.f32 %v2710, %v2723
    %v2725 = vpop.f32.mrf.mxu0
    %v2726 = vadd.f32 %v2712, %v2725
    %2727 = vdwg.mxu0
    %2728 = vmatpush.bf16.msra.mxu0 %v2371
    %2729 = vmatpush.bf16.msra.mxu0 %v2367
    %2730 = vmatpush.bf16.msra.mxu0 %v2363
    %2731 = vmatpush.bf16.msra.mxu0 %v2359
    %2732 = vmatpush.bf16.msra.mxu0 %v2355
    %2733 = vmatpush.bf16.msra.mxu0 %v2351
    %2734 = vmatpush.bf16.msra.mxu0 %v2347
    %2735 = vmatpush.bf16.msra.mxu0 %v2343
    %2736 = vmatmul.bf16.gmra.mxu0 %v1752
    %v2737 = vpop.f32.mrf.mxu0
    %v2738 = vadd.f32 %v2724, %v2737
    %v2739 = vpop.f32.mrf.mxu0
    %v2740 = vadd.f32 %v2726, %v2739
    %2741 = vdwg.mxu0
    %2742 = vmatpush.bf16.msra.mxu0 %v2403
    %2743 = vmatpush.bf16.msra.mxu0 %v2399
    %2744 = vmatpush.bf16.msra.mxu0 %v2395
    %2745 = vmatpush.bf16.msra.mxu0 %v2391
    %2746 = vmatpush.bf16.msra.mxu0 %v2387
    %2747 = vmatpush.bf16.msra.mxu0 %v2383
    %2748 = vmatpush.bf16.msra.mxu0 %v2379
    %2749 = vmatpush.bf16.msra.mxu0 %v2375
    %2750 = vmatmul.bf16.gmra.mxu0 %v1753
    %v2751 = vpop.f32.mrf.mxu0
    %v2752 = vadd.f32 %v2738, %v2751
    %v2753 = vpop.f32.mrf.mxu0
    %v2754 = vadd.f32 %v2740, %v2753
    %2755 = vdwg.mxu0
    %v2756 = vmax.f32 %v2584, 0.0
    %v2757 = vmax.f32 %v2640, 0.0
    %v2758 = vmax.f32 %v2696, 0.0
    %v2759 = vmax.f32 %v2752, 0.0
    %v2760 = vmax.f32 %v2586, 0.0
    %v2761 = vmax.f32 %v2642, 0.0
    %v2762 = vmax.f32 %v2698, 0.0
    %v2763 = vmax.f32 %v2754, 0.0
    %v2764 = vpack.c.bf16 %v2760, %v2756
    %v2765 = vpack.c.bf16 %v2761, %v2757
    %v2766 = vpack.c.bf16 %v2762, %v2758
    %v2767 = vpack.c.bf16 %v2763, %v2759
    %v2768 = vld [vmem:[#allocation11] sm:$0xff]
    %v2769 = vld [vmem:[#allocation11 + $0x8] sm:$0xff]
    %v2770 = vld [vmem:[#allocation11 + $0x10] sm:$0xff]
    %v2771 = vld [vmem:[#allocation11 + $0x18] sm:$0xff]
    %v2772 = vld [vmem:[#allocation11 + $0x20] sm:$0xff]
    %v2773 = vld [vmem:[#allocation11 + $0x28] sm:$0xff]
    %v2774 = vld [vmem:[#allocation11 + $0x30] sm:$0xff]
    %v2775 = vld [vmem:[#allocation11 + $0x38] sm:$0xff]
    %v2776 = vld [vmem:[#allocation11 + $0x40] sm:$0xff]
    %v2777 = vld [vmem:[#allocation11 + $0x48] sm:$0xff]
    %v2778 = vld [vmem:[#allocation11 + $0x50] sm:$0xff]
    %v2779 = vld [vmem:[#allocation11 + $0x58] sm:$0xff]
    %v2780 = vld [vmem:[#allocation11 + $0x60] sm:$0xff]
    %v2781 = vld [vmem:[#allocation11 + $0x68] sm:$0xff]
    %v2782 = vld [vmem:[#allocation11 + $0x70] sm:$0xff]
    %v2783 = vld [vmem:[#allocation11 + $0x78] sm:$0xff]
    %v2784 = vld [vmem:[#allocation11 + $0x80] sm:$0xff]
    %v2785 = vld [vmem:[#allocation11 + $0x88] sm:$0xff]
    %v2786 = vld [vmem:[#allocation11 + $0x90] sm:$0xff]
    %v2787 = vld [vmem:[#allocation11 + $0x98] sm:$0xff]
    %v2788 = vld [vmem:[#allocation11 + $0xa0] sm:$0xff]
    %v2789 = vld [vmem:[#allocation11 + $0xa8] sm:$0xff]
    %v2790 = vld [vmem:[#allocation11 + $0xb0] sm:$0xff]
    %v2791 = vld [vmem:[#allocation11 + $0xb8] sm:$0xff]
    %v2792 = vld [vmem:[#allocation11 + $0xc0] sm:$0xff]
    %v2793 = vld [vmem:[#allocation11 + $0xc8] sm:$0xff]
    %v2794 = vld [vmem:[#allocation11 + $0xd0] sm:$0xff]
    %v2795 = vld [vmem:[#allocation11 + $0xd8] sm:$0xff]
    %v2796 = vld [vmem:[#allocation11 + $0xe0] sm:$0xff]
    %v2797 = vld [vmem:[#allocation11 + $0xe8] sm:$0xff]
    %v2798 = vld [vmem:[#allocation11 + $0xf0] sm:$0xff]
    %v2799 = vld [vmem:[#allocation11 + $0xf8] sm:$0xff]
    %v2800 = vld [vmem:[#allocation11 + $0x100] sm:$0xff]
    %v2801 = vld [vmem:[#allocation11 + $0x108] sm:$0xff]
    %v2802 = vld [vmem:[#allocation11 + $0x110] sm:$0xff]
    %v2803 = vld [vmem:[#allocation11 + $0x118] sm:$0xff]
    %v2804 = vld [vmem:[#allocation11 + $0x120] sm:$0xff]
    %v2805 = vld [vmem:[#allocation11 + $0x128] sm:$0xff]
    %v2806 = vld [vmem:[#allocation11 + $0x130] sm:$0xff]
    %v2807 = vld [vmem:[#allocation11 + $0x138] sm:$0xff]
    %v2808 = vld [vmem:[#allocation11 + $0x140] sm:$0xff]
    %v2809 = vld [vmem:[#allocation11 + $0x148] sm:$0xff]
    %v2810 = vld [vmem:[#allocation11 + $0x150] sm:$0xff]
    %v2811 = vld [vmem:[#allocation11 + $0x158] sm:$0xff]
    %v2812 = vld [vmem:[#allocation11 + $0x160] sm:$0xff]
    %v2813 = vld [vmem:[#allocation11 + $0x168] sm:$0xff]
    %v2814 = vld [vmem:[#allocation11 + $0x170] sm:$0xff]
    %v2815 = vld [vmem:[#allocation11 + $0x178] sm:$0xff]
    %v2816 = vld [vmem:[#allocation11 + $0x180] sm:$0xff]
    %v2817 = vld [vmem:[#allocation11 + $0x188] sm:$0xff]
    %v2818 = vld [vmem:[#allocation11 + $0x190] sm:$0xff]
    %v2819 = vld [vmem:[#allocation11 + $0x198] sm:$0xff]
    %v2820 = vld [vmem:[#allocation11 + $0x1a0] sm:$0xff]
    %v2821 = vld [vmem:[#allocation11 + $0x1a8] sm:$0xff]
    %v2822 = vld [vmem:[#allocation11 + $0x1b0] sm:$0xff]
    %v2823 = vld [vmem:[#allocation11 + $0x1b8] sm:$0xff]
    %v2824 = vld [vmem:[#allocation11 + $0x1c0] sm:$0xff]
    %v2825 = vld [vmem:[#allocation11 + $0x1c8] sm:$0xff]
    %v2826 = vld [vmem:[#allocation11 + $0x1d0] sm:$0xff]
    %v2827 = vld [vmem:[#allocation11 + $0x1d8] sm:$0xff]
    %v2828 = vld [vmem:[#allocation11 + $0x1e0] sm:$0xff]
    %v2829 = vld [vmem:[#allocation11 + $0x1e8] sm:$0xff]
    %v2830 = vld [vmem:[#allocation11 + $0x1f0] sm:$0xff]
    %v2831 = vld [vmem:[#allocation11 + $0x1f8] sm:$0xff]
    %v2832 = vld [vmem:[#allocation11 + $0x200] sm:$0xff]
    %v2833 = vld [vmem:[#allocation11 + $0x208] sm:$0xff]
    %v2834 = vld [vmem:[#allocation11 + $0x210] sm:$0xff]
    %v2835 = vld [vmem:[#allocation11 + $0x218] sm:$0xff]
    %v2836 = vld [vmem:[#allocation11 + $0x220] sm:$0xff]
    %v2837 = vld [vmem:[#allocation11 + $0x228] sm:$0xff]
    %v2838 = vld [vmem:[#allocation11 + $0x230] sm:$0xff]
    %v2839 = vld [vmem:[#allocation11 + $0x238] sm:$0xff]
    %v2840 = vld [vmem:[#allocation11 + $0x240] sm:$0xff]
    %v2841 = vld [vmem:[#allocation11 + $0x248] sm:$0xff]
    %v2842 = vld [vmem:[#allocation11 + $0x250] sm:$0xff]
    %v2843 = vld [vmem:[#allocation11 + $0x258] sm:$0xff]
    %v2844 = vld [vmem:[#allocation11 + $0x260] sm:$0xff]
    %v2845 = vld [vmem:[#allocation11 + $0x268] sm:$0xff]
    %v2846 = vld [vmem:[#allocation11 + $0x270] sm:$0xff]
    %v2847 = vld [vmem:[#allocation11 + $0x278] sm:$0xff]
    %v2848 = vld [vmem:[#allocation11 + $0x280] sm:$0xff]
    %v2849 = vld [vmem:[#allocation11 + $0x288] sm:$0xff]
    %v2850 = vld [vmem:[#allocation11 + $0x290] sm:$0xff]
    %v2851 = vld [vmem:[#allocation11 + $0x298] sm:$0xff]
    %v2852 = vld [vmem:[#allocation11 + $0x2a0] sm:$0xff]
    %v2853 = vld [vmem:[#allocation11 + $0x2a8] sm:$0xff]
    %v2854 = vld [vmem:[#allocation11 + $0x2b0] sm:$0xff]
    %v2855 = vld [vmem:[#allocation11 + $0x2b8] sm:$0xff]
    %v2856 = vld [vmem:[#allocation11 + $0x2c0] sm:$0xff]
    %v2857 = vld [vmem:[#allocation11 + $0x2c8] sm:$0xff]
    %v2858 = vld [vmem:[#allocation11 + $0x2d0] sm:$0xff]
    %v2859 = vld [vmem:[#allocation11 + $0x2d8] sm:$0xff]
    %v2860 = vld [vmem:[#allocation11 + $0x2e0] sm:$0xff]
    %v2861 = vld [vmem:[#allocation11 + $0x2e8] sm:$0xff]
    %v2862 = vld [vmem:[#allocation11 + $0x2f0] sm:$0xff]
    %v2863 = vld [vmem:[#allocation11 + $0x2f8] sm:$0xff]
    %v2864 = vld [vmem:[#allocation11 + $0x300] sm:$0xff]
    %v2865 = vld [vmem:[#allocation11 + $0x308] sm:$0xff]
    %v2866 = vld [vmem:[#allocation11 + $0x310] sm:$0xff]
    %v2867 = vld [vmem:[#allocation11 + $0x318] sm:$0xff]
    %v2868 = vld [vmem:[#allocation11 + $0x320] sm:$0xff]
    %v2869 = vld [vmem:[#allocation11 + $0x328] sm:$0xff]
    %v2870 = vld [vmem:[#allocation11 + $0x330] sm:$0xff]
    %v2871 = vld [vmem:[#allocation11 + $0x338] sm:$0xff]
    %v2872 = vld [vmem:[#allocation11 + $0x340] sm:$0xff]
    %v2873 = vld [vmem:[#allocation11 + $0x348] sm:$0xff]
    %v2874 = vld [vmem:[#allocation11 + $0x350] sm:$0xff]
    %v2875 = vld [vmem:[#allocation11 + $0x358] sm:$0xff]
    %v2876 = vld [vmem:[#allocation11 + $0x360] sm:$0xff]
    %v2877 = vld [vmem:[#allocation11 + $0x368] sm:$0xff]
    %v2878 = vld [vmem:[#allocation11 + $0x370] sm:$0xff]
    %v2879 = vld [vmem:[#allocation11 + $0x378] sm:$0xff]
    %v2880 = vld [vmem:[#allocation11 + $0x380] sm:$0xff]
    %v2881 = vld [vmem:[#allocation11 + $0x388] sm:$0xff]
    %v2882 = vld [vmem:[#allocation11 + $0x390] sm:$0xff]
    %v2883 = vld [vmem:[#allocation11 + $0x398] sm:$0xff]
    %v2884 = vld [vmem:[#allocation11 + $0x3a0] sm:$0xff]
    %v2885 = vld [vmem:[#allocation11 + $0x3a8] sm:$0xff]
    %v2886 = vld [vmem:[#allocation11 + $0x3b0] sm:$0xff]
    %v2887 = vld [vmem:[#allocation11 + $0x3b8] sm:$0xff]
    %v2888 = vld [vmem:[#allocation11 + $0x3c0] sm:$0xff]
    %v2889 = vld [vmem:[#allocation11 + $0x3c8] sm:$0xff]
    %v2890 = vld [vmem:[#allocation11 + $0x3d0] sm:$0xff]
    %v2891 = vld [vmem:[#allocation11 + $0x3d8] sm:$0xff]
    %v2892 = vld [vmem:[#allocation11 + $0x3e0] sm:$0xff]
    %v2893 = vld [vmem:[#allocation11 + $0x3e8] sm:$0xff]
    %v2894 = vld [vmem:[#allocation11 + $0x3f0] sm:$0xff]
    %v2895 = vld [vmem:[#allocation11 + $0x3f8] sm:$0xff]
    %v2896 = vld [vmem:[%s6] sm:$0xf]
    %v2898 = vperm.slane %v2896, 0
    %v2899 = vperm.slane %v2896, 1
    %v2900 = vperm.slane %v2896, 2
    %v2901 = vperm.slane %v2896, 3
    %v3034 = vunpack.c.l.b16 %v2768
    %v3035 = vunpack.c.h.b16 %v2768
    %v3036 = vunpack.c.l.b16 %v2769
    %v3037 = vunpack.c.h.b16 %v2769
    %v3038 = vunpack.c.l.b16 %v2770
    %v3039 = vunpack.c.h.b16 %v2770
    %v3040 = vunpack.c.l.b16 %v2771
    %v3041 = vunpack.c.h.b16 %v2771
    %v3042 = vunpack.c.l.b16 %v2772
    %v3043 = vunpack.c.h.b16 %v2772
    %v3044 = vunpack.c.l.b16 %v2773
    %v3045 = vunpack.c.h.b16 %v2773
    %v3046 = vunpack.c.l.b16 %v2774
    %v3047 = vunpack.c.h.b16 %v2774
    %v3048 = vunpack.c.l.b16 %v2775
    %v3049 = vunpack.c.h.b16 %v2775
    %v3050 = vunpack.c.l.b16 %v2776
    %v3051 = vunpack.c.h.b16 %v2776
    %v3052 = vunpack.c.l.b16 %v2777
    %v3053 = vunpack.c.h.b16 %v2777
    %v3054 = vunpack.c.l.b16 %v2778
    %v3055 = vunpack.c.h.b16 %v2778
    %v3056 = vunpack.c.l.b16 %v2779
    %v3057 = vunpack.c.h.b16 %v2779
    %v3058 = vunpack.c.l.b16 %v2780
    %v3059 = vunpack.c.h.b16 %v2780
    %v3060 = vunpack.c.l.b16 %v2781
    %v3061 = vunpack.c.h.b16 %v2781
    %v3062 = vunpack.c.l.b16 %v2782
    %v3063 = vunpack.c.h.b16 %v2782
    %v3064 = vunpack.c.l.b16 %v2783
    %v3065 = vunpack.c.h.b16 %v2783
    %v3066 = vunpack.c.l.b16 %v2784
    %v3067 = vunpack.c.h.b16 %v2784
    %v3068 = vunpack.c.l.b16 %v2785
    %v3069 = vunpack.c.h.b16 %v2785
    %v3070 = vunpack.c.l.b16 %v2786
    %v3071 = vunpack.c.h.b16 %v2786
    %v3072 = vunpack.c.l.b16 %v2787
    %v3073 = vunpack.c.h.b16 %v2787
    %v3074 = vunpack.c.l.b16 %v2788
    %v3075 = vunpack.c.h.b16 %v2788
    %v3076 = vunpack.c.l.b16 %v2789
    %v3077 = vunpack.c.h.b16 %v2789
    %v3078 = vunpack.c.l.b16 %v2790
    %v3079 = vunpack.c.h.b16 %v2790
    %v3080 = vunpack.c.l.b16 %v2791
    %v3081 = vunpack.c.h.b16 %v2791
    %v3082 = vunpack.c.l.b16 %v2792
    %v3083 = vunpack.c.h.b16 %v2792
    %v3084 = vunpack.c.l.b16 %v2793
    %v3085 = vunpack.c.h.b16 %v2793
    %v3086 = vunpack.c.l.b16 %v2794
    %v3087 = vunpack.c.h.b16 %v2794
    %v3088 = vunpack.c.l.b16 %v2795
    %v3089 = vunpack.c.h.b16 %v2795
    %v3090 = vunpack.c.l.b16 %v2796
    %v3091 = vunpack.c.h.b16 %v2796
    %v3092 = vunpack.c.l.b16 %v2797
    %v3093 = vunpack.c.h.b16 %v2797
    %v3094 = vunpack.c.l.b16 %v2798
    %v3095 = vunpack.c.h.b16 %v2798
    %v3096 = vunpack.c.l.b16 %v2799
    %v3097 = vunpack.c.h.b16 %v2799
    %v3098 = vunpack.c.l.b16 %v2800
    %v3099 = vunpack.c.h.b16 %v2800
    %v3100 = vunpack.c.l.b16 %v2801
    %v3101 = vunpack.c.h.b16 %v2801
    %v3102 = vunpack.c.l.b16 %v2802
    %v3103 = vunpack.c.h.b16 %v2802
    %v3104 = vunpack.c.l.b16 %v2803
    %v3105 = vunpack.c.h.b16 %v2803
    %v3106 = vunpack.c.l.b16 %v2804
    %v3107 = vunpack.c.h.b16 %v2804
    %v3108 = vunpack.c.l.b16 %v2805
    %v3109 = vunpack.c.h.b16 %v2805
    %v3110 = vunpack.c.l.b16 %v2806
    %v3111 = vunpack.c.h.b16 %v2806
    %v3112 = vunpack.c.l.b16 %v2807
    %v3113 = vunpack.c.h.b16 %v2807
    %v3114 = vunpack.c.l.b16 %v2808
    %v3115 = vunpack.c.h.b16 %v2808
    %v3116 = vunpack.c.l.b16 %v2809
    %v3117 = vunpack.c.h.b16 %v2809
    %v3118 = vunpack.c.l.b16 %v2810
    %v3119 = vunpack.c.h.b16 %v2810
    %v3120 = vunpack.c.l.b16 %v2811
    %v3121 = vunpack.c.h.b16 %v2811
    %v3122 = vunpack.c.l.b16 %v2812
    %v3123 = vunpack.c.h.b16 %v2812
    %v3124 = vunpack.c.l.b16 %v2813
    %v3125 = vunpack.c.h.b16 %v2813
    %v3126 = vunpack.c.l.b16 %v2814
    %v3127 = vunpack.c.h.b16 %v2814
    %v3128 = vunpack.c.l.b16 %v2815
    %v3129 = vunpack.c.h.b16 %v2815
    %v3130 = vunpack.c.l.b16 %v2816
    %v3131 = vunpack.c.h.b16 %v2816
    %v3132 = vunpack.c.l.b16 %v2817
    %v3133 = vunpack.c.h.b16 %v2817
    %v3134 = vunpack.c.l.b16 %v2818
    %v3135 = vunpack.c.h.b16 %v2818
    %v3136 = vunpack.c.l.b16 %v2819
    %v3137 = vunpack.c.h.b16 %v2819
    %v3138 = vunpack.c.l.b16 %v2820
    %v3139 = vunpack.c.h.b16 %v2820
    %v3140 = vunpack.c.l.b16 %v2821
    %v3141 = vunpack.c.h.b16 %v2821
    %v3142 = vunpack.c.l.b16 %v2822
    %v3143 = vunpack.c.h.b16 %v2822
    %v3144 = vunpack.c.l.b16 %v2823
    %v3145 = vunpack.c.h.b16 %v2823
    %v3146 = vunpack.c.l.b16 %v2824
    %v3147 = vunpack.c.h.b16 %v2824
    %v3148 = vunpack.c.l.b16 %v2825
    %v3149 = vunpack.c.h.b16 %v2825
    %v3150 = vunpack.c.l.b16 %v2826
    %v3151 = vunpack.c.h.b16 %v2826
    %v3152 = vunpack.c.l.b16 %v2827
    %v3153 = vunpack.c.h.b16 %v2827
    %v3154 = vunpack.c.l.b16 %v2828
    %v3155 = vunpack.c.h.b16 %v2828
    %v3156 = vunpack.c.l.b16 %v2829
    %v3157 = vunpack.c.h.b16 %v2829
    %v3158 = vunpack.c.l.b16 %v2830
    %v3159 = vunpack.c.h.b16 %v2830
    %v3160 = vunpack.c.l.b16 %v2831
    %v3161 = vunpack.c.h.b16 %v2831
    %v3162 = vunpack.c.l.b16 %v2832
    %v3163 = vunpack.c.h.b16 %v2832
    %v3164 = vunpack.c.l.b16 %v2833
    %v3165 = vunpack.c.h.b16 %v2833
    %v3166 = vunpack.c.l.b16 %v2834
    %v3167 = vunpack.c.h.b16 %v2834
    %v3168 = vunpack.c.l.b16 %v2835
    %v3169 = vunpack.c.h.b16 %v2835
    %v3170 = vunpack.c.l.b16 %v2836
    %v3171 = vunpack.c.h.b16 %v2836
    %v3172 = vunpack.c.l.b16 %v2837
    %v3173 = vunpack.c.h.b16 %v2837
    %v3174 = vunpack.c.l.b16 %v2838
    %v3175 = vunpack.c.h.b16 %v2838
    %v3176 = vunpack.c.l.b16 %v2839
    %v3177 = vunpack.c.h.b16 %v2839
    %v3178 = vunpack.c.l.b16 %v2840
    %v3179 = vunpack.c.h.b16 %v2840
    %v3180 = vunpack.c.l.b16 %v2841
    %v3181 = vunpack.c.h.b16 %v2841
    %v3182 = vunpack.c.l.b16 %v2842
    %v3183 = vunpack.c.h.b16 %v2842
    %v3184 = vunpack.c.l.b16 %v2843
    %v3185 = vunpack.c.h.b16 %v2843
    %v3186 = vunpack.c.l.b16 %v2844
    %v3187 = vunpack.c.h.b16 %v2844
    %v3188 = vunpack.c.l.b16 %v2845
    %v3189 = vunpack.c.h.b16 %v2845
    %v3190 = vunpack.c.l.b16 %v2846
    %v3191 = vunpack.c.h.b16 %v2846
    %v3192 = vunpack.c.l.b16 %v2847
    %v3193 = vunpack.c.h.b16 %v2847
    %v3194 = vunpack.c.l.b16 %v2848
    %v3195 = vunpack.c.h.b16 %v2848
    %v3196 = vunpack.c.l.b16 %v2849
    %v3197 = vunpack.c.h.b16 %v2849
    %v3198 = vunpack.c.l.b16 %v2850
    %v3199 = vunpack.c.h.b16 %v2850
    %v3200 = vunpack.c.l.b16 %v2851
    %v3201 = vunpack.c.h.b16 %v2851
    %v3202 = vunpack.c.l.b16 %v2852
    %v3203 = vunpack.c.h.b16 %v2852
    %v3204 = vunpack.c.l.b16 %v2853
    %v3205 = vunpack.c.h.b16 %v2853
    %v3206 = vunpack.c.l.b16 %v2854
    %v3207 = vunpack.c.h.b16 %v2854
    %v3208 = vunpack.c.l.b16 %v2855
    %v3209 = vunpack.c.h.b16 %v2855
    %v3210 = vunpack.c.l.b16 %v2856
    %v3211 = vunpack.c.h.b16 %v2856
    %v3212 = vunpack.c.l.b16 %v2857
    %v3213 = vunpack.c.h.b16 %v2857
    %v3214 = vunpack.c.l.b16 %v2858
    %v3215 = vunpack.c.h.b16 %v2858
    %v3216 = vunpack.c.l.b16 %v2859
    %v3217 = vunpack.c.h.b16 %v2859
    %v3218 = vunpack.c.l.b16 %v2860
    %v3219 = vunpack.c.h.b16 %v2860
    %v3220 = vunpack.c.l.b16 %v2861
    %v3221 = vunpack.c.h.b16 %v2861
    %v3222 = vunpack.c.l.b16 %v2862
    %v3223 = vunpack.c.h.b16 %v2862
    %v3224 = vunpack.c.l.b16 %v2863
    %v3225 = vunpack.c.h.b16 %v2863
    %v3226 = vunpack.c.l.b16 %v2864
    %v3227 = vunpack.c.h.b16 %v2864
    %v3228 = vunpack.c.l.b16 %v2865
    %v3229 = vunpack.c.h.b16 %v2865
    %v3230 = vunpack.c.l.b16 %v2866
    %v3231 = vunpack.c.h.b16 %v2866
    %v3232 = vunpack.c.l.b16 %v2867
    %v3233 = vunpack.c.h.b16 %v2867
    %v3234 = vunpack.c.l.b16 %v2868
    %v3235 = vunpack.c.h.b16 %v2868
    %v3236 = vunpack.c.l.b16 %v2869
    %v3237 = vunpack.c.h.b16 %v2869
    %v3238 = vunpack.c.l.b16 %v2870
    %v3239 = vunpack.c.h.b16 %v2870
    %v3240 = vunpack.c.l.b16 %v2871
    %v3241 = vunpack.c.h.b16 %v2871
    %v3242 = vunpack.c.l.b16 %v2872
    %v3243 = vunpack.c.h.b16 %v2872
    %v3244 = vunpack.c.l.b16 %v2873
    %v3245 = vunpack.c.h.b16 %v2873
    %v3246 = vunpack.c.l.b16 %v2874
    %v3247 = vunpack.c.h.b16 %v2874
    %v3248 = vunpack.c.l.b16 %v2875
    %v3249 = vunpack.c.h.b16 %v2875
    %v3250 = vunpack.c.l.b16 %v2876
    %v3251 = vunpack.c.h.b16 %v2876
    %v3252 = vunpack.c.l.b16 %v2877
    %v3253 = vunpack.c.h.b16 %v2877
    %v3254 = vunpack.c.l.b16 %v2878
    %v3255 = vunpack.c.h.b16 %v2878
    %v3256 = vunpack.c.l.b16 %v2879
    %v3257 = vunpack.c.h.b16 %v2879
    %v3258 = vunpack.c.l.b16 %v2880
    %v3259 = vunpack.c.h.b16 %v2880
    %v3260 = vunpack.c.l.b16 %v2881
    %v3261 = vunpack.c.h.b16 %v2881
    %v3262 = vunpack.c.l.b16 %v2882
    %v3263 = vunpack.c.h.b16 %v2882
    %v3264 = vunpack.c.l.b16 %v2883
    %v3265 = vunpack.c.h.b16 %v2883
    %v3266 = vunpack.c.l.b16 %v2884
    %v3267 = vunpack.c.h.b16 %v2884
    %v3268 = vunpack.c.l.b16 %v2885
    %v3269 = vunpack.c.h.b16 %v2885
    %v3270 = vunpack.c.l.b16 %v2886
    %v3271 = vunpack.c.h.b16 %v2886
    %v3272 = vunpack.c.l.b16 %v2887
    %v3273 = vunpack.c.h.b16 %v2887
    %v3274 = vunpack.c.l.b16 %v2888
    %v3275 = vunpack.c.h.b16 %v2888
    %v3276 = vunpack.c.l.b16 %v2889
    %v3277 = vunpack.c.h.b16 %v2889
    %v3278 = vunpack.c.l.b16 %v2890
    %v3279 = vunpack.c.h.b16 %v2890
    %v3280 = vunpack.c.l.b16 %v2891
    %v3281 = vunpack.c.h.b16 %v2891
    %v3282 = vunpack.c.l.b16 %v2892
    %v3283 = vunpack.c.h.b16 %v2892
    %v3284 = vunpack.c.l.b16 %v2893
    %v3285 = vunpack.c.h.b16 %v2893
    %v3286 = vunpack.c.l.b16 %v2894
    %v3287 = vunpack.c.h.b16 %v2894
    %v3288 = vunpack.c.l.b16 %v2895
    %v3289 = vunpack.c.h.b16 %v2895
    %v3290 = vpack.c.b16 %v3038, %v3034
    %v3291 = vpack.c.b16 %v3039, %v3035
    %v3292 = vpack.c.b16 %v3040, %v3036
    %v3293 = vpack.c.b16 %v3041, %v3037
    %v3294 = vpack.c.b16 %v3046, %v3042
    %v3295 = vpack.c.b16 %v3047, %v3043
    %v3296 = vpack.c.b16 %v3048, %v3044
    %v3297 = vpack.c.b16 %v3049, %v3045
    %v3298 = vpack.c.b16 %v3054, %v3050
    %v3299 = vpack.c.b16 %v3055, %v3051
    %v3300 = vpack.c.b16 %v3056, %v3052
    %v3301 = vpack.c.b16 %v3057, %v3053
    %v3302 = vpack.c.b16 %v3062, %v3058
    %v3303 = vpack.c.b16 %v3063, %v3059
    %v3304 = vpack.c.b16 %v3064, %v3060
    %v3305 = vpack.c.b16 %v3065, %v3061
    %v3306 = vpack.c.b16 %v3070, %v3066
    %v3307 = vpack.c.b16 %v3071, %v3067
    %v3308 = vpack.c.b16 %v3072, %v3068
    %v3309 = vpack.c.b16 %v3073, %v3069
    %v3310 = vpack.c.b16 %v3078, %v3074
    %v3311 = vpack.c.b16 %v3079, %v3075
    %v3312 = vpack.c.b16 %v3080, %v3076
    %v3313 = vpack.c.b16 %v3081, %v3077
    %v3314 = vpack.c.b16 %v3086, %v3082
    %v3315 = vpack.c.b16 %v3087, %v3083
    %v3316 = vpack.c.b16 %v3088, %v3084
    %v3317 = vpack.c.b16 %v3089, %v3085
    %v3318 = vpack.c.b16 %v3094, %v3090
    %v3319 = vpack.c.b16 %v3095, %v3091
    %v3320 = vpack.c.b16 %v3096, %v3092
    %v3321 = vpack.c.b16 %v3097, %v3093
    %v3322 = vpack.c.b16 %v3102, %v3098
    %v3323 = vpack.c.b16 %v3103, %v3099
    %v3324 = vpack.c.b16 %v3104, %v3100
    %v3325 = vpack.c.b16 %v3105, %v3101
    %v3326 = vpack.c.b16 %v3110, %v3106
    %v3327 = vpack.c.b16 %v3111, %v3107
    %v3328 = vpack.c.b16 %v3112, %v3108
    %v3329 = vpack.c.b16 %v3113, %v3109
    %v3330 = vpack.c.b16 %v3118, %v3114
    %v3331 = vpack.c.b16 %v3119, %v3115
    %v3332 = vpack.c.b16 %v3120, %v3116
    %v3333 = vpack.c.b16 %v3121, %v3117
    %v3334 = vpack.c.b16 %v3126, %v3122
    %v3335 = vpack.c.b16 %v3127, %v3123
    %v3336 = vpack.c.b16 %v3128, %v3124
    %v3337 = vpack.c.b16 %v3129, %v3125
    %v3338 = vpack.c.b16 %v3134, %v3130
    %v3339 = vpack.c.b16 %v3135, %v3131
    %v3340 = vpack.c.b16 %v3136, %v3132
    %v3341 = vpack.c.b16 %v3137, %v3133
    %v3342 = vpack.c.b16 %v3142, %v3138
    %v3343 = vpack.c.b16 %v3143, %v3139
    %v3344 = vpack.c.b16 %v3144, %v3140
    %v3345 = vpack.c.b16 %v3145, %v3141
    %v3346 = vpack.c.b16 %v3150, %v3146
    %v3347 = vpack.c.b16 %v3151, %v3147
    %v3348 = vpack.c.b16 %v3152, %v3148
    %v3349 = vpack.c.b16 %v3153, %v3149
    %v3350 = vpack.c.b16 %v3158, %v3154
    %v3351 = vpack.c.b16 %v3159, %v3155
    %v3352 = vpack.c.b16 %v3160, %v3156
    %v3353 = vpack.c.b16 %v3161, %v3157
    %v3354 = vpack.c.b16 %v3166, %v3162
    %v3355 = vpack.c.b16 %v3167, %v3163
    %v3356 = vpack.c.b16 %v3168, %v3164
    %v3357 = vpack.c.b16 %v3169, %v3165
    %v3358 = vpack.c.b16 %v3174, %v3170
    %v3359 = vpack.c.b16 %v3175, %v3171
    %v3360 = vpack.c.b16 %v3176, %v3172
    %v3361 = vpack.c.b16 %v3177, %v3173
    %v3362 = vpack.c.b16 %v3182, %v3178
    %v3363 = vpack.c.b16 %v3183, %v3179
    %v3364 = vpack.c.b16 %v3184, %v3180
    %v3365 = vpack.c.b16 %v3185, %v3181
    %v3366 = vpack.c.b16 %v3190, %v3186
    %v3367 = vpack.c.b16 %v3191, %v3187
    %v3368 = vpack.c.b16 %v3192, %v3188
    %v3369 = vpack.c.b16 %v3193, %v3189
    %v3370 = vpack.c.b16 %v3198, %v3194
    %v3371 = vpack.c.b16 %v3199, %v3195
    %v3372 = vpack.c.b16 %v3200, %v3196
    %v3373 = vpack.c.b16 %v3201, %v3197
    %v3374 = vpack.c.b16 %v3206, %v3202
    %v3375 = vpack.c.b16 %v3207, %v3203
    %v3376 = vpack.c.b16 %v3208, %v3204
    %v3377 = vpack.c.b16 %v3209, %v3205
    %v3378 = vpack.c.b16 %v3214, %v3210
    %v3379 = vpack.c.b16 %v3215, %v3211
    %v3380 = vpack.c.b16 %v3216, %v3212
    %v3381 = vpack.c.b16 %v3217, %v3213
    %v3382 = vpack.c.b16 %v3222, %v3218
    %v3383 = vpack.c.b16 %v3223, %v3219
    %v3384 = vpack.c.b16 %v3224, %v3220
    %v3385 = vpack.c.b16 %v3225, %v3221
    %v3386 = vpack.c.b16 %v3230, %v3226
    %v3387 = vpack.c.b16 %v3231, %v3227
    %v3388 = vpack.c.b16 %v3232, %v3228
    %v3389 = vpack.c.b16 %v3233, %v3229
    %v3390 = vpack.c.b16 %v3238, %v3234
    %v3391 = vpack.c.b16 %v3239, %v3235
    %v3392 = vpack.c.b16 %v3240, %v3236
    %v3393 = vpack.c.b16 %v3241, %v3237
    %v3394 = vpack.c.b16 %v3246, %v3242
    %v3395 = vpack.c.b16 %v3247, %v3243
    %v3396 = vpack.c.b16 %v3248, %v3244
    %v3397 = vpack.c.b16 %v3249, %v3245
    %v3398 = vpack.c.b16 %v3254, %v3250
    %v3399 = vpack.c.b16 %v3255, %v3251
    %v3400 = vpack.c.b16 %v3256, %v3252
    %v3401 = vpack.c.b16 %v3257, %v3253
    %v3402 = vpack.c.b16 %v3262, %v3258
    %v3403 = vpack.c.b16 %v3263, %v3259
    %v3404 = vpack.c.b16 %v3264, %v3260
    %v3405 = vpack.c.b16 %v3265, %v3261
    %v3406 = vpack.c.b16 %v3270, %v3266
    %v3407 = vpack.c.b16 %v3271, %v3267
    %v3408 = vpack.c.b16 %v3272, %v3268
    %v3409 = vpack.c.b16 %v3273, %v3269
    %v3410 = vpack.c.b16 %v3278, %v3274
    %v3411 = vpack.c.b16 %v3279, %v3275
    %v3412 = vpack.c.b16 %v3280, %v3276
    %v3413 = vpack.c.b16 %v3281, %v3277
    %v3414 = vpack.c.b16 %v3286, %v3282
    %v3415 = vpack.c.b16 %v3287, %v3283
    %v3416 = vpack.c.b16 %v3288, %v3284
    %v3417 = vpack.c.b16 %v3289, %v3285
    %3546 = vmatpush.bf16.msra.mxu0 %v3318
    %3547 = vmatpush.bf16.msra.mxu0 %v3314
    %3548 = vmatpush.bf16.msra.mxu0 %v3310
    %3549 = vmatpush.bf16.msra.mxu0 %v3306
    %3550 = vmatpush.bf16.msra.mxu0 %v3302
    %3551 = vmatpush.bf16.msra.mxu0 %v3298
    %3552 = vmatpush.bf16.msra.mxu0 %v3294
    %3553 = vmatpush.bf16.msra.mxu0 %v3290
    %3554 = vmatmul.bf16.gmra.mxu0 %v2764
    %v3555 = vpop.f32.mrf.mxu0
    %v3556 = vadd.f32 %v2898, %v3555
    %v3557 = vpop.f32.mrf.mxu0
    %v3558 = vadd.f32 %v2898, %v3557
    %3559 = vdwg.mxu0
    %3560 = vmatpush.bf16.msra.mxu0 %v3350
    %3561 = vmatpush.bf16.msra.mxu0 %v3346
    %3562 = vmatpush.bf16.msra.mxu0 %v3342
    %3563 = vmatpush.bf16.msra.mxu0 %v3338
    %3564 = vmatpush.bf16.msra.mxu0 %v3334
    %3565 = vmatpush.bf16.msra.mxu0 %v3330
    %3566 = vmatpush.bf16.msra.mxu0 %v3326
    %3567 = vmatpush.bf16.msra.mxu0 %v3322
    %3568 = vmatmul.bf16.gmra.mxu0 %v2765
    %v3569 = vpop.f32.mrf.mxu0
    %v3570 = vadd.f32 %v3556, %v3569
    %v3571 = vpop.f32.mrf.mxu0
    %v3572 = vadd.f32 %v3558, %v3571
    %3573 = vdwg.mxu0
    %3574 = vmatpush.bf16.msra.mxu0 %v3382
    %3575 = vmatpush.bf16.msra.mxu0 %v3378
    %3576 = vmatpush.bf16.msra.mxu0 %v3374
    %3577 = vmatpush.bf16.msra.mxu0 %v3370
    %3578 = vmatpush.bf16.msra.mxu0 %v3366
    %3579 = vmatpush.bf16.msra.mxu0 %v3362
    %3580 = vmatpush.bf16.msra.mxu0 %v3358
    %3581 = vmatpush.bf16.msra.mxu0 %v3354
    %3582 = vmatmul.bf16.gmra.mxu0 %v2766
    %v3583 = vpop.f32.mrf.mxu0
    %v3584 = vadd.f32 %v3570, %v3583
    %v3585 = vpop.f32.mrf.mxu0
    %v3586 = vadd.f32 %v3572, %v3585
    %3587 = vdwg.mxu0
    %3588 = vmatpush.bf16.msra.mxu0 %v3414
    %3589 = vmatpush.bf16.msra.mxu0 %v3410
    %3590 = vmatpush.bf16.msra.mxu0 %v3406
    %3591 = vmatpush.bf16.msra.mxu0 %v3402
    %3592 = vmatpush.bf16.msra.mxu0 %v3398
    %3593 = vmatpush.bf16.msra.mxu0 %v3394
    %3594 = vmatpush.bf16.msra.mxu0 %v3390
    %3595 = vmatpush.bf16.msra.mxu0 %v3386
    %3596 = vmatmul.bf16.gmra.mxu0 %v2767
    %v3597 = vpop.f32.mrf.mxu0
    %v3598 = vadd.f32 %v3584, %v3597
    %v3599 = vpop.f32.mrf.mxu0
    %v3600 = vadd.f32 %v3586, %v3599
    %3601 = vdwg.mxu0
    %3602 = vmatpush.bf16.msra.mxu0 %v3319
    %3603 = vmatpush.bf16.msra.mxu0 %v3315
    %3604 = vmatpush.bf16.msra.mxu0 %v3311
    %3605 = vmatpush.bf16.msra.mxu0 %v3307
    %3606 = vmatpush.bf16.msra.mxu0 %v3303
    %3607 = vmatpush.bf16.msra.mxu0 %v3299
    %3608 = vmatpush.bf16.msra.mxu0 %v3295
    %3609 = vmatpush.bf16.msra.mxu0 %v3291
    %3610 = vmatmul.bf16.gmra.mxu0 %v2764
    %v3611 = vpop.f32.mrf.mxu0
    %v3612 = vadd.f32 %v2899, %v3611
    %v3613 = vpop.f32.mrf.mxu0
    %v3614 = vadd.f32 %v2899, %v3613
    %3615 = vdwg.mxu0
    %3616 = vmatpush.bf16.msra.mxu0 %v3351
    %3617 = vmatpush.bf16.msra.mxu0 %v3347
    %3618 = vmatpush.bf16.msra.mxu0 %v3343
    %3619 = vmatpush.bf16.msra.mxu0 %v3339
    %3620 = vmatpush.bf16.msra.mxu0 %v3335
    %3621 = vmatpush.bf16.msra.mxu0 %v3331
    %3622 = vmatpush.bf16.msra.mxu0 %v3327
    %3623 = vmatpush.bf16.msra.mxu0 %v3323
    %3624 = vmatmul.bf16.gmra.mxu0 %v2765
    %v3625 = vpop.f32.mrf.mxu0
    %v3626 = vadd.f32 %v3612, %v3625
    %v3627 = vpop.f32.mrf.mxu0
    %v3628 = vadd.f32 %v3614, %v3627
    %3629 = vdwg.mxu0
    %3630 = vmatpush.bf16.msra.mxu0 %v3383
    %3631 = vmatpush.bf16.msra.mxu0 %v3379
    %3632 = vmatpush.bf16.msra.mxu0 %v3375
    %3633 = vmatpush.bf16.msra.mxu0 %v3371
    %3634 = vmatpush.bf16.msra.mxu0 %v3367
    %3635 = vmatpush.bf16.msra.mxu0 %v3363
    %3636 = vmatpush.bf16.msra.mxu0 %v3359
    %3637 = vmatpush.bf16.msra.mxu0 %v3355
    %3638 = vmatmul.bf16.gmra.mxu0 %v2766
    %v3639 = vpop.f32.mrf.mxu0
    %v3640 = vadd.f32 %v3626, %v3639
    %v3641 = vpop.f32.mrf.mxu0
    %v3642 = vadd.f32 %v3628, %v3641
    %3643 = vdwg.mxu0
    %3644 = vmatpush.bf16.msra.mxu0 %v3415
    %3645 = vmatpush.bf16.msra.mxu0 %v3411
    %3646 = vmatpush.bf16.msra.mxu0 %v3407
    %3647 = vmatpush.bf16.msra.mxu0 %v3403
    %3648 = vmatpush.bf16.msra.mxu0 %v3399
    %3649 = vmatpush.bf16.msra.mxu0 %v3395
    %3650 = vmatpush.bf16.msra.mxu0 %v3391
    %3651 = vmatpush.bf16.msra.mxu0 %v3387
    %3652 = vmatmul.bf16.gmra.mxu0 %v2767
    %v3653 = vpop.f32.mrf.mxu0
    %v3654 = vadd.f32 %v3640, %v3653
    %v3655 = vpop.f32.mrf.mxu0
    %v3656 = vadd.f32 %v3642, %v3655
    %3657 = vdwg.mxu0
    %3658 = vmatpush.bf16.msra.mxu0 %v3320
    %3659 = vmatpush.bf16.msra.mxu0 %v3316
    %3660 = vmatpush.bf16.msra.mxu0 %v3312
    %3661 = vmatpush.bf16.msra.mxu0 %v3308
    %3662 = vmatpush.bf16.msra.mxu0 %v3304
    %3663 = vmatpush.bf16.msra.mxu0 %v3300
    %3664 = vmatpush.bf16.msra.mxu0 %v3296
    %3665 = vmatpush.bf16.msra.mxu0 %v3292
    %3666 = vmatmul.bf16.gmra.mxu0 %v2764
    %v3667 = vpop.f32.mrf.mxu0
    %v3668 = vadd.f32 %v2900, %v3667
    %v3669 = vpop.f32.mrf.mxu0
    %v3670 = vadd.f32 %v2900, %v3669
    %3671 = vdwg.mxu0
    %3672 = vmatpush.bf16.msra.mxu0 %v3352
    %3673 = vmatpush.bf16.msra.mxu0 %v3348
    %3674 = vmatpush.bf16.msra.mxu0 %v3344
    %3675 = vmatpush.bf16.msra.mxu0 %v3340
    %3676 = vmatpush.bf16.msra.mxu0 %v3336
    %3677 = vmatpush.bf16.msra.mxu0 %v3332
    %3678 = vmatpush.bf16.msra.mxu0 %v3328
    %3679 = vmatpush.bf16.msra.mxu0 %v3324
    %3680 = vmatmul.bf16.gmra.mxu0 %v2765
    %v3681 = vpop.f32.mrf.mxu0
    %v3682 = vadd.f32 %v3668, %v3681
    %v3683 = vpop.f32.mrf.mxu0
    %v3684 = vadd.f32 %v3670, %v3683
    %3685 = vdwg.mxu0
    %3686 = vmatpush.bf16.msra.mxu0 %v3384
    %3687 = vmatpush.bf16.msra.mxu0 %v3380
    %3688 = vmatpush.bf16.msra.mxu0 %v3376
    %3689 = vmatpush.bf16.msra.mxu0 %v3372
    %3690 = vmatpush.bf16.msra.mxu0 %v3368
    %3691 = vmatpush.bf16.msra.mxu0 %v3364
    %3692 = vmatpush.bf16.msra.mxu0 %v3360
    %3693 = vmatpush.bf16.msra.mxu0 %v3356
    %3694 = vmatmul.bf16.gmra.mxu0 %v2766
    %v3695 = vpop.f32.mrf.mxu0
    %v3696 = vadd.f32 %v3682, %v3695
    %v3697 = vpop.f32.mrf.mxu0
    %v3698 = vadd.f32 %v3684, %v3697
    %3699 = vdwg.mxu0
    %3700 = vmatpush.bf16.msra.mxu0 %v3416
    %3701 = vmatpush.bf16.msra.mxu0 %v3412
    %3702 = vmatpush.bf16.msra.mxu0 %v3408
    %3703 = vmatpush.bf16.msra.mxu0 %v3404
    %3704 = vmatpush.bf16.msra.mxu0 %v3400
    %3705 = vmatpush.bf16.msra.mxu0 %v3396
    %3706 = vmatpush.bf16.msra.mxu0 %v3392
    %3707 = vmatpush.bf16.msra.mxu0 %v3388
    %3708 = vmatmul.bf16.gmra.mxu0 %v2767
    %v3709 = vpop.f32.mrf.mxu0
    %v3710 = vadd.f32 %v3696, %v3709
    %v3711 = vpop.f32.mrf.mxu0
    %v3712 = vadd.f32 %v3698, %v3711
    %3713 = vdwg.mxu0
    %3714 = vmatpush.bf16.msra.mxu0 %v3321
    %3715 = vmatpush.bf16.msra.mxu0 %v3317
    %3716 = vmatpush.bf16.msra.mxu0 %v3313
    %3717 = vmatpush.bf16.msra.mxu0 %v3309
    %3718 = vmatpush.bf16.msra.mxu0 %v3305
    %3719 = vmatpush.bf16.msra.mxu0 %v3301
    %3720 = vmatpush.bf16.msra.mxu0 %v3297
    %3721 = vmatpush.bf16.msra.mxu0 %v3293
    %3722 = vmatmul.bf16.gmra.mxu0 %v2764
    %v3723 = vpop.f32.mrf.mxu0
    %v3724 = vadd.f32 %v2901, %v3723
    %v3725 = vpop.f32.mrf.mxu0
    %v3726 = vadd.f32 %v2901, %v3725
    %3727 = vdwg.mxu0
    %3728 = vmatpush.bf16.msra.mxu0 %v3353
    %3729 = vmatpush.bf16.msra.mxu0 %v3349
    %3730 = vmatpush.bf16.msra.mxu0 %v3345
    %3731 = vmatpush.bf16.msra.mxu0 %v3341
    %3732 = vmatpush.bf16.msra.mxu0 %v3337
    %3733 = vmatpush.bf16.msra.mxu0 %v3333
    %3734 = vmatpush.bf16.msra.mxu0 %v3329
    %3735 = vmatpush.bf16.msra.mxu0 %v3325
    %3736 = vmatmul.bf16.gmra.mxu0 %v2765
    %v3737 = vpop.f32.mrf.mxu0
    %v3738 = vadd.f32 %v3724, %v3737
    %v3739 = vpop.f32.mrf.mxu0
    %v3740 = vadd.f32 %v3726, %v3739
    %3741 = vdwg.mxu0
    %3742 = vmatpush.bf16.msra.mxu0 %v3385
    %3743 = vmatpush.bf16.msra.mxu0 %v3381
    %3744 = vmatpush.bf16.msra.mxu0 %v3377
    %3745 = vmatpush.bf16.msra.mxu0 %v3373
    %3746 = vmatpush.bf16.msra.mxu0 %v3369
    %3747 = vmatpush.bf16.msra.mxu0 %v3365
    %3748 = vmatpush.bf16.msra.mxu0 %v3361
    %3749 = vmatpush.bf16.msra.mxu0 %v3357
    %3750 = vmatmul.bf16.gmra.mxu0 %v2766
    %v3751 = vpop.f32.mrf.mxu0
    %v3752 = vadd.f32 %v3738, %v3751
    %v3753 = vpop.f32.mrf.mxu0
    %v3754 = vadd.f32 %v3740, %v3753
    %3755 = vdwg.mxu0
    %3756 = vmatpush.bf16.msra.mxu0 %v3417
    %3757 = vmatpush.bf16.msra.mxu0 %v3413
    %3758 = vmatpush.bf16.msra.mxu0 %v3409
    %3759 = vmatpush.bf16.msra.mxu0 %v3405
    %3760 = vmatpush.bf16.msra.mxu0 %v3401
    %3761 = vmatpush.bf16.msra.mxu0 %v3397
    %3762 = vmatpush.bf16.msra.mxu0 %v3393
    %3763 = vmatpush.bf16.msra.mxu0 %v3389
    %3764 = vmatmul.bf16.gmra.mxu0 %v2767
    %v3765 = vpop.f32.mrf.mxu0
    %v3766 = vadd.f32 %v3752, %v3765
    %v3767 = vpop.f32.mrf.mxu0
    %v3768 = vadd.f32 %v3754, %v3767
    %3769 = vdwg.mxu0
    %v3770 = vmax.f32 %v3598, 0.0
    %v3771 = vmax.f32 %v3654, 0.0
    %v3772 = vmax.f32 %v3710, 0.0
    %v3773 = vmax.f32 %v3766, 0.0
    %v3774 = vmax.f32 %v3600, 0.0
    %v3775 = vmax.f32 %v3656, 0.0
    %v3776 = vmax.f32 %v3712, 0.0
    %v3777 = vmax.f32 %v3768, 0.0
    %v3778 = vpack.c.bf16 %v3774, %v3770
    %v3779 = vpack.c.bf16 %v3775, %v3771
    %v3780 = vpack.c.bf16 %v3776, %v3772
    %v3781 = vpack.c.bf16 %v3777, %v3773
    %v3782 = vld [vmem:[#allocation13] sm:$0xf]
    %v3783 = vld [vmem:[#allocation13 + $0x4] sm:$0xf]
    %v3784 = vld [vmem:[#allocation13 + $0x8] sm:$0xf]
    %v3785 = vld [vmem:[#allocation13 + $0xc] sm:$0xf]
    %v3786 = vld [vmem:[#allocation13 + $0x10] sm:$0xf]
    %v3787 = vld [vmem:[#allocation13 + $0x14] sm:$0xf]
    %v3788 = vld [vmem:[#allocation13 + $0x18] sm:$0xf]
    %v3789 = vld [vmem:[#allocation13 + $0x1c] sm:$0xf]
    %v3790 = vld [vmem:[#allocation13 + $0x20] sm:$0xf]
    %v3791 = vld [vmem:[#allocation13 + $0x24] sm:$0xf]
    %v3792 = vld [vmem:[#allocation13 + $0x28] sm:$0xf]
    %v3793 = vld [vmem:[#allocation13 + $0x2c] sm:$0xf]
    %v3794 = vld [vmem:[#allocation13 + $0x30] sm:$0xf]
    %v3795 = vld [vmem:[#allocation13 + $0x34] sm:$0xf]
    %v3796 = vld [vmem:[#allocation13 + $0x38] sm:$0xf]
    %v3797 = vld [vmem:[#allocation13 + $0x3c] sm:$0xf]
    %v3798 = vld [vmem:[#allocation13 + $0x40] sm:$0xf]
    %v3799 = vld [vmem:[#allocation13 + $0x44] sm:$0xf]
    %v3800 = vld [vmem:[#allocation13 + $0x48] sm:$0xf]
    %v3801 = vld [vmem:[#allocation13 + $0x4c] sm:$0xf]
    %v3802 = vld [vmem:[#allocation13 + $0x50] sm:$0xf]
    %v3803 = vld [vmem:[#allocation13 + $0x54] sm:$0xf]
    %v3804 = vld [vmem:[#allocation13 + $0x58] sm:$0xf]
    %v3805 = vld [vmem:[#allocation13 + $0x5c] sm:$0xf]
    %v3806 = vld [vmem:[#allocation13 + $0x60] sm:$0xf]
    %v3807 = vld [vmem:[#allocation13 + $0x64] sm:$0xf]
    %v3808 = vld [vmem:[#allocation13 + $0x68] sm:$0xf]
    %v3809 = vld [vmem:[#allocation13 + $0x6c] sm:$0xf]
    %v3810 = vld [vmem:[#allocation13 + $0x70] sm:$0xf]
    %v3811 = vld [vmem:[#allocation13 + $0x74] sm:$0xf]
    %v3812 = vld [vmem:[#allocation13 + $0x78] sm:$0xf]
    %v3813 = vld [vmem:[#allocation13 + $0x7c] sm:$0xf]
    %v3814 = vld [vmem:[#allocation13 + $0x80] sm:$0xf]
    %v3815 = vld [vmem:[#allocation13 + $0x84] sm:$0xf]
    %v3816 = vld [vmem:[#allocation13 + $0x88] sm:$0xf]
    %v3817 = vld [vmem:[#allocation13 + $0x8c] sm:$0xf]
    %v3818 = vld [vmem:[#allocation13 + $0x90] sm:$0xf]
    %v3819 = vld [vmem:[#allocation13 + $0x94] sm:$0xf]
    %v3820 = vld [vmem:[#allocation13 + $0x98] sm:$0xf]
    %v3821 = vld [vmem:[#allocation13 + $0x9c] sm:$0xf]
    %v3822 = vld [vmem:[#allocation13 + $0xa0] sm:$0xf]
    %v3823 = vld [vmem:[#allocation13 + $0xa4] sm:$0xf]
    %v3824 = vld [vmem:[#allocation13 + $0xa8] sm:$0xf]
    %v3825 = vld [vmem:[#allocation13 + $0xac] sm:$0xf]
    %v3826 = vld [vmem:[#allocation13 + $0xb0] sm:$0xf]
    %v3827 = vld [vmem:[#allocation13 + $0xb4] sm:$0xf]
    %v3828 = vld [vmem:[#allocation13 + $0xb8] sm:$0xf]
    %v3829 = vld [vmem:[#allocation13 + $0xbc] sm:$0xf]
    %v3830 = vld [vmem:[#allocation13 + $0xc0] sm:$0xf]
    %v3831 = vld [vmem:[#allocation13 + $0xc4] sm:$0xf]
    %v3832 = vld [vmem:[#allocation13 + $0xc8] sm:$0xf]
    %v3833 = vld [vmem:[#allocation13 + $0xcc] sm:$0xf]
    %v3834 = vld [vmem:[#allocation13 + $0xd0] sm:$0xf]
    %v3835 = vld [vmem:[#allocation13 + $0xd4] sm:$0xf]
    %v3836 = vld [vmem:[#allocation13 + $0xd8] sm:$0xf]
    %v3837 = vld [vmem:[#allocation13 + $0xdc] sm:$0xf]
    %v3838 = vld [vmem:[#allocation13 + $0xe0] sm:$0xf]
    %v3839 = vld [vmem:[#allocation13 + $0xe4] sm:$0xf]
    %v3840 = vld [vmem:[#allocation13 + $0xe8] sm:$0xf]
    %v3841 = vld [vmem:[#allocation13 + $0xec] sm:$0xf]
    %v3842 = vld [vmem:[#allocation13 + $0xf0] sm:$0xf]
    %v3843 = vld [vmem:[#allocation13 + $0xf4] sm:$0xf]
    %v3844 = vld [vmem:[#allocation13 + $0xf8] sm:$0xf]
    %v3845 = vld [vmem:[#allocation13 + $0xfc] sm:$0xf]
    %v3846 = vld [vmem:[%s8] sm:$0x1]
    %v3848 = vperm.slane %v3846, 0
    %v3914 = vunpack.c.l.b16 %v3782
    %v3915 = vunpack.c.l.b16 %v3783
    %v3916 = vunpack.c.l.b16 %v3784
    %v3917 = vunpack.c.l.b16 %v3785
    %v3918 = vunpack.c.l.b16 %v3786
    %v3919 = vunpack.c.l.b16 %v3787
    %v3920 = vunpack.c.l.b16 %v3788
    %v3921 = vunpack.c.l.b16 %v3789
    %v3922 = vunpack.c.l.b16 %v3790
    %v3923 = vunpack.c.l.b16 %v3791
    %v3924 = vunpack.c.l.b16 %v3792
    %v3925 = vunpack.c.l.b16 %v3793
    %v3926 = vunpack.c.l.b16 %v3794
    %v3927 = vunpack.c.l.b16 %v3795
    %v3928 = vunpack.c.l.b16 %v3796
    %v3929 = vunpack.c.l.b16 %v3797
    %v3930 = vunpack.c.l.b16 %v3798
    %v3931 = vunpack.c.l.b16 %v3799
    %v3932 = vunpack.c.l.b16 %v3800
    %v3933 = vunpack.c.l.b16 %v3801
    %v3934 = vunpack.c.l.b16 %v3802
    %v3935 = vunpack.c.l.b16 %v3803
    %v3936 = vunpack.c.l.b16 %v3804
    %v3937 = vunpack.c.l.b16 %v3805
    %v3938 = vunpack.c.l.b16 %v3806
    %v3939 = vunpack.c.l.b16 %v3807
    %v3940 = vunpack.c.l.b16 %v3808
    %v3941 = vunpack.c.l.b16 %v3809
    %v3942 = vunpack.c.l.b16 %v3810
    %v3943 = vunpack.c.l.b16 %v3811
    %v3944 = vunpack.c.l.b16 %v3812
    %v3945 = vunpack.c.l.b16 %v3813
    %v3946 = vunpack.c.l.b16 %v3814
    %v3947 = vunpack.c.l.b16 %v3815
    %v3948 = vunpack.c.l.b16 %v3816
    %v3949 = vunpack.c.l.b16 %v3817
    %v3950 = vunpack.c.l.b16 %v3818
    %v3951 = vunpack.c.l.b16 %v3819
    %v3952 = vunpack.c.l.b16 %v3820
    %v3953 = vunpack.c.l.b16 %v3821
    %v3954 = vunpack.c.l.b16 %v3822
    %v3955 = vunpack.c.l.b16 %v3823
    %v3956 = vunpack.c.l.b16 %v3824
    %v3957 = vunpack.c.l.b16 %v3825
    %v3958 = vunpack.c.l.b16 %v3826
    %v3959 = vunpack.c.l.b16 %v3827
    %v3960 = vunpack.c.l.b16 %v3828
    %v3961 = vunpack.c.l.b16 %v3829
    %v3962 = vunpack.c.l.b16 %v3830
    %v3963 = vunpack.c.l.b16 %v3831
    %v3964 = vunpack.c.l.b16 %v3832
    %v3965 = vunpack.c.l.b16 %v3833
    %v3966 = vunpack.c.l.b16 %v3834
    %v3967 = vunpack.c.l.b16 %v3835
    %v3968 = vunpack.c.l.b16 %v3836
    %v3969 = vunpack.c.l.b16 %v3837
    %v3970 = vunpack.c.l.b16 %v3838
    %v3971 = vunpack.c.l.b16 %v3839
    %v3972 = vunpack.c.l.b16 %v3840
    %v3973 = vunpack.c.l.b16 %v3841
    %v3974 = vunpack.c.l.b16 %v3842
    %v3975 = vunpack.c.l.b16 %v3843
    %v3976 = vunpack.c.l.b16 %v3844
    %v3977 = vunpack.c.l.b16 %v3845
    %v3978 = vpack.c.b16 %v3915, %v3914
    %v3979 = vpack.c.b16 %v3917, %v3916
    %v3980 = vpack.c.b16 %v3919, %v3918
    %v3981 = vpack.c.b16 %v3921, %v3920
    %v3982 = vpack.c.b16 %v3923, %v3922
    %v3983 = vpack.c.b16 %v3925, %v3924
    %v3984 = vpack.c.b16 %v3927, %v3926
    %v3985 = vpack.c.b16 %v3929, %v3928
    %v3986 = vpack.c.b16 %v3931, %v3930
    %v3987 = vpack.c.b16 %v3933, %v3932
    %v3988 = vpack.c.b16 %v3935, %v3934
    %v3989 = vpack.c.b16 %v3937, %v3936
    %v3990 = vpack.c.b16 %v3939, %v3938
    %v3991 = vpack.c.b16 %v3941, %v3940
    %v3992 = vpack.c.b16 %v3943, %v3942
    %v3993 = vpack.c.b16 %v3945, %v3944
    %v3994 = vpack.c.b16 %v3947, %v3946
    %v3995 = vpack.c.b16 %v3949, %v3948
    %v3996 = vpack.c.b16 %v3951, %v3950
    %v3997 = vpack.c.b16 %v3953, %v3952
    %v3998 = vpack.c.b16 %v3955, %v3954
    %v3999 = vpack.c.b16 %v3957, %v3956
    %v4000 = vpack.c.b16 %v3959, %v3958
    %v4001 = vpack.c.b16 %v3961, %v3960
    %v4002 = vpack.c.b16 %v3963, %v3962
    %v4003 = vpack.c.b16 %v3965, %v3964
    %v4004 = vpack.c.b16 %v3967, %v3966
    %v4005 = vpack.c.b16 %v3969, %v3968
    %v4006 = vpack.c.b16 %v3971, %v3970
    %v4007 = vpack.c.b16 %v3973, %v3972
    %v4008 = vpack.c.b16 %v3975, %v3974
    %v4009 = vpack.c.b16 %v3977, %v3976
    %4042 = vmatpush.bf16.msra.mxu0 %v3985
    %4043 = vmatpush.bf16.msra.mxu0 %v3984
    %4044 = vmatpush.bf16.msra.mxu0 %v3983
    %4045 = vmatpush.bf16.msra.mxu0 %v3982
    %4046 = vmatpush.bf16.msra.mxu0 %v3981
    %4047 = vmatpush.bf16.msra.mxu0 %v3980
    %4048 = vmatpush.bf16.msra.mxu0 %v3979
    %4049 = vmatpush.bf16.msra.mxu0 %v3978
    %4050 = vmatmul.bf16.gmra.mxu0 %v3778
    %v4051 = vpop.f32.mrf.mxu0
    %v4052 = vadd.f32 %v3848, %v4051
    %v4053 = vpop.f32.mrf.mxu0
    %v4054 = vadd.f32 %v3848, %v4053
    %4055 = vdwg.mxu0
    %4056 = vmatpush.bf16.msra.mxu0 %v3993
    %4057 = vmatpush.bf16.msra.mxu0 %v3992
    %4058 = vmatpush.bf16.msra.mxu0 %v3991
    %4059 = vmatpush.bf16.msra.mxu0 %v3990
    %4060 = vmatpush.bf16.msra.mxu0 %v3989
    %4061 = vmatpush.bf16.msra.mxu0 %v3988
    %4062 = vmatpush.bf16.msra.mxu0 %v3987
    %4063 = vmatpush.bf16.msra.mxu0 %v3986
    %4064 = vmatmul.bf16.gmra.mxu0 %v3779
    %v4065 = vpop.f32.mrf.mxu0
    %v4066 = vadd.f32 %v4052, %v4065
    %v4067 = vpop.f32.mrf.mxu0
    %v4068 = vadd.f32 %v4054, %v4067
    %4069 = vdwg.mxu0
    %4070 = vmatpush.bf16.msra.mxu0 %v4001
    %4071 = vmatpush.bf16.msra.mxu0 %v4000
    %4072 = vmatpush.bf16.msra.mxu0 %v3999
    %4073 = vmatpush.bf16.msra.mxu0 %v3998
    %4074 = vmatpush.bf16.msra.mxu0 %v3997
    %4075 = vmatpush.bf16.msra.mxu0 %v3996
    %4076 = vmatpush.bf16.msra.mxu0 %v3995
    %4077 = vmatpush.bf16.msra.mxu0 %v3994
    %4078 = vmatmul.bf16.gmra.mxu0 %v3780
    %v4079 = vpop.f32.mrf.mxu0
    %v4080 = vadd.f32 %v4066, %v4079
    %v4081 = vpop.f32.mrf.mxu0
    %v4082 = vadd.f32 %v4068, %v4081
    %4083 = vdwg.mxu0
    %4084 = vmatpush.bf16.msra.mxu0 %v4009
    %4085 = vmatpush.bf16.msra.mxu0 %v4008
    %4086 = vmatpush.bf16.msra.mxu0 %v4007
    %4087 = vmatpush.bf16.msra.mxu0 %v4006
    %4088 = vmatpush.bf16.msra.mxu0 %v4005
    %4089 = vmatpush.bf16.msra.mxu0 %v4004
    %4090 = vmatpush.bf16.msra.mxu0 %v4003
    %4091 = vmatpush.bf16.msra.mxu0 %v4002
    %4092 = vmatmul.bf16.gmra.mxu0 %v3781
    %v4093 = vpop.f32.mrf.mxu0
    %v4094 = vadd.f32 %v4080, %v4093
    %v4095 = vpop.f32.mrf.mxu0
    %v4096 = vadd.f32 %v4082, %v4095
    %4097 = vdwg.mxu0
    %4098 = vst [vmem:[#allocation14] sm:$0xff] %v4094
    %4099 = vst [vmem:[#allocation14 + $0x8] sm:$0xff] %v4096
    // Predicated region
    $region66: #{tpu_custom_call.1} parent=1 // pred_check
      _
    $region67: #{tpu_custom_call.1} parent=1 // pred_check_branch
      %4101 = sbr.rel (0) target = $region69
    $region68: #{tpu_custom_call.1} parent=1 // pred_region
      %4103 = vsyncadd [#allocation4], 0
      %s4104 = sshll.u32 [#allocation14], 4
      %s4105 = int_to_ptr.vmem [resolvable:$true] %s4104
      %s4106 = sshll.u32 %s9, 4
      %s4107 = int_to_ptr.hbm [resolvable:$true] %s4106
      %4112 = dma.vmem_to_hbm [thread:$0]  %s4105, 256, %s4107, [#allocation4], 128, 128, 8
    $region69: #{tpu_custom_call.1} parent=1 // pred_fallthru
      _
    // Predicated region
    $region70: #{tpu_custom_call.1} parent=1 // pred_check
      _
    $region71: #{tpu_custom_call.1} parent=1 // pred_check_branch
      %4114 = sbr.rel (0) target = $region73
    $region72: #{tpu_custom_call.1} parent=1 // pred_region
      %4116 = dma.done [#allocation4], 256
    $region73: #{tpu_custom_call.1} parent=1 // pred_fallthru
      _
    %4117 = vsyncpa [#allocation3], 1
    %4118 = vsyncpa [#allocation6], 1
    %4119 = vsyncpa [#allocation9], 1
    %4120 = vsyncpa [#allocation12], 1
    %4121 = vsyncpa [#allocation4], 1

</llo_original>
